<compile_context>
chip_gen: v7x
topology: tpu7x:2x2x1
jax: 0.10.0
libtpu: 0.0.40
codegen_flags: <defaults>
</compile_context>

<pallas_src>
import functools

import jax
import jax.numpy as jnp
from jax.experimental import pallas as pl
from jax.experimental.pallas import tpu as pltpu


# ------------------------------ fused kernel -------------------------------

def _pda_fused_kernel(xh_ref, xlf_ref, xl3_ref,
                      wdc_ref, bdc_ref, w3_ref, w7_ref,
                      w1se_ref, b1se_ref, w2se_ref, b2se_ref,
                      a11_ref, b11_ref,
                      out_ref,
                      ypad_ref, cpad_ref,
                      *, H2, W2, Ch, Cl, Cin):
    f32 = jnp.float32
    bf16 = jnp.bfloat16

    # ---- stage 1: ConvTranspose2d(Ch->Ch, 2, stride=2) as one banded matmul.
    # xh_ref row p holds fms_high row p//2 placed in the (p%2) block, so the
    # matmul directly produces the pixel-shuffled (H2, W2*Ch) deconv output.
    y = (jnp.dot(xh_ref[0].astype(bf16), wdc_ref[...],
                 preferred_element_type=f32) + bdc_ref[...])
    ypad_ref[0:1, :] = jnp.zeros((1, W2 * Ch), f32)
    ypad_ref[1:1 + H2, :] = y
    ypad_ref[1 + H2:2 + H2, :] = jnp.zeros((1, W2 * Ch), f32)

    # ---- stage 2: conv3x3(Ch->Cl, pad=1, no bias): 3 banded matmuls (one per kh)
    x1 = None
    for kh in range(3):
        t = jnp.dot(ypad_ref[kh:kh + H2, :].astype(bf16), w3_ref[kh],
                    preferred_element_type=f32)
        x1 = t if x1 is None else x1 + t                     # (H2, W2*Cl)

    # ---- stage 3: spatial gate: 7x7 conv over [channel-max | channel-avg]
    xl3 = xl3_ref[0]                                         # (H2, W2, Cin) f32
    cpad_ref[0:3, :] = jnp.zeros((3, 2 * W2), f32)
    cpad_ref[3 + H2:6 + H2, :] = jnp.zeros((3, 2 * W2), f32)
    cpad_ref[3:3 + H2, 0:W2] = jnp.max(xl3, axis=-1)
    cpad_ref[3:3 + H2, W2:2 * W2] = jnp.mean(xl3, axis=-1)
    spa = None
    for kh in range(7):
        t = jnp.dot(cpad_ref[kh:kh + H2, :].astype(bf16), w7_ref[kh],
                    preferred_element_type=f32)
        spa = t if spa is None else spa + t                  # (H2, W2*Cin), chan-broadcast

    # ---- stage 4: channel gate (SE): spatial mean folded into fc1 weights
    xlf = xlf_ref[0]                                         # (H2, W2*Cin) f32
    s = jnp.sum(xlf, axis=0, keepdims=True)                  # (1, W2*Cin)
    h1 = jnp.maximum(jnp.dot(s.astype(bf16), w1se_ref[...],
                             preferred_element_type=f32) + b1se_ref[...], 0.0)
    cha = jax.nn.sigmoid(jnp.dot(h1.astype(bf16), w2se_ref[...],
                                 preferred_element_type=f32) + b2se_ref[...])

    # ---- stage 5: GAP fuse: relu(x * (1 + sig(spa) + sig(cha)))
    x2 = jnp.maximum(xlf * (1.0 + jax.nn.sigmoid(spa) + cha), 0.0)

    # ---- stage 6: conv1x1(relu(cat(x1, x2))) as two block-diagonal matmuls
    out = (jnp.dot(jnp.maximum(x1, 0.0).astype(bf16), a11_ref[...],
                   preferred_element_type=f32)
           + jnp.dot(x2.astype(bf16), b11_ref[...],
                     preferred_element_type=f32))
    out_ref[0] = out.astype(out_ref.dtype)


# ---------------------- host-side operand / weight prep ---------------------

def _prep_operands(params, fms_high, fms_low):
    """Build lane-dense activation slabs and banded/block-diag weight matrices."""
    f32, bf16 = jnp.float32, jnp.bfloat16

    xh = jnp.transpose(fms_high, (0, 2, 3, 1)).astype(f32)      # (B, H, W, Ch)
    xl = jnp.transpose(fms_low, (0, 2, 3, 1)).astype(f32)       # (B, H2, W2, Cin)
    B, H, W, Ch = xh.shape
    _, H2, W2, Cin = xl.shape
    Cl = params["conv2_w"].shape[0]
    assert H2 == 2 * H and W2 == 2 * W
    assert Cl + Cin == Ch, "conv1x1 expects cat(x1, x2) to have Ch channels"

    # Activations: (rows, width*channels) slabs.
    xh_flat = xh.reshape(B, H, W * Ch)
    z = jnp.zeros_like(xh_flat)
    # Row p = 2i+a carries fms_high row i in block a (zeros elsewhere), so the
    # deconv is a single matmul producing already pixel-shuffled rows.
    xh_rep = jnp.stack([jnp.concatenate([xh_flat, z], axis=-1),
                        jnp.concatenate([z, xh_flat], axis=-1)],
                       axis=2).reshape(B, H2, 2 * W * Ch)
    xl_flat = xl.reshape(B, H2, W2 * Cin)

    q = jnp.arange(W2)

    # ConvTranspose2d(Ch, Ch, 2, stride=2) -> (2*W*Ch, W2*Ch) banded matrix.
    w_dc = params["deconv_w"].astype(f32)                       # (c_in, c_out, kh, kw)
    pj = (q[None, None, :] ==
          (2 * jnp.arange(W)[None, :, None]
           + jnp.arange(2)[:, None, None])).astype(f32)         # (kw, j, q_out)
    wdc = jnp.einsum('bjq,coab->ajcqo', pj, w_dc).reshape(2 * W * Ch, W2 * Ch)
    bdc = jnp.tile(params["deconv_b"].astype(f32), W2)[None, :]          # (1, W2*Ch)

    # conv3x3(Ch -> Cl, pad=1): stack of 3 banded matrices (kh, W2*Ch, W2*Cl).
    w3 = params["conv2_w"].astype(f32)                          # (n, c, kh, kw)
    q3 = (q[None, :, None] ==
          (q[None, None, :] + jnp.arange(3)[:, None, None] - 1)).astype(f32)
    w3b = jnp.einsum('dkq,ncvd->vkcqn', q3, w3).reshape(3, W2 * Ch, W2 * Cl)

    # 7x7 spatial-gate conv(2 -> 1, pad=3); eval-mode BN and the per-pixel
    # channel broadcast (to Cin lanes) folded into the banded matrices.
    bn_scale = 1.0 / jnp.sqrt(1.0 + 1e-5)
    w7 = params["spa_w"].astype(f32)[0] * bn_scale              # (t, kh, kw)
    q7 = (q[None, :, None] ==
          (q[None, None, :] + jnp.arange(7)[:, None, None] - 3)).astype(f32)
    w7b = jnp.einsum('dkq,tvd->vtkq', q7, w7)                   # (kh, t, q_in, q)
    w7b = jnp.broadcast_to(w7b[..., None],
                           (7, 2, W2, W2, Cin)).reshape(7, 2 * W2, W2 * Cin)

    # SE channel gate: spatial-mean and the q-tiling folded into the FC weights.
    w1se = jnp.tile(params["cha_w1"].astype(f32) / (H2 * W2), (W2, 1))   # (W2*Cin, Ch)
    b1se = params["cha_b1"].astype(f32)[None, :]                         # (1, Ch)
    w2se = jnp.tile(params["cha_w2"].astype(f32), (1, W2))               # (Ch, W2*Cin)
    b2se = jnp.tile(params["cha_b2"].astype(f32), W2)[None, :]           # (1, W2*Cin)

    # conv1x1(Ch -> Cl), split across the [x1 | x2] halves, block-diagonal over q.
    w11 = params["conv1_w"].astype(f32)[:, :, 0, 0]             # (m, Ch)
    eyeq = jnp.eye(W2, dtype=f32)
    a11 = jnp.einsum('qQ,mn->qnQm', eyeq, w11[:, :Cl]).reshape(W2 * Cl, W2 * Cl)
    b11 = jnp.einsum('qQ,mc->qcQm', eyeq, w11[:, Cl:]).reshape(W2 * Cin, W2 * Cl)

    weights = dict(
        wdc=wdc.astype(bf16), bdc=bdc,
        w3=w3b.astype(bf16), w7=w7b.astype(bf16),
        w1se=w1se.astype(bf16), b1se=b1se,
        w2se=w2se.astype(bf16), b2se=b2se,
        a11=a11.astype(bf16), b11=b11.astype(bf16))
    dims = dict(B=B, H2=H2, W2=W2, Ch=Ch, Cl=Cl, Cin=Cin)
    return xh_rep, xl_flat, xl, weights, dims


# ------------------------------- PDA forward --------------------------------

def pda_forward(params, fms_high, fms_low):
    """fms_high: (B, Ch, H, W); fms_low: (B, Ch//2, 2H, 2W)  -> (B, Cl, 2H, 2W)."""
    xh_rep, xl_flat, xl3, w, d = _prep_operands(params, fms_high, fms_low)
    B, H2, W2 = d["B"], d["H2"], d["W2"]
    Ch, Cl, Cin = d["Ch"], d["Cl"], d["Cin"]

    kernel = functools.partial(_pda_fused_kernel,
                               H2=H2, W2=W2, Ch=Ch, Cl=Cl, Cin=Cin)

    batch3 = lambda b: (b, 0, 0)
    batch4 = lambda b: (b, 0, 0, 0)
    const2 = lambda b: (0, 0)
    const3 = lambda b: (0, 0, 0)

    out_flat = pl.pallas_call(
        kernel,
        out_shape=jax.ShapeDtypeStruct((B, H2, W2 * Cl), jnp.float32),
        grid_spec=pltpu.PrefetchScalarGridSpec(
            num_scalar_prefetch=0,
            grid=(B,),
            in_specs=[
                pl.BlockSpec((1,) + xh_rep.shape[1:], batch3),   # xh (block-repeated)
                pl.BlockSpec((1,) + xl_flat.shape[1:], batch3),  # xl lane-flattened
                pl.BlockSpec((1,) + xl3.shape[1:], batch4),      # xl NHWC (for max/mean)
                pl.BlockSpec(w["wdc"].shape, const2),
                pl.BlockSpec(w["bdc"].shape, const2),
                pl.BlockSpec(w["w3"].shape, const3),
                pl.BlockSpec(w["w7"].shape, const3),
                pl.BlockSpec(w["w1se"].shape, const2),
                pl.BlockSpec(w["b1se"].shape, const2),
                pl.BlockSpec(w["w2se"].shape, const2),
                pl.BlockSpec(w["b2se"].shape, const2),
                pl.BlockSpec(w["a11"].shape, const2),
                pl.BlockSpec(w["b11"].shape, const2),
            ],
            out_specs=pl.BlockSpec((1, H2, W2 * Cl), batch3),
            scratch_shapes=[
                pltpu.VMEM((H2 + 2, W2 * Ch), jnp.float32),   # deconv out + 1-row halo
                pltpu.VMEM((H2 + 6, 2 * W2), jnp.float32),    # [max|avg] map + 3-row halo
            ],
        ),
        compiler_params=pltpu.CompilerParams(
            dimension_semantics=("parallel",)),
    )(xh_rep, xl_flat, xl3,
      w["wdc"], w["bdc"], w["w3"], w["w7"],
      w["w1se"], w["b1se"], w["w2se"], w["b2se"],
      w["a11"], w["b11"])

    out = out_flat.reshape(B, H2, W2, Cl)
    return jnp.transpose(out, (0, 3, 1, 2))                      # back to NCHW


# ------------------------------ params / reference ---------------------------

def init_params(key, channels_high, channels_low):
    ch, cl = channels_high, channels_low
    cin = ch // 2                                  # GAP in_ch
    ks = jax.random.split(key, 7)
    s = 0.1
    return {
        # PDA.deConv : ConvTranspose2d(ch, ch, 2, stride=2)  (torch layout: in,out,kh,kw)
        "deconv_w": jax.random.normal(ks[0], (ch, ch, 2, 2), jnp.float32) * s,
        "deconv_b": jax.random.normal(ks[1], (ch,), jnp.float32) * s,
        # PDA.conv2 : Conv2d(ch, cl, 3, pad=1, bias=False)   (torch layout: out,in,kh,kw)
        "conv2_w": jax.random.normal(ks[2], (cl, ch, 3, 3), jnp.float32) * s,
        # PDA.conv1 : Conv2d(ch, cl, 1, bias=False)
        "conv1_w": jax.random.normal(ks[3], (cl, ch, 1, 1), jnp.float32) * s,
        # GAP.atten_spa : CBAM-style 7x7 spatial gate conv(2 -> 1), bias=False, eval BN
        "spa_w": jax.random.normal(ks[4], (1, 2, 7, 7), jnp.float32) * s,
        # GAP.atten_cha : SE-style channel gate fc1(cin->ch), relu, fc2(ch->cin), sigmoid
        "cha_w1": jax.random.normal(ks[5], (cin, ch), jnp.float32) * s,
        "cha_b1": jnp.zeros((ch,), jnp.float32),
        "cha_w2": jax.random.normal(ks[6], (ch, cin), jnp.float32) * s,
        "cha_b2": jnp.zeros((cin,), jnp.float32),
    }


def _reference_forward(params, fms_high, fms_low):
    """Pure-JAX (XLA) reference with identical semantics, for a numeric check."""
    f32 = jnp.float32
    hp = jax.lax.Precision.HIGHEST
    xh = jnp.transpose(fms_high, (0, 2, 3, 1)).astype(f32)      # (B,H,W,Ch)
    xl = jnp.transpose(fms_low, (0, 2, 3, 1)).astype(f32)       # (B,H2,W2,Cin)
    B, H, W, Ch = xh.shape
    _, H2, W2, Cin = xl.shape

    w_dc = params["deconv_w"].astype(f32)                       # (c,o,kh,kw)
    y = jnp.einsum('nijc,couv->niujvo', xh, w_dc, precision=hp)
    y = y.reshape(B, H2, W2, Ch) + params["deconv_b"]

    w3 = jnp.transpose(params["conv2_w"].astype(f32), (2, 3, 1, 0))      # HWIO
    x1 = jax.lax.conv_general_dilated(
        y, w3, (1, 1), 'SAME', dimension_numbers=('NHWC', 'HWIO', 'NHWC'),
        precision=hp)

    comp = jnp.concatenate([jnp.max(xl, -1, keepdims=True),
                            jnp.mean(xl, -1, keepdims=True)], -1)
    w7 = jnp.transpose(params["spa_w"].astype(f32), (2, 3, 1, 0))        # HWIO
    spa = jax.lax.conv_general_dilated(
        comp, w7, (1, 1), 'SAME', dimension_numbers=('NHWC', 'HWIO', 'NHWC'),
        precision=hp) / jnp.sqrt(1.0 + 1e-5)

    pooled = jnp.mean(xl, axis=(1, 2))                                   # (B,Cin)
    h1 = jnp.maximum(jnp.dot(pooled, params["cha_w1"], precision=hp)
                     + params["cha_b1"], 0.0)
    cha = jax.nn.sigmoid(jnp.dot(h1, params["cha_w2"], precision=hp)
                         + params["cha_b2"])[:, None, None, :]

    x2 = jnp.maximum(xl * (1.0 + jax.nn.sigmoid(spa) + cha), 0.0)

    xcat = jnp.maximum(jnp.concatenate([x1, x2], -1), 0.0)
    w11 = jnp.transpose(params["conv1_w"].astype(f32)[:, :, 0, 0], (1, 0))
    out = jnp.dot(xcat, w11, precision=hp)
    return jnp.transpose(out, (0, 3, 1, 2))


# ---------------------------------- main ------------------------------------

if __name__ == "__main__":
    channels_high, channels_low = 16, 8           # channels_low == channels_high // 2
    B, H, W = 2, 8, 8

    key = jax.random.PRNGKey(0)
    k_hi, k_lo, k_p = jax.random.split(key, 3)
    fms_high = jax.random.normal(k_hi, (B, channels_high, H, W), jnp.float32)
    fms_low = jax.random.normal(k_lo, (B, channels_high // 2, 2 * H, 2 * W), jnp.float32)

    params = init_params(k_p, channels_high, channels_low)

    fwd = jax.jit(pda_forward)
    out = jax.block_until_ready(fwd(params, fms_high, fms_low))
    assert out.shape == (B, channels_low, 2 * H, 2 * W), out.shape
    assert bool(jnp.all(jnp.isfinite(out)))

    ref = jax.block_until_ready(_reference_forward(params, fms_high, fms_low))
    max_err = float(jnp.max(jnp.abs(out - ref)))
    assert max_err < 1e-1, f"max abs error vs reference too large: {max_err}"

    print("KERNEL_OK")
</pallas_src>

<mosaic_0001>
module attributes {stable_mosaic.version = 11 : i64} {
  func.func @_pda_fused_kernel(%arg0: i32, %arg1: memref<1x16x256xf32, #tpu.memory_space<vmem>>, %arg2: memref<1x16x128xf32, #tpu.memory_space<vmem>>, %arg3: memref<1x16x16x8xf32, #tpu.memory_space<vmem>>, %arg4: memref<256x256xbf16, #tpu.memory_space<vmem>>, %arg5: memref<1x256xf32, #tpu.memory_space<vmem>>, %arg6: memref<3x256x128xbf16, #tpu.memory_space<vmem>>, %arg7: memref<7x32x128xbf16, #tpu.memory_space<vmem>>, %arg8: memref<128x16xbf16, #tpu.memory_space<vmem>>, %arg9: memref<1x16xf32, #tpu.memory_space<vmem>>, %arg10: memref<16x128xbf16, #tpu.memory_space<vmem>>, %arg11: memref<1x128xf32, #tpu.memory_space<vmem>>, %arg12: memref<128x128xbf16, #tpu.memory_space<vmem>>, %arg13: memref<128x128xbf16, #tpu.memory_space<vmem>>, %arg14: memref<1x16x128xf32, #tpu.memory_space<vmem>>, %arg15: memref<18x256xf32, #tpu.memory_space<vmem>>, %arg16: memref<22x32xf32, #tpu.memory_space<vmem>>) attributes {dimension_semantics = [#tpu.dimension_semantics<parallel>], iteration_bounds = array<i64: 2>, scalar_prefetch = 0 : i64, scratch_operands = 2 : i64, tpu.core_type = #tpu.core_type<tc>, window_params = [{transform_indices = @transform_0, window_bounds = array<i64: 1, 16, 256>}, {transform_indices = @transform_1, window_bounds = array<i64: 1, 16, 128>}, {transform_indices = @transform_2, window_bounds = array<i64: 1, 16, 16, 8>}, {pipeline_mode = #tpu.pipeline_mode<synchronous>, transform_indices = @transform_3, window_bounds = array<i64: 256, 256>}, {pipeline_mode = #tpu.pipeline_mode<synchronous>, transform_indices = @transform_4, window_bounds = array<i64: 1, 256>}, {pipeline_mode = #tpu.pipeline_mode<synchronous>, transform_indices = @transform_5, window_bounds = array<i64: 3, 256, 128>}, {pipeline_mode = #tpu.pipeline_mode<synchronous>, transform_indices = @transform_6, window_bounds = array<i64: 7, 32, 128>}, {pipeline_mode = #tpu.pipeline_mode<synchronous>, transform_indices = @transform_7, window_bounds = array<i64: 128, 16>}, {pipeline_mode = #tpu.pipeline_mode<synchronous>, transform_indices = @transform_8, window_bounds = array<i64: 1, 16>}, {pipeline_mode = #tpu.pipeline_mode<synchronous>, transform_indices = @transform_9, window_bounds = array<i64: 16, 128>}, {pipeline_mode = #tpu.pipeline_mode<synchronous>, transform_indices = @transform_10, window_bounds = array<i64: 1, 128>}, {pipeline_mode = #tpu.pipeline_mode<synchronous>, transform_indices = @transform_11, window_bounds = array<i64: 128, 128>}, {pipeline_mode = #tpu.pipeline_mode<synchronous>, transform_indices = @transform_12, window_bounds = array<i64: 128, 128>}, {transform_indices = @transform_13, window_bounds = array<i64: 1, 16, 128>}]} {
    %c0 = arith.constant 0 : index
    %c0_0 = arith.constant 0 : index
    %c0_1 = arith.constant 0 : index
    %0 = vector.load %arg1[%c0, %c0_0, %c0_1] : memref<1x16x256xf32, #tpu.memory_space<vmem>>, vector<1x16x256xf32>
    %1 = vector.shape_cast %0 : vector<1x16x256xf32> to vector<16x256xf32>
    %2 = arith.truncf %1 : vector<16x256xf32> to vector<16x256xbf16>
    %c0_2 = arith.constant 0 : index
    %c0_3 = arith.constant 0 : index
    %3 = vector.load %arg4[%c0_2, %c0_3] : memref<256x256xbf16, #tpu.memory_space<vmem>>, vector<256x256xbf16>
    %cst = arith.constant dense<0.000000e+00> : vector<16x256xf32>
    %4 = tpu.matmul %2, %3, %cst {dimension_numbers = #tpu.dot_dimension_numbers<[1], [0], [0], [1], [0, 0, 1, 1], [], []>} : vector<16x256xbf16>, vector<256x256xbf16>, vector<16x256xf32> -> vector<16x256xf32>
    %c0_4 = arith.constant 0 : index
    %c0_5 = arith.constant 0 : index
    %5 = vector.load %arg5[%c0_4, %c0_5] : memref<1x256xf32, #tpu.memory_space<vmem>>, vector<1x256xf32>
    %6 = vector.broadcast %5 : vector<1x256xf32> to vector<16x256xf32>
    %7 = arith.addf %4, %6 : vector<16x256xf32>
    %cst_6 = arith.constant 0.000000e+00 : f32
    %8 = vector.broadcast %cst_6 : f32 to vector<1x256xf32>
    %c0_7 = arith.constant 0 : index
    %c0_8 = arith.constant 0 : index
    %9 = vector.load %arg15[%c0_7, %c0_8] : memref<18x256xf32, #tpu.memory_space<vmem>>, vector<1x256xf32>
    tpu.vector_store %arg15[%c0_7, %c0_8], %8 {strides = array<i32>} : memref<18x256xf32, #tpu.memory_space<vmem>>, vector<1x256xf32>,
    %c1 = arith.constant 1 : index
    %c0_9 = arith.constant 0 : index
    %10 = vector.load %arg15[%c1, %c0_9] : memref<18x256xf32, #tpu.memory_space<vmem>>, vector<16x256xf32>
    tpu.vector_store %arg15[%c1, %c0_9], %7 {strides = array<i32>} : memref<18x256xf32, #tpu.memory_space<vmem>>, vector<16x256xf32>,
    %cst_10 = arith.constant 0.000000e+00 : f32
    %11 = vector.broadcast %cst_10 : f32 to vector<1x256xf32>
    %c17 = arith.constant 17 : index
    %c0_11 = arith.constant 0 : index
    %12 = vector.load %arg15[%c17, %c0_11] : memref<18x256xf32, #tpu.memory_space<vmem>>, vector<1x256xf32>
    tpu.vector_store %arg15[%c17, %c0_11], %11 {strides = array<i32>} : memref<18x256xf32, #tpu.memory_space<vmem>>, vector<1x256xf32>,
    %c0_12 = arith.constant 0 : index
    %c0_13 = arith.constant 0 : index
    %13 = vector.load %arg15[%c0_12, %c0_13] : memref<18x256xf32, #tpu.memory_space<vmem>>, vector<16x256xf32>
    %14 = arith.truncf %13 : vector<16x256xf32> to vector<16x256xbf16>
    %c0_14 = arith.constant 0 : index
    %c0_15 = arith.constant 0 : index
    %c0_16 = arith.constant 0 : index
    %15 = vector.load %arg6[%c0_14, %c0_15, %c0_16] : memref<3x256x128xbf16, #tpu.memory_space<vmem>>, vector<1x256x128xbf16>
    %16 = vector.shape_cast %15 : vector<1x256x128xbf16> to vector<256x128xbf16>
    %cst_17 = arith.constant dense<0.000000e+00> : vector<16x128xf32>
    %17 = tpu.matmul %14, %16, %cst_17 {dimension_numbers = #tpu.dot_dimension_numbers<[1], [0], [0], [1], [0, 0, 1, 1], [], []>} : vector<16x256xbf16>, vector<256x128xbf16>, vector<16x128xf32> -> vector<16x128xf32>
    %c1_18 = arith.constant 1 : index
    %c0_19 = arith.constant 0 : index
    %18 = vector.load %arg15[%c1_18, %c0_19] : memref<18x256xf32, #tpu.memory_space<vmem>>, vector<16x256xf32>
    %19 = arith.truncf %18 : vector<16x256xf32> to vector<16x256xbf16>
    %c1_20 = arith.constant 1 : index
    %c0_21 = arith.constant 0 : index
    %c0_22 = arith.constant 0 : index
    %20 = vector.load %arg6[%c1_20, %c0_21, %c0_22] : memref<3x256x128xbf16, #tpu.memory_space<vmem>>, vector<1x256x128xbf16>
    %21 = vector.shape_cast %20 : vector<1x256x128xbf16> to vector<256x128xbf16>
    %cst_23 = arith.constant dense<0.000000e+00> : vector<16x128xf32>
    %22 = tpu.matmul %19, %21, %cst_23 {dimension_numbers = #tpu.dot_dimension_numbers<[1], [0], [0], [1], [0, 0, 1, 1], [], []>} : vector<16x256xbf16>, vector<256x128xbf16>, vector<16x128xf32> -> vector<16x128xf32>
    %23 = arith.addf %17, %22 : vector<16x128xf32>
    %c2 = arith.constant 2 : index
    %c0_24 = arith.constant 0 : index
    %24 = vector.load %arg15[%c2, %c0_24] : memref<18x256xf32, #tpu.memory_space<vmem>>, vector<16x256xf32>
    %25 = arith.truncf %24 : vector<16x256xf32> to vector<16x256xbf16>
    %c2_25 = arith.constant 2 : index
    %c0_26 = arith.constant 0 : index
    %c0_27 = arith.constant 0 : index
    %26 = vector.load %arg6[%c2_25, %c0_26, %c0_27] : memref<3x256x128xbf16, #tpu.memory_space<vmem>>, vector<1x256x128xbf16>
    %27 = vector.shape_cast %26 : vector<1x256x128xbf16> to vector<256x128xbf16>
    %cst_28 = arith.constant dense<0.000000e+00> : vector<16x128xf32>
    %28 = tpu.matmul %25, %27, %cst_28 {dimension_numbers = #tpu.dot_dimension_numbers<[1], [0], [0], [1], [0, 0, 1, 1], [], []>} : vector<16x256xbf16>, vector<256x128xbf16>, vector<16x128xf32> -> vector<16x128xf32>
    %29 = arith.addf %23, %28 : vector<16x128xf32>
    %c0_29 = arith.constant 0 : index
    %c0_30 = arith.constant 0 : index
    %c0_31 = arith.constant 0 : index
    %c0_32 = arith.constant 0 : index
    %30 = vector.load %arg3[%c0_29, %c0_30, %c0_31, %c0_32] : memref<1x16x16x8xf32, #tpu.memory_space<vmem>>, vector<1x16x16x8xf32>
    %31 = vector.shape_cast %30 : vector<1x16x16x8xf32> to vector<16x16x8xf32>
    %cst_33 = arith.constant 0.000000e+00 : f32
    %32 = vector.broadcast %cst_33 : f32 to vector<3x32xf32>
    %c0_34 = arith.constant 0 : index
    %c0_35 = arith.constant 0 : index
    %33 = vector.load %arg16[%c0_34, %c0_35] : memref<22x32xf32, #tpu.memory_space<vmem>>, vector<3x32xf32>
    tpu.vector_store %arg16[%c0_34, %c0_35], %32 {strides = array<i32>} : memref<22x32xf32, #tpu.memory_space<vmem>>, vector<3x32xf32>,
    %cst_36 = arith.constant 0.000000e+00 : f32
    %34 = vector.broadcast %cst_36 : f32 to vector<3x32xf32>
    %c19 = arith.constant 19 : index
    %c0_37 = arith.constant 0 : index
    %35 = vector.load %arg16[%c19, %c0_37] : memref<22x32xf32, #tpu.memory_space<vmem>>, vector<3x32xf32>
    tpu.vector_store %arg16[%c19, %c0_37], %34 {strides = array<i32>} : memref<22x32xf32, #tpu.memory_space<vmem>>, vector<3x32xf32>,
    %cst_38 = arith.constant dense<0xFF800000> : vector<16x16xf32>
    %36 = vector.multi_reduction <maximumf>, %31, %cst_38 [2] : vector<16x16x8xf32> to vector<16x16xf32>
    %c3 = arith.constant 3 : index
    %c0_39 = arith.constant 0 : index
    %37 = vector.load %arg16[%c3, %c0_39] : memref<22x32xf32, #tpu.memory_space<vmem>>, vector<16x16xf32>
    tpu.vector_store %arg16[%c3, %c0_39], %36 {strides = array<i32>} : memref<22x32xf32, #tpu.memory_space<vmem>>, vector<16x16xf32>,
    %cst_40 = arith.constant dense<0.000000e+00> : vector<16x16xf32>
    %38 = vector.multi_reduction <add>, %31, %cst_40 [2] : vector<16x16x8xf32> to vector<16x16xf32>
    %cst_41 = arith.constant 8.000000e+00 : f32
    %39 = vector.broadcast %cst_41 : f32 to vector<16x16xf32>
    %40 = arith.divf %38, %39 : vector<16x16xf32>
    %c3_42 = arith.constant 3 : index
    %c16 = arith.constant 16 : index
    %41 = vector.load %arg16[%c3_42, %c16] : memref<22x32xf32, #tpu.memory_space<vmem>>, vector<16x16xf32>
    tpu.vector_store %arg16[%c3_42, %c16], %40 {strides = array<i32>} : memref<22x32xf32, #tpu.memory_space<vmem>>, vector<16x16xf32>,
    %c0_43 = arith.constant 0 : index
    %c0_44 = arith.constant 0 : index
    %42 = vector.load %arg16[%c0_43, %c0_44] : memref<22x32xf32, #tpu.memory_space<vmem>>, vector<16x32xf32>
    %43 = arith.truncf %42 : vector<16x32xf32> to vector<16x32xbf16>
    %c0_45 = arith.constant 0 : index
    %c0_46 = arith.constant 0 : index
    %c0_47 = arith.constant 0 : index
    %44 = vector.load %arg7[%c0_45, %c0_46, %c0_47] : memref<7x32x128xbf16, #tpu.memory_space<vmem>>, vector<1x32x128xbf16>
    %45 = vector.shape_cast %44 : vector<1x32x128xbf16> to vector<32x128xbf16>
    %cst_48 = arith.constant dense<0.000000e+00> : vector<16x128xf32>
    %46 = tpu.matmul %43, %45, %cst_48 {dimension_numbers = #tpu.dot_dimension_numbers<[1], [0], [0], [1], [0, 0, 1, 1], [], []>} : vector<16x32xbf16>, vector<32x128xbf16>, vector<16x128xf32> -> vector<16x128xf32>
    %c1_49 = arith.constant 1 : index
    %c0_50 = arith.constant 0 : index
    %47 = vector.load %arg16[%c1_49, %c0_50] : memref<22x32xf32, #tpu.memory_space<vmem>>, vector<16x32xf32>
    %48 = arith.truncf %47 : vector<16x32xf32> to vector<16x32xbf16>
    %c1_51 = arith.constant 1 : index
    %c0_52 = arith.constant 0 : index
    %c0_53 = arith.constant 0 : index
    %49 = vector.load %arg7[%c1_51, %c0_52, %c0_53] : memref<7x32x128xbf16, #tpu.memory_space<vmem>>, vector<1x32x128xbf16>
    %50 = vector.shape_cast %49 : vector<1x32x128xbf16> to vector<32x128xbf16>
    %cst_54 = arith.constant dense<0.000000e+00> : vector<16x128xf32>
    %51 = tpu.matmul %48, %50, %cst_54 {dimension_numbers = #tpu.dot_dimension_numbers<[1], [0], [0], [1], [0, 0, 1, 1], [], []>} : vector<16x32xbf16>, vector<32x128xbf16>, vector<16x128xf32> -> vector<16x128xf32>
    %52 = arith.addf %46, %51 : vector<16x128xf32>
    %c2_55 = arith.constant 2 : index
    %c0_56 = arith.constant 0 : index
    %53 = vector.load %arg16[%c2_55, %c0_56] : memref<22x32xf32, #tpu.memory_space<vmem>>, vector<16x32xf32>
    %54 = arith.truncf %53 : vector<16x32xf32> to vector<16x32xbf16>
    %c2_57 = arith.constant 2 : index
    %c0_58 = arith.constant 0 : index
    %c0_59 = arith.constant 0 : index
    %55 = vector.load %arg7[%c2_57, %c0_58, %c0_59] : memref<7x32x128xbf16, #tpu.memory_space<vmem>>, vector<1x32x128xbf16>
    %56 = vector.shape_cast %55 : vector<1x32x128xbf16> to vector<32x128xbf16>
    %cst_60 = arith.constant dense<0.000000e+00> : vector<16x128xf32>
    %57 = tpu.matmul %54, %56, %cst_60 {dimension_numbers = #tpu.dot_dimension_numbers<[1], [0], [0], [1], [0, 0, 1, 1], [], []>} : vector<16x32xbf16>, vector<32x128xbf16>, vector<16x128xf32> -> vector<16x128xf32>
    %58 = arith.addf %52, %57 : vector<16x128xf32>
    %c3_61 = arith.constant 3 : index
    %c0_62 = arith.constant 0 : index
    %59 = vector.load %arg16[%c3_61, %c0_62] : memref<22x32xf32, #tpu.memory_space<vmem>>, vector<16x32xf32>
    %60 = arith.truncf %59 : vector<16x32xf32> to vector<16x32xbf16>
    %c3_63 = arith.constant 3 : index
    %c0_64 = arith.constant 0 : index
    %c0_65 = arith.constant 0 : index
    %61 = vector.load %arg7[%c3_63, %c0_64, %c0_65] : memref<7x32x128xbf16, #tpu.memory_space<vmem>>, vector<1x32x128xbf16>
    %62 = vector.shape_cast %61 : vector<1x32x128xbf16> to vector<32x128xbf16>
    %cst_66 = arith.constant dense<0.000000e+00> : vector<16x128xf32>
    %63 = tpu.matmul %60, %62, %cst_66 {dimension_numbers = #tpu.dot_dimension_numbers<[1], [0], [0], [1], [0, 0, 1, 1], [], []>} : vector<16x32xbf16>, vector<32x128xbf16>, vector<16x128xf32> -> vector<16x128xf32>
    %64 = arith.addf %58, %63 : vector<16x128xf32>
    %c4 = arith.constant 4 : index
    %c0_67 = arith.constant 0 : index
    %65 = vector.load %arg16[%c4, %c0_67] : memref<22x32xf32, #tpu.memory_space<vmem>>, vector<16x32xf32>
    %66 = arith.truncf %65 : vector<16x32xf32> to vector<16x32xbf16>
    %c4_68 = arith.constant 4 : index
    %c0_69 = arith.constant 0 : index
    %c0_70 = arith.constant 0 : index
    %67 = vector.load %arg7[%c4_68, %c0_69, %c0_70] : memref<7x32x128xbf16, #tpu.memory_space<vmem>>, vector<1x32x128xbf16>
    %68 = vector.shape_cast %67 : vector<1x32x128xbf16> to vector<32x128xbf16>
    %cst_71 = arith.constant dense<0.000000e+00> : vector<16x128xf32>
    %69 = tpu.matmul %66, %68, %cst_71 {dimension_numbers = #tpu.dot_dimension_numbers<[1], [0], [0], [1], [0, 0, 1, 1], [], []>} : vector<16x32xbf16>, vector<32x128xbf16>, vector<16x128xf32> -> vector<16x128xf32>
    %70 = arith.addf %64, %69 : vector<16x128xf32>
    %c5 = arith.constant 5 : index
    %c0_72 = arith.constant 0 : index
    %71 = vector.load %arg16[%c5, %c0_72] : memref<22x32xf32, #tpu.memory_space<vmem>>, vector<16x32xf32>
    %72 = arith.truncf %71 : vector<16x32xf32> to vector<16x32xbf16>
    %c5_73 = arith.constant 5 : index
    %c0_74 = arith.constant 0 : index
    %c0_75 = arith.constant 0 : index
    %73 = vector.load %arg7[%c5_73, %c0_74, %c0_75] : memref<7x32x128xbf16, #tpu.memory_space<vmem>>, vector<1x32x128xbf16>
    %74 = vector.shape_cast %73 : vector<1x32x128xbf16> to vector<32x128xbf16>
    %cst_76 = arith.constant dense<0.000000e+00> : vector<16x128xf32>
    %75 = tpu.matmul %72, %74, %cst_76 {dimension_numbers = #tpu.dot_dimension_numbers<[1], [0], [0], [1], [0, 0, 1, 1], [], []>} : vector<16x32xbf16>, vector<32x128xbf16>, vector<16x128xf32> -> vector<16x128xf32>
    %76 = arith.addf %70, %75 : vector<16x128xf32>
    %c6 = arith.constant 6 : index
    %c0_77 = arith.constant 0 : index
    %77 = vector.load %arg16[%c6, %c0_77] : memref<22x32xf32, #tpu.memory_space<vmem>>, vector<16x32xf32>
    %78 = arith.truncf %77 : vector<16x32xf32> to vector<16x32xbf16>
    %c6_78 = arith.constant 6 : index
    %c0_79 = arith.constant 0 : index
    %c0_80 = arith.constant 0 : index
    %79 = vector.load %arg7[%c6_78, %c0_79, %c0_80] : memref<7x32x128xbf16, #tpu.memory_space<vmem>>, vector<1x32x128xbf16>
    %80 = vector.shape_cast %79 : vector<1x32x128xbf16> to vector<32x128xbf16>
    %cst_81 = arith.constant dense<0.000000e+00> : vector<16x128xf32>
    %81 = tpu.matmul %78, %80, %cst_81 {dimension_numbers = #tpu.dot_dimension_numbers<[1], [0], [0], [1], [0, 0, 1, 1], [], []>} : vector<16x32xbf16>, vector<32x128xbf16>, vector<16x128xf32> -> vector<16x128xf32>
    %82 = arith.addf %76, %81 : vector<16x128xf32>
    %c0_82 = arith.constant 0 : index
    %c0_83 = arith.constant 0 : index
    %c0_84 = arith.constant 0 : index
    %83 = vector.load %arg2[%c0_82, %c0_83, %c0_84] : memref<1x16x128xf32, #tpu.memory_space<vmem>>, vector<1x16x128xf32>
    %84 = vector.shape_cast %83 : vector<1x16x128xf32> to vector<16x128xf32>
    %cst_85 = arith.constant dense<0.000000e+00> : vector<128xf32>
    %85 = vector.multi_reduction <add>, %84, %cst_85 [0] : vector<16x128xf32> to vector<128xf32>
    %86 = vector.shape_cast %85 : vector<128xf32> to vector<1x128xf32>
    %87 = arith.truncf %86 : vector<1x128xf32> to vector<1x128xbf16>
    %c0_86 = arith.constant 0 : index
    %c0_87 = arith.constant 0 : index
    %88 = vector.load %arg8[%c0_86, %c0_87] : memref<128x16xbf16, #tpu.memory_space<vmem>>, vector<128x16xbf16>
    %cst_88 = arith.constant dense<0.000000e+00> : vector<1x16xf32>
    %89 = tpu.matmul %87, %88, %cst_88 {dimension_numbers = #tpu.dot_dimension_numbers<[1], [0], [0], [1], [0, 0, 1, 1], [], []>} : vector<1x128xbf16>, vector<128x16xbf16>, vector<1x16xf32> -> vector<1x16xf32>
    %c0_89 = arith.constant 0 : index
    %c0_90 = arith.constant 0 : index
    %90 = vector.load %arg9[%c0_89, %c0_90] : memref<1x16xf32, #tpu.memory_space<vmem>>, vector<1x16xf32>
    %91 = arith.addf %89, %90 : vector<1x16xf32>
    %cst_91 = arith.constant 0.000000e+00 : f32
    %92 = vector.broadcast %cst_91 : f32 to vector<1x16xf32>
    %93 = arith.maximumf %91, %92 : vector<1x16xf32>
    %94 = arith.truncf %93 : vector<1x16xf32> to vector<1x16xbf16>
    %c0_92 = arith.constant 0 : index
    %c0_93 = arith.constant 0 : index
    %95 = vector.load %arg10[%c0_92, %c0_93] : memref<16x128xbf16, #tpu.memory_space<vmem>>, vector<16x128xbf16>
    %cst_94 = arith.constant dense<0.000000e+00> : vector<1x128xf32>
    %96 = tpu.matmul %94, %95, %cst_94 {dimension_numbers = #tpu.dot_dimension_numbers<[1], [0], [0], [1], [0, 0, 1, 1], [], []>} : vector<1x16xbf16>, vector<16x128xbf16>, vector<1x128xf32> -> vector<1x128xf32>
    %c0_95 = arith.constant 0 : index
    %c0_96 = arith.constant 0 : index
    %97 = vector.load %arg11[%c0_95, %c0_96] : memref<1x128xf32, #tpu.memory_space<vmem>>, vector<1x128xf32>
    %98 = arith.addf %96, %97 : vector<1x128xf32>
    %99 = arith.negf %98 : vector<1x128xf32>
    %100 = math.exp %99 : vector<1x128xf32>
    %cst_97 = arith.constant 1.000000e+00 : f32
    %101 = vector.broadcast %cst_97 : f32 to vector<1x128xf32>
    %102 = arith.addf %101, %100 : vector<1x128xf32>
    %103 = arith.divf %101, %102 : vector<1x128xf32>
    %104 = arith.negf %82 : vector<16x128xf32>
    %105 = math.exp %104 : vector<16x128xf32>
    %cst_98 = arith.constant 1.000000e+00 : f32
    %106 = vector.broadcast %cst_98 : f32 to vector<16x128xf32>
    %107 = arith.addf %106, %105 : vector<16x128xf32>
    %108 = arith.divf %106, %107 : vector<16x128xf32>
    %cst_99 = arith.constant 1.000000e+00 : f32
    %109 = vector.broadcast %cst_99 : f32 to vector<16x128xf32>
    %110 = arith.addf %109, %108 : vector<16x128xf32>
    %111 = vector.broadcast %103 : vector<1x128xf32> to vector<16x128xf32>
    %112 = arith.addf %110, %111 : vector<16x128xf32>
    %113 = arith.mulf %84, %112 : vector<16x128xf32>
    %cst_100 = arith.constant 0.000000e+00 : f32
    %114 = vector.broadcast %cst_100 : f32 to vector<16x128xf32>
    %115 = arith.maximumf %113, %114 : vector<16x128xf32>
    %cst_101 = arith.constant 0.000000e+00 : f32
    %116 = vector.broadcast %cst_101 : f32 to vector<16x128xf32>
    %117 = arith.maximumf %29, %116 : vector<16x128xf32>
    %118 = arith.truncf %117 : vector<16x128xf32> to vector<16x128xbf16>
    %c0_102 = arith.constant 0 : index
    %c0_103 = arith.constant 0 : index
    %119 = vector.load %arg12[%c0_102, %c0_103] : memref<128x128xbf16, #tpu.memory_space<vmem>>, vector<128x128xbf16>
    %cst_104 = arith.constant dense<0.000000e+00> : vector<16x128xf32>
    %120 = tpu.matmul %118, %119, %cst_104 {dimension_numbers = #tpu.dot_dimension_numbers<[1], [0], [0], [1], [0, 0, 1, 1], [], []>} : vector<16x128xbf16>, vector<128x128xbf16>, vector<16x128xf32> -> vector<16x128xf32>
    %121 = arith.truncf %115 : vector<16x128xf32> to vector<16x128xbf16>
    %c0_105 = arith.constant 0 : index
    %c0_106 = arith.constant 0 : index
    %122 = vector.load %arg13[%c0_105, %c0_106] : memref<128x128xbf16, #tpu.memory_space<vmem>>, vector<128x128xbf16>
    %cst_107 = arith.constant dense<0.000000e+00> : vector<16x128xf32>
    %123 = tpu.matmul %121, %122, %cst_107 {dimension_numbers = #tpu.dot_dimension_numbers<[1], [0], [0], [1], [0, 0, 1, 1], [], []>} : vector<16x128xbf16>, vector<128x128xbf16>, vector<16x128xf32> -> vector<16x128xf32>
    %124 = arith.addf %120, %123 : vector<16x128xf32>
    %c0_108 = arith.constant 0 : index
    %c0_109 = arith.constant 0 : index
    %c0_110 = arith.constant 0 : index
    %125 = vector.load %arg14[%c0_108, %c0_109, %c0_110] : memref<1x16x128xf32, #tpu.memory_space<vmem>>, vector<1x16x128xf32>
    %126 = vector.shape_cast %125 : vector<1x16x128xf32> to vector<16x128xf32>
    %127 = vector.shape_cast %124 : vector<16x128xf32> to vector<1x16x128xf32>
    tpu.vector_store %arg14[%c0_108, %c0_109, %c0_110], %127 {strides = array<i32>} : memref<1x16x128xf32, #tpu.memory_space<vmem>>, vector<1x16x128xf32>,
    return
  }
  func.func @transform_0(%arg0: i32) -> (i32, i32, i32) {
    %c0_i32 = arith.constant 0 : i32
    %c0_i32_0 = arith.constant 0 : i32
    %c0_i32_1 = arith.constant 0 : i32
    return %arg0, %c0_i32, %c0_i32_0 : i32, i32, i32
  }
  func.func @transform_1(%arg0: i32) -> (i32, i32, i32) {
    %c0_i32 = arith.constant 0 : i32
    %c0_i32_0 = arith.constant 0 : i32
    %c0_i32_1 = arith.constant 0 : i32
    return %arg0, %c0_i32, %c0_i32_0 : i32, i32, i32
  }
  func.func @transform_2(%arg0: i32) -> (i32, i32, i32, i32) {
    %c0_i32 = arith.constant 0 : i32
    %c0_i32_0 = arith.constant 0 : i32
    %c0_i32_1 = arith.constant 0 : i32
    %c0_i32_2 = arith.constant 0 : i32
    return %arg0, %c0_i32, %c0_i32_0, %c0_i32_1 : i32, i32, i32, i32
  }
  func.func @transform_3(%arg0: i32) -> (i32, i32) {
    %c0_i32 = arith.constant 0 : i32
    %c0_i32_0 = arith.constant 0 : i32
    %c0_i32_1 = arith.constant 0 : i32
    return %c0_i32, %c0_i32_0 : i32, i32
  }
  func.func @transform_4(%arg0: i32) -> (i32, i32) {
    %c0_i32 = arith.constant 0 : i32
    %c0_i32_0 = arith.constant 0 : i32
    %c0_i32_1 = arith.constant 0 : i32
    return %c0_i32, %c0_i32_0 : i32, i32
  }
  func.func @transform_5(%arg0: i32) -> (i32, i32, i32) {
    %c0_i32 = arith.constant 0 : i32
    %c0_i32_0 = arith.constant 0 : i32
    %c0_i32_1 = arith.constant 0 : i32
    %c0_i32_2 = arith.constant 0 : i32
    return %c0_i32, %c0_i32_0, %c0_i32_1 : i32, i32, i32
  }
  func.func @transform_6(%arg0: i32) -> (i32, i32, i32) {
    %c0_i32 = arith.constant 0 : i32
    %c0_i32_0 = arith.constant 0 : i32
    %c0_i32_1 = arith.constant 0 : i32
    %c0_i32_2 = arith.constant 0 : i32
    return %c0_i32, %c0_i32_0, %c0_i32_1 : i32, i32, i32
  }
  func.func @transform_7(%arg0: i32) -> (i32, i32) {
    %c0_i32 = arith.constant 0 : i32
    %c0_i32_0 = arith.constant 0 : i32
    %c0_i32_1 = arith.constant 0 : i32
    return %c0_i32, %c0_i32_0 : i32, i32
  }
  func.func @transform_8(%arg0: i32) -> (i32, i32) {
    %c0_i32 = arith.constant 0 : i32
    %c0_i32_0 = arith.constant 0 : i32
    %c0_i32_1 = arith.constant 0 : i32
    return %c0_i32, %c0_i32_0 : i32, i32
  }
  func.func @transform_9(%arg0: i32) -> (i32, i32) {
    %c0_i32 = arith.constant 0 : i32
    %c0_i32_0 = arith.constant 0 : i32
    %c0_i32_1 = arith.constant 0 : i32
    return %c0_i32, %c0_i32_0 : i32, i32
  }
  func.func @transform_10(%arg0: i32) -> (i32, i32) {
    %c0_i32 = arith.constant 0 : i32
    %c0_i32_0 = arith.constant 0 : i32
    %c0_i32_1 = arith.constant 0 : i32
    return %c0_i32, %c0_i32_0 : i32, i32
  }
  func.func @transform_11(%arg0: i32) -> (i32, i32) {
    %c0_i32 = arith.constant 0 : i32
    %c0_i32_0 = arith.constant 0 : i32
    %c0_i32_1 = arith.constant 0 : i32
    return %c0_i32, %c0_i32_0 : i32, i32
  }
  func.func @transform_12(%arg0: i32) -> (i32, i32) {
    %c0_i32 = arith.constant 0 : i32
    %c0_i32_0 = arith.constant 0 : i32
    %c0_i32_1 = arith.constant 0 : i32
    return %c0_i32, %c0_i32_0 : i32, i32
  }
  func.func @transform_13(%arg0: i32) -> (i32, i32, i32) {
    %c0_i32 = arith.constant 0 : i32
    %c0_i32_0 = arith.constant 0 : i32
    %c0_i32_1 = arith.constant 0 : i32
    return %arg0, %c0_i32, %c0_i32_0 : i32, i32, i32
  }
}

</mosaic_0001>

<llo_original>
// kernel: tile.23
$region0: #{tile.23}
  #allocation0 [shape = 's32[1]{0}', space=sflag, size = 0x4, scoped, tag = 'scoped memory for tile.23']
  %s0 = inlined_call_operand.vmem [shape: f32[16], index: 0, kind: input, shape index: {}]
  %s1 = inlined_call_operand.vmem [shape: f32[16,16], index: 1, kind: output, shape index: {}]
  // Predicated region
  $region2: #{tile.23} parent=0 // pred_check
    _
  $region3: #{tile.23} parent=0 // pred_check_branch
    %3 = sbr.rel (0) target = $region5
  $region4: #{tile.23} parent=0 // pred_region
    _
  $region5: #{tile.23} parent=0 // pred_fallthru
    _
  %v4 = vld [vmem:[%s0] ss:$0 sm:$0xff]
  %5 = vst [vmem:[%s1] sm:$0xff] %v4
  %s6 = scalar_lea.vmem %s1, 8
  %7 = vst [vmem:[%s6] sm:$0xff] %v4

// kernel: tile.24
$region0: #{tile.24}
  %s0 = inlined_call_operand.vmem [shape: f32[16,16], index: 0, kind: input, shape index: {}]
  %s1 = inlined_call_operand.vmem [shape: f32[1,256], index: 1, kind: output, shape index: {}]
  $region1: #{tile.24} parent=0
    #allocation0 [shape = 'u8[8192]{0}', space=vmem, size = 0x2000, scoped, tag = 'scoped mem for output reshape']
    %s2 = smov 3
    %v3 = vld [vmem:[%s0] ss:$8 sm:%s2]
    %vm4 = vcmask 130048
    %5 = vst.msk [vmem:[#allocation0] ss:$8 sm:$0x3] %vm4, %v3
    %s6 = scalar_lea.vmem %s0, 7
    %s7 = smov 3
    %v8 = vld [vmem:[%s6] ss:$8 sm:%s7]
    %9 = vrot.lane.b32.xlu0 %v8, 112
    %v10 = vpop.permute.xlu0 %9
    %vm11 = vcmask 1048448
    %12 = vst.msk [vmem:[#allocation0] ss:$8 sm:$0x3] %vm11, %v10
    %s13 = scalar_lea.vmem %s0, 6
    %s14 = smov 3
    %v15 = vld [vmem:[%s13] ss:$8 sm:%s14]
    %16 = vrot.lane.b32.xlu0 %v15, 96
    %v17 = vpop.permute.xlu0 %16
    %vm18 = vcmask 917248
    %19 = vst.msk [vmem:[#allocation0] ss:$8 sm:$0x3] %vm18, %v17
    %s20 = scalar_lea.vmem %s0, 5
    %s21 = smov 3
    %v22 = vld [vmem:[%s20] ss:$8 sm:%s21]
    %23 = vrot.lane.b32.xlu0 %v22, 80
    %v24 = vpop.permute.xlu0 %23
    %vm25 = vcmask 786048
    %26 = vst.msk [vmem:[#allocation0] ss:$8 sm:$0x3] %vm25, %v24
    %s27 = scalar_lea.vmem %s0, 4
    %s28 = smov 3
    %v29 = vld [vmem:[%s27] ss:$8 sm:%s28]
    %30 = vrot.lane.b32.xlu0 %v29, 64
    %v31 = vpop.permute.xlu0 %30
    %vm32 = vcmask 654848
    %33 = vst.msk [vmem:[#allocation0] ss:$8 sm:$0x3] %vm32, %v31
    %s34 = scalar_lea.vmem %s0, 3
    %s35 = smov 3
    %v36 = vld [vmem:[%s34] ss:$8 sm:%s35]
    %37 = vrot.lane.b32.xlu0 %v36, 48
    %v38 = vpop.permute.xlu0 %37
    %vm39 = vcmask 523648
    %40 = vst.msk [vmem:[#allocation0] ss:$8 sm:$0x3] %vm39, %v38
    %s41 = scalar_lea.vmem %s0, 2
    %s42 = smov 3
    %v43 = vld [vmem:[%s41] ss:$8 sm:%s42]
    %44 = vrot.lane.b32.xlu0 %v43, 32
    %v45 = vpop.permute.xlu0 %44
    %vm46 = vcmask 392448
    %47 = vst.msk [vmem:[#allocation0] ss:$8 sm:$0x3] %vm46, %v45
    %s48 = scalar_lea.vmem %s0, 1
    %s49 = smov 3
    %v50 = vld [vmem:[%s48] ss:$8 sm:%s49]
    %51 = vrot.lane.b32.xlu0 %v50, 16
    %v52 = vpop.permute.xlu0 %51
    %vm53 = vcmask 261248
    %54 = vst.msk [vmem:[#allocation0] ss:$8 sm:$0x3] %vm53, %v52
    %s56 = sshllo.u32 0, 1
    %v58 = vld [vmem:[#allocation0] sm:%s56]
    %s59 = sshllo.u32 0, 1
    %60 = vst [vmem:[%s1] sm:%s59] %v58
    %s61 = scalar_lea.vmem [#allocation0], 8
    %v62 = vld [vmem:[%s61] sm:%s56]
    %s63 = sshllo.u32 0, 1
    %s64 = scalar_lea.vmem %s1, 1
    %65 = vst [vmem:[%s64] sm:%s63] %v62

// kernel: tile.38
$region0: #{tile.38}
  #allocation0 [shape = 's32[1]{0}', space=sflag, size = 0x4, scoped, tag = 'scoped memory for tile.38']
  %s0 = inlined_call_operand.vmem [shape: f32[8], index: 0, kind: input, shape index: {}]
  %s1 = inlined_call_operand.vmem [shape: f32[16,8], index: 1, kind: output, shape index: {}]
  // Predicated region
  $region2: #{tile.38} parent=0 // pred_check
    _
  $region3: #{tile.38} parent=0 // pred_check_branch
    %3 = sbr.rel (0) target = $region5
  $region4: #{tile.38} parent=0 // pred_region
    _
  $region5: #{tile.38} parent=0 // pred_fallthru
    _
  %v4 = vld [vmem:[%s0] ss:$0 sm:$0xff]
  %5 = vst [vmem:[%s1] sm:$0xff] %v4
  %s6 = scalar_lea.vmem %s1, 8
  %7 = vst [vmem:[%s6] sm:$0xff] %v4

// kernel: tile.39
$region0: #{tile.39}
  %s0 = inlined_call_operand.vmem [shape: f32[16,8], index: 0, kind: input, shape index: {}]
  %s1 = inlined_call_operand.vmem [shape: f32[1,128], index: 1, kind: output, shape index: {}]
  $region1: #{tile.39} parent=0
    #allocation0 [shape = 'u8[4096]{0}', space=vmem, size = 0x1000, scoped, tag = 'scoped mem for output reshape']
    %v2 = vld [vmem:[%s0] sm:$0x1]
    %vm3 = vcmask 64512
    %4 = vst.msk [vmem:[#allocation0] sm:$0x1] %vm3, %v2
    %s5 = scalar_lea.vmem %s0, 15
    %v6 = vld [vmem:[%s5] sm:$0x1]
    %7 = vrot.lane.b32.xlu0 %v6, 120
    %v8 = vpop.permute.xlu0 %7
    %vm9 = vcmask 1048512
    %10 = vst.msk [vmem:[#allocation0] sm:$0x1] %vm9, %v8
    %s11 = scalar_lea.vmem %s0, 14
    %v12 = vld [vmem:[%s11] sm:$0x1]
    %13 = vrot.lane.b32.xlu0 %v12, 112
    %v14 = vpop.permute.xlu0 %13
    %vm15 = vcmask 982912
    %16 = vst.msk [vmem:[#allocation0] sm:$0x1] %vm15, %v14
    %s17 = scalar_lea.vmem %s0, 13
    %v18 = vld [vmem:[%s17] sm:$0x1]
    %19 = vrot.lane.b32.xlu0 %v18, 104
    %v20 = vpop.permute.xlu0 %19
    %vm21 = vcmask 917312
    %22 = vst.msk [vmem:[#allocation0] sm:$0x1] %vm21, %v20
    %s23 = scalar_lea.vmem %s0, 12
    %v24 = vld [vmem:[%s23] sm:$0x1]
    %25 = vrot.lane.b32.xlu0 %v24, 96
    %v26 = vpop.permute.xlu0 %25
    %vm27 = vcmask 851712
    %28 = vst.msk [vmem:[#allocation0] sm:$0x1] %vm27, %v26
    %s29 = scalar_lea.vmem %s0, 11
    %v30 = vld [vmem:[%s29] sm:$0x1]
    %31 = vrot.lane.b32.xlu0 %v30, 88
    %v32 = vpop.permute.xlu0 %31
    %vm33 = vcmask 786112
    %34 = vst.msk [vmem:[#allocation0] sm:$0x1] %vm33, %v32
    %s35 = scalar_lea.vmem %s0, 10
    %v36 = vld [vmem:[%s35] sm:$0x1]
    %37 = vrot.lane.b32.xlu0 %v36, 80
    %v38 = vpop.permute.xlu0 %37
    %vm39 = vcmask 720512
    %40 = vst.msk [vmem:[#allocation0] sm:$0x1] %vm39, %v38
    %s41 = scalar_lea.vmem %s0, 9
    %v42 = vld [vmem:[%s41] sm:$0x1]
    %43 = vrot.lane.b32.xlu0 %v42, 72
    %v44 = vpop.permute.xlu0 %43
    %vm45 = vcmask 654912
    %46 = vst.msk [vmem:[#allocation0] sm:$0x1] %vm45, %v44
    %s47 = scalar_lea.vmem %s0, 8
    %v48 = vld [vmem:[%s47] sm:$0x1]
    %49 = vrot.lane.b32.xlu0 %v48, 64
    %v50 = vpop.permute.xlu0 %49
    %vm51 = vcmask 589312
    %52 = vst.msk [vmem:[#allocation0] sm:$0x1] %vm51, %v50
    %s53 = scalar_lea.vmem %s0, 7
    %v54 = vld [vmem:[%s53] sm:$0x1]
    %55 = vrot.lane.b32.xlu0 %v54, 56
    %v56 = vpop.permute.xlu0 %55
    %vm57 = vcmask 523712
    %58 = vst.msk [vmem:[#allocation0] sm:$0x1] %vm57, %v56
    %s59 = scalar_lea.vmem %s0, 6
    %v60 = vld [vmem:[%s59] sm:$0x1]
    %61 = vrot.lane.b32.xlu0 %v60, 48
    %v62 = vpop.permute.xlu0 %61
    %vm63 = vcmask 458112
    %64 = vst.msk [vmem:[#allocation0] sm:$0x1] %vm63, %v62
    %s65 = scalar_lea.vmem %s0, 5
    %v66 = vld [vmem:[%s65] sm:$0x1]
    %67 = vrot.lane.b32.xlu0 %v66, 40
    %v68 = vpop.permute.xlu0 %67
    %vm69 = vcmask 392512
    %70 = vst.msk [vmem:[#allocation0] sm:$0x1] %vm69, %v68
    %s71 = scalar_lea.vmem %s0, 4
    %v72 = vld [vmem:[%s71] sm:$0x1]
    %73 = vrot.lane.b32.xlu0 %v72, 32
    %v74 = vpop.permute.xlu0 %73
    %vm75 = vcmask 326912
    %76 = vst.msk [vmem:[#allocation0] sm:$0x1] %vm75, %v74
    %s77 = scalar_lea.vmem %s0, 3
    %v78 = vld [vmem:[%s77] sm:$0x1]
    %79 = vrot.lane.b32.xlu0 %v78, 24
    %v80 = vpop.permute.xlu0 %79
    %vm81 = vcmask 261312
    %82 = vst.msk [vmem:[#allocation0] sm:$0x1] %vm81, %v80
    %s83 = scalar_lea.vmem %s0, 2
    %v84 = vld [vmem:[%s83] sm:$0x1]
    %85 = vrot.lane.b32.xlu0 %v84, 16
    %v86 = vpop.permute.xlu0 %85
    %vm87 = vcmask 195712
    %88 = vst.msk [vmem:[#allocation0] sm:$0x1] %vm87, %v86
    %s89 = scalar_lea.vmem %s0, 1
    %v90 = vld [vmem:[%s89] sm:$0x1]
    %91 = vrot.lane.b32.xlu0 %v90, 8
    %v92 = vpop.permute.xlu0 %91
    %vm93 = vcmask 130112
    %94 = vst.msk [vmem:[#allocation0] sm:$0x1] %vm93, %v92
    %s96 = sshllo.u32 0, 1
    %v98 = vld [vmem:[#allocation0] sm:%s96]
    %s99 = sshllo.u32 0, 1
    %100 = vst [vmem:[%s1] sm:%s99] %v98

// kernel: pda_forward.1
$region0: #{pda_forward.1}
  #allocation0 [shape = 'u32[]', space=smem, size = 0x4, offset = 0x4, fixed_abs, tag = 'smem constant byte address 0x4 - core index']
  #allocation1 [shape = 'u32[144,128]{1,0:T(1,128)}', space=vmem, size = 0x12000, scoped, tag = 'internal scratch']
  #allocation2 [shape = 'f32[18,256]{1,0:T(8,128)}', space=vmem, size = 0x6000, scoped, tag = 'scratch operand']
  #allocation3 [shape = 'f32[22,32]{1,0:T(8,128)}', space=vmem, size = 0x3000, scoped, tag = 'scratch operand']
  %s0 = inlined_call_operand.vmem [shape: f32[2,16,256], index: 0, kind: input, shape index: {}]
  %s1 = inlined_call_operand.vmem [shape: f32[2,16,128], index: 1, kind: input, shape index: {}]
  %s2 = inlined_call_operand.vmem [shape: f32[2,16,16,8], index: 2, kind: input, shape index: {}]
  %s3 = inlined_call_operand.vmem [shape: bf16[256,256], index: 3, kind: input, shape index: {}]
  %s4 = inlined_call_operand.vmem [shape: f32[1,256], index: 4, kind: input, shape index: {}]
  %s5 = inlined_call_operand.vmem [shape: bf16[3,256,128], index: 5, kind: input, shape index: {}]
  %s6 = inlined_call_operand.vmem [shape: bf16[7,32,128], index: 6, kind: input, shape index: {}]
  %s7 = inlined_call_operand.vmem [shape: bf16[128,16], index: 7, kind: input, shape index: {}]
  %s8 = inlined_call_operand.vmem [shape: f32[1,16], index: 8, kind: input, shape index: {}]
  %s9 = inlined_call_operand.vmem [shape: bf16[16,128], index: 9, kind: input, shape index: {}]
  %s10 = inlined_call_operand.vmem [shape: f32[1,128], index: 10, kind: input, shape index: {}]
  %s11 = inlined_call_operand.vmem [shape: bf16[128,128], index: 11, kind: input, shape index: {}]
  %s12 = inlined_call_operand.vmem [shape: bf16[128,128], index: 12, kind: input, shape index: {}]
  %s13 = inlined_call_operand.vmem [shape: f32[2,16,128], index: 13, kind: output, shape index: {}]
  %s14 = sld [smem:[#allocation0]]
  $region85: #{pda_forward.1} parent=0
    _
  %s16 = ssub.s32 1, %s14
  %s17 = scalar_select 0, %s16, %s14
  loop: start=0, step=1, limit=4
  $region2: #{pda_forward.1} parent=0 // loop_pre_header
    _
  $region3: #{pda_forward.1} parent=0 // loop_header
    %s19 = sphi 0, %s23
    %p20 = scmp.ge.s32.totalorder %s19, 4
    %s29 = sphi 0, %s31
    %s32 = sphi 0, %s29
    %s33 = sphi 0, %s32
    %s49 = sphi 0, %s33
    %s55 = sphi 0, %s57
    %s58 = sphi 0, %s55
    %s59 = sphi 0, %s58
    %s75 = sphi 0, %s59
    %s81 = sphi 0, %s83
    %s84 = sphi 0, %s81
    %s85 = sphi 0, %s84
    %s101 = sphi 0, %s85
    %s105 = sphi 0, %s105
    %s107 = sphi 0, %s105
    %s108 = sphi 0, %s107
    %s122 = sphi 0, %s108
    %s126 = sphi 0, %s126
    %s128 = sphi 0, %s126
    %s129 = sphi 0, %s128
    %s143 = sphi 0, %s129
    %s147 = sphi 0, %s147
    %s149 = sphi 0, %s147
    %s150 = sphi 0, %s149
    %s164 = sphi 0, %s150
    %s168 = sphi 0, %s168
    %s170 = sphi 0, %s168
    %s171 = sphi 0, %s170
    %s185 = sphi 0, %s171
    %s189 = sphi 0, %s189
    %s191 = sphi 0, %s189
    %s192 = sphi 0, %s191
    %s206 = sphi 0, %s192
    %s210 = sphi 0, %s210
    %s212 = sphi 0, %s210
    %s213 = sphi 0, %s212
    %s227 = sphi 0, %s213
    %s231 = sphi 0, %s231
    %s233 = sphi 0, %s231
    %s234 = sphi 0, %s233
    %s248 = sphi 0, %s234
    %s252 = sphi 0, %s252
    %s254 = sphi 0, %s252
    %s255 = sphi 0, %s254
    %s269 = sphi 0, %s255
    %s273 = sphi 0, %s273
    %s275 = sphi 0, %s273
    %s276 = sphi 0, %s275
    %s290 = sphi 0, %s276
    %s294 = sphi 0, %s294
    %s296 = sphi 0, %s294
    %s297 = sphi 0, %s296
    %s311 = sphi 0, %s297
    %s317 = sphi 0, %s319
    %s320 = sphi 0, %s317
    %s321 = sphi 0, %s320
    %s337 = sphi 0, %s321
  $region4: #{pda_forward.1} parent=0 // loop_header_branch
    %22 = sbr.rel (%p20) target = $region8
  $region5: #{pda_forward.1} parent=0 // loop_body
    %s24 = ssub.s32 %s19, 1
    %s25 = ssub.s32 %s19, 2
    %s26 = sadd.s32 %s19, 1
    %s27 = ssub.s32 %s19, %s26
    %p28 = scmp.eq.s32.totalorder %s27, 0
    %s30 = sadd.s32 %s29, 1
    %s31 = scalar_select %p28, %s29, %s30
    %p34 = pneg %p28
    %p35 = scmp.eq.s32.totalorder %s19, 1
    %p36 = por %p34, %p35
    %p37 = scmp.ne.s32.totalorder %s29, %s32
    %p38 = scmp.eq.s32.totalorder %s19, 0
    %p39 = por %p37, %p38
    %p40 = scmp.ne.s32.totalorder %s29, %s32
    %p41 = scmp.eq.s32.totalorder %s24, 1
    %p42 = por %p40, %p41
    %p43 = scmp.ne.s32.totalorder %s32, %s33
    %p44 = scmp.eq.s32.totalorder %s24, 0
    %p45 = por %p43, %p44
    %p46 = scmp.ne.s32.totalorder %s32, %s33
    %p47 = scmp.eq.s32.totalorder %s25, 1
    %p48 = por %p46, %p47
    %p50 = scmp.ne.s32.totalorder %s33, %s49
    %p51 = scmp.eq.s32.totalorder %s25, 0
    %p52 = por %p50, %p51
    %s53 = ssub.s32 %s19, %s26
    %p54 = scmp.eq.s32.totalorder %s53, 0
    %s56 = sadd.s32 %s55, 1
    %s57 = scalar_select %p54, %s55, %s56
    %p60 = pneg %p54
    %p61 = scmp.eq.s32.totalorder %s19, 1
    %p62 = por %p60, %p61
    %p63 = scmp.ne.s32.totalorder %s55, %s58
    %p64 = scmp.eq.s32.totalorder %s19, 0
    %p65 = por %p63, %p64
    %p66 = scmp.ne.s32.totalorder %s55, %s58
    %p67 = scmp.eq.s32.totalorder %s24, 1
    %p68 = por %p66, %p67
    %p69 = scmp.ne.s32.totalorder %s58, %s59
    %p70 = scmp.eq.s32.totalorder %s24, 0
    %p71 = por %p69, %p70
    %p72 = scmp.ne.s32.totalorder %s58, %s59
    %p73 = scmp.eq.s32.totalorder %s25, 1
    %p74 = por %p72, %p73
    %p76 = scmp.ne.s32.totalorder %s59, %s75
    %p77 = scmp.eq.s32.totalorder %s25, 0
    %p78 = por %p76, %p77
    %s79 = ssub.s32 %s19, %s26
    %p80 = scmp.eq.s32.totalorder %s79, 0
    %s82 = sadd.s32 %s81, 1
    %s83 = scalar_select %p80, %s81, %s82
    %p86 = pneg %p80
    %p87 = scmp.eq.s32.totalorder %s19, 1
    %p88 = por %p86, %p87
    %p89 = scmp.ne.s32.totalorder %s81, %s84
    %p90 = scmp.eq.s32.totalorder %s19, 0
    %p91 = por %p89, %p90
    %p92 = scmp.ne.s32.totalorder %s81, %s84
    %p93 = scmp.eq.s32.totalorder %s24, 1
    %p94 = por %p92, %p93
    %p95 = scmp.ne.s32.totalorder %s84, %s85
    %p96 = scmp.eq.s32.totalorder %s24, 0
    %p97 = por %p95, %p96
    %p98 = scmp.ne.s32.totalorder %s84, %s85
    %p99 = scmp.eq.s32.totalorder %s25, 1
    %p100 = por %p98, %p99
    %p102 = scmp.ne.s32.totalorder %s85, %s101
    %p103 = scmp.eq.s32.totalorder %s25, 0
    %p104 = por %p102, %p103
    %s106 = sadd.s32 %s105, 1
    %p109 = scmp.eq.s32.totalorder %s19, 1
    %p110 = scmp.ne.s32.totalorder %s105, %s107
    %p111 = scmp.eq.s32.totalorder %s19, 0
    %p112 = por %p110, %p111
    %p113 = scmp.ne.s32.totalorder %s105, %s107
    %p114 = scmp.eq.s32.totalorder %s24, 1
    %p115 = por %p113, %p114
    %p116 = scmp.ne.s32.totalorder %s107, %s108
    %p117 = scmp.eq.s32.totalorder %s24, 0
    %p118 = por %p116, %p117
    %p119 = scmp.ne.s32.totalorder %s107, %s108
    %p120 = scmp.eq.s32.totalorder %s25, 1
    %p121 = por %p119, %p120
    %p123 = scmp.ne.s32.totalorder %s108, %s122
    %p124 = scmp.eq.s32.totalorder %s25, 0
    %p125 = por %p123, %p124
    %s127 = sadd.s32 %s126, 1
    %p130 = scmp.eq.s32.totalorder %s19, 1
    %p131 = scmp.ne.s32.totalorder %s126, %s128
    %p132 = scmp.eq.s32.totalorder %s19, 0
    %p133 = por %p131, %p132
    %p134 = scmp.ne.s32.totalorder %s126, %s128
    %p135 = scmp.eq.s32.totalorder %s24, 1
    %p136 = por %p134, %p135
    %p137 = scmp.ne.s32.totalorder %s128, %s129
    %p138 = scmp.eq.s32.totalorder %s24, 0
    %p139 = por %p137, %p138
    %p140 = scmp.ne.s32.totalorder %s128, %s129
    %p141 = scmp.eq.s32.totalorder %s25, 1
    %p142 = por %p140, %p141
    %p144 = scmp.ne.s32.totalorder %s129, %s143
    %p145 = scmp.eq.s32.totalorder %s25, 0
    %p146 = por %p144, %p145
    %s148 = sadd.s32 %s147, 1
    %p151 = scmp.eq.s32.totalorder %s19, 1
    %p152 = scmp.ne.s32.totalorder %s147, %s149
    %p153 = scmp.eq.s32.totalorder %s19, 0
    %p154 = por %p152, %p153
    %p155 = scmp.ne.s32.totalorder %s147, %s149
    %p156 = scmp.eq.s32.totalorder %s24, 1
    %p157 = por %p155, %p156
    %p158 = scmp.ne.s32.totalorder %s149, %s150
    %p159 = scmp.eq.s32.totalorder %s24, 0
    %p160 = por %p158, %p159
    %p161 = scmp.ne.s32.totalorder %s149, %s150
    %p162 = scmp.eq.s32.totalorder %s25, 1
    %p163 = por %p161, %p162
    %p165 = scmp.ne.s32.totalorder %s150, %s164
    %p166 = scmp.eq.s32.totalorder %s25, 0
    %p167 = por %p165, %p166
    %s169 = sadd.s32 %s168, 1
    %p172 = scmp.eq.s32.totalorder %s19, 1
    %p173 = scmp.ne.s32.totalorder %s168, %s170
    %p174 = scmp.eq.s32.totalorder %s19, 0
    %p175 = por %p173, %p174
    %p176 = scmp.ne.s32.totalorder %s168, %s170
    %p177 = scmp.eq.s32.totalorder %s24, 1
    %p178 = por %p176, %p177
    %p179 = scmp.ne.s32.totalorder %s170, %s171
    %p180 = scmp.eq.s32.totalorder %s24, 0
    %p181 = por %p179, %p180
    %p182 = scmp.ne.s32.totalorder %s170, %s171
    %p183 = scmp.eq.s32.totalorder %s25, 1
    %p184 = por %p182, %p183
    %p186 = scmp.ne.s32.totalorder %s171, %s185
    %p187 = scmp.eq.s32.totalorder %s25, 0
    %p188 = por %p186, %p187
    %s190 = sadd.s32 %s189, 1
    %p193 = scmp.eq.s32.totalorder %s19, 1
    %p194 = scmp.ne.s32.totalorder %s189, %s191
    %p195 = scmp.eq.s32.totalorder %s19, 0
    %p196 = por %p194, %p195
    %p197 = scmp.ne.s32.totalorder %s189, %s191
    %p198 = scmp.eq.s32.totalorder %s24, 1
    %p199 = por %p197, %p198
    %p200 = scmp.ne.s32.totalorder %s191, %s192
    %p201 = scmp.eq.s32.totalorder %s24, 0
    %p202 = por %p200, %p201
    %p203 = scmp.ne.s32.totalorder %s191, %s192
    %p204 = scmp.eq.s32.totalorder %s25, 1
    %p205 = por %p203, %p204
    %p207 = scmp.ne.s32.totalorder %s192, %s206
    %p208 = scmp.eq.s32.totalorder %s25, 0
    %p209 = por %p207, %p208
    %s211 = sadd.s32 %s210, 1
    %p214 = scmp.eq.s32.totalorder %s19, 1
    %p215 = scmp.ne.s32.totalorder %s210, %s212
    %p216 = scmp.eq.s32.totalorder %s19, 0
    %p217 = por %p215, %p216
    %p218 = scmp.ne.s32.totalorder %s210, %s212
    %p219 = scmp.eq.s32.totalorder %s24, 1
    %p220 = por %p218, %p219
    %p221 = scmp.ne.s32.totalorder %s212, %s213
    %p222 = scmp.eq.s32.totalorder %s24, 0
    %p223 = por %p221, %p222
    %p224 = scmp.ne.s32.totalorder %s212, %s213
    %p225 = scmp.eq.s32.totalorder %s25, 1
    %p226 = por %p224, %p225
    %p228 = scmp.ne.s32.totalorder %s213, %s227
    %p229 = scmp.eq.s32.totalorder %s25, 0
    %p230 = por %p228, %p229
    %s232 = sadd.s32 %s231, 1
    %p235 = scmp.eq.s32.totalorder %s19, 1
    %p236 = scmp.ne.s32.totalorder %s231, %s233
    %p237 = scmp.eq.s32.totalorder %s19, 0
    %p238 = por %p236, %p237
    %p239 = scmp.ne.s32.totalorder %s231, %s233
    %p240 = scmp.eq.s32.totalorder %s24, 1
    %p241 = por %p239, %p240
    %p242 = scmp.ne.s32.totalorder %s233, %s234
    %p243 = scmp.eq.s32.totalorder %s24, 0
    %p244 = por %p242, %p243
    %p245 = scmp.ne.s32.totalorder %s233, %s234
    %p246 = scmp.eq.s32.totalorder %s25, 1
    %p247 = por %p245, %p246
    %p249 = scmp.ne.s32.totalorder %s234, %s248
    %p250 = scmp.eq.s32.totalorder %s25, 0
    %p251 = por %p249, %p250
    %s253 = sadd.s32 %s252, 1
    %p256 = scmp.eq.s32.totalorder %s19, 1
    %p257 = scmp.ne.s32.totalorder %s252, %s254
    %p258 = scmp.eq.s32.totalorder %s19, 0
    %p259 = por %p257, %p258
    %p260 = scmp.ne.s32.totalorder %s252, %s254
    %p261 = scmp.eq.s32.totalorder %s24, 1
    %p262 = por %p260, %p261
    %p263 = scmp.ne.s32.totalorder %s254, %s255
    %p264 = scmp.eq.s32.totalorder %s24, 0
    %p265 = por %p263, %p264
    %p266 = scmp.ne.s32.totalorder %s254, %s255
    %p267 = scmp.eq.s32.totalorder %s25, 1
    %p268 = por %p266, %p267
    %p270 = scmp.ne.s32.totalorder %s255, %s269
    %p271 = scmp.eq.s32.totalorder %s25, 0
    %p272 = por %p270, %p271
    %s274 = sadd.s32 %s273, 1
    %p277 = scmp.eq.s32.totalorder %s19, 1
    %p278 = scmp.ne.s32.totalorder %s273, %s275
    %p279 = scmp.eq.s32.totalorder %s19, 0
    %p280 = por %p278, %p279
    %p281 = scmp.ne.s32.totalorder %s273, %s275
    %p282 = scmp.eq.s32.totalorder %s24, 1
    %p283 = por %p281, %p282
    %p284 = scmp.ne.s32.totalorder %s275, %s276
    %p285 = scmp.eq.s32.totalorder %s24, 0
    %p286 = por %p284, %p285
    %p287 = scmp.ne.s32.totalorder %s275, %s276
    %p288 = scmp.eq.s32.totalorder %s25, 1
    %p289 = por %p287, %p288
    %p291 = scmp.ne.s32.totalorder %s276, %s290
    %p292 = scmp.eq.s32.totalorder %s25, 0
    %p293 = por %p291, %p292
    %s295 = sadd.s32 %s294, 1
    %p298 = scmp.eq.s32.totalorder %s19, 1
    %p299 = scmp.ne.s32.totalorder %s294, %s296
    %p300 = scmp.eq.s32.totalorder %s19, 0
    %p301 = por %p299, %p300
    %p302 = scmp.ne.s32.totalorder %s294, %s296
    %p303 = scmp.eq.s32.totalorder %s24, 1
    %p304 = por %p302, %p303
    %p305 = scmp.ne.s32.totalorder %s296, %s297
    %p306 = scmp.eq.s32.totalorder %s24, 0
    %p307 = por %p305, %p306
    %p308 = scmp.ne.s32.totalorder %s296, %s297
    %p309 = scmp.eq.s32.totalorder %s25, 1
    %p310 = por %p308, %p309
    %p312 = scmp.ne.s32.totalorder %s297, %s311
    %p313 = scmp.eq.s32.totalorder %s25, 0
    %p314 = por %p312, %p313
    %s315 = ssub.s32 %s19, %s26
    %p316 = scmp.eq.s32.totalorder %s315, 0
    %s318 = sadd.s32 %s317, 1
    %s319 = scalar_select %p316, %s317, %s318
    %p322 = pneg %p316
    %p323 = scmp.eq.s32.totalorder %s19, 1
    %p324 = por %p322, %p323
    %p325 = scmp.ne.s32.totalorder %s317, %s320
    %p326 = scmp.eq.s32.totalorder %s19, 0
    %p327 = por %p325, %p326
    %p328 = scmp.ne.s32.totalorder %s317, %s320
    %p329 = scmp.eq.s32.totalorder %s24, 1
    %p330 = por %p328, %p329
    %p331 = scmp.ne.s32.totalorder %s320, %s321
    %p332 = scmp.eq.s32.totalorder %s24, 0
    %p333 = por %p331, %p332
    %p334 = scmp.ne.s32.totalorder %s320, %s321
    %p335 = scmp.eq.s32.totalorder %s25, 1
    %p336 = por %p334, %p335
    %p338 = scmp.ne.s32.totalorder %s321, %s337
    %p339 = scmp.eq.s32.totalorder %s25, 0
    %p340 = por %p338, %p339
    %p341 = scmp.le.s32.totalorder 1, %s19
    %p342 = scmp.lt.s32.totalorder %s19, 3
    %p343 = pnand %p341, %p342
    %p344 = pneg %p343
    // Predicated region
    $region9: #{pda_forward.1} parent=5 // pred_check
      _
    $region10: #{pda_forward.1} parent=5 // pred_check_branch
      %346 = sbr.rel (%p343) target = $region12
    $region11: #{pda_forward.1} parent=5 // pred_region
      %s347 = ssub.s32 %s19, 1
      // Predicated region
      $region13: #{pda_forward.1} parent=11 // pred_check
        %p348 = pneg %p118
      $region14: #{pda_forward.1} parent=11 // pred_check_branch
        %350 = sbr.rel (%p348) target = $region16
      $region15: #{pda_forward.1} parent=11 // pred_region
        _
      $region16: #{pda_forward.1} parent=11 // pred_fallthru
        _
      // Predicated region
      $region17: #{pda_forward.1} parent=11 // pred_check
        %p351 = pneg %p139
      $region18: #{pda_forward.1} parent=11 // pred_check_branch
        %353 = sbr.rel (%p351) target = $region20
      $region19: #{pda_forward.1} parent=11 // pred_region
        _
      $region20: #{pda_forward.1} parent=11 // pred_fallthru
        _
      // Predicated region
      $region21: #{pda_forward.1} parent=11 // pred_check
        %p354 = pneg %p160
      $region22: #{pda_forward.1} parent=11 // pred_check_branch
        %356 = sbr.rel (%p354) target = $region24
      $region23: #{pda_forward.1} parent=11 // pred_region
        _
      $region24: #{pda_forward.1} parent=11 // pred_fallthru
        _
      // Predicated region
      $region25: #{pda_forward.1} parent=11 // pred_check
        %p357 = pneg %p181
      $region26: #{pda_forward.1} parent=11 // pred_check_branch
        %359 = sbr.rel (%p357) target = $region28
      $region27: #{pda_forward.1} parent=11 // pred_region
        _
      $region28: #{pda_forward.1} parent=11 // pred_fallthru
        _
      // Predicated region
      $region29: #{pda_forward.1} parent=11 // pred_check
        %p360 = pneg %p202
      $region30: #{pda_forward.1} parent=11 // pred_check_branch
        %362 = sbr.rel (%p360) target = $region32
      $region31: #{pda_forward.1} parent=11 // pred_region
        _
      $region32: #{pda_forward.1} parent=11 // pred_fallthru
        _
      // Predicated region
      $region33: #{pda_forward.1} parent=11 // pred_check
        %p363 = pneg %p223
      $region34: #{pda_forward.1} parent=11 // pred_check_branch
        %365 = sbr.rel (%p363) target = $region36
      $region35: #{pda_forward.1} parent=11 // pred_region
        _
      $region36: #{pda_forward.1} parent=11 // pred_fallthru
        _
      // Predicated region
      $region37: #{pda_forward.1} parent=11 // pred_check
        %p366 = pneg %p244
      $region38: #{pda_forward.1} parent=11 // pred_check_branch
        %368 = sbr.rel (%p366) target = $region40
      $region39: #{pda_forward.1} parent=11 // pred_region
        _
      $region40: #{pda_forward.1} parent=11 // pred_fallthru
        _
      // Predicated region
      $region41: #{pda_forward.1} parent=11 // pred_check
        %p369 = pneg %p265
      $region42: #{pda_forward.1} parent=11 // pred_check_branch
        %371 = sbr.rel (%p369) target = $region44
      $region43: #{pda_forward.1} parent=11 // pred_region
        _
      $region44: #{pda_forward.1} parent=11 // pred_fallthru
        _
      // Predicated region
      $region45: #{pda_forward.1} parent=11 // pred_check
        %p372 = pneg %p286
      $region46: #{pda_forward.1} parent=11 // pred_check_branch
        %374 = sbr.rel (%p372) target = $region48
      $region47: #{pda_forward.1} parent=11 // pred_region
        _
      $region48: #{pda_forward.1} parent=11 // pred_fallthru
        _
      // Predicated region
      $region49: #{pda_forward.1} parent=11 // pred_check
        %p375 = pneg %p307
      $region50: #{pda_forward.1} parent=11 // pred_check_branch
        %377 = sbr.rel (%p375) target = $region52
      $region51: #{pda_forward.1} parent=11 // pred_region
        _
      $region52: #{pda_forward.1} parent=11 // pred_fallthru
        _
    $region12: #{pda_forward.1} parent=5 // pred_fallthru
      _
    %p378 = scmp.lt.s32.totalorder %s19, 2
    // Predicated region
    $region53: #{pda_forward.1} parent=5 // pred_check
      %p379 = pneg %p378
    $region54: #{pda_forward.1} parent=5 // pred_check_branch
      %381 = sbr.rel (%p379) target = $region56
    $region55: #{pda_forward.1} parent=5 // pred_region
      // Predicated region
      $region57: #{pda_forward.1} parent=55 // pred_check
        %p382 = pneg %p39
      $region58: #{pda_forward.1} parent=55 // pred_check_branch
        %384 = sbr.rel (%p382) target = $region60
      $region59: #{pda_forward.1} parent=55 // pred_region
        %p385 = scmp.lt.s32.totalorder %s19, 1
        %s386 = scalar_select %p385, %s19, 1
        %s387 = smul.addr %s386, 4
        %s388 = smul.addr %s387, 8
        %s389 = scalar_lea.vmem %s0, %s388
      $region60: #{pda_forward.1} parent=55 // pred_fallthru
        _
      // Predicated region
      $region61: #{pda_forward.1} parent=55 // pred_check
        %p390 = pneg %p65
      $region62: #{pda_forward.1} parent=55 // pred_check_branch
        %392 = sbr.rel (%p390) target = $region64
      $region63: #{pda_forward.1} parent=55 // pred_region
        %p393 = scmp.lt.s32.totalorder %s19, 1
        %s394 = scalar_select %p393, %s19, 1
        %s395 = smul.addr %s394, 2
        %s396 = smul.addr %s395, 8
        %s397 = scalar_lea.vmem %s1, %s396
      $region64: #{pda_forward.1} parent=55 // pred_fallthru
        _
      // Predicated region
      $region65: #{pda_forward.1} parent=55 // pred_check
        %p398 = pneg %p91
      $region66: #{pda_forward.1} parent=55 // pred_check_branch
        %400 = sbr.rel (%p398) target = $region68
      $region67: #{pda_forward.1} parent=55 // pred_region
        %p401 = scmp.lt.s32.totalorder %s19, 1
        %s402 = scalar_select %p401, %s19, 1
        %s403 = smul.addr %s402, 32
        %s404 = smul.addr %s403, 8
        %s405 = scalar_lea.vmem %s2, %s404
      $region68: #{pda_forward.1} parent=55 // pred_fallthru
        _
    $region56: #{pda_forward.1} parent=5 // pred_fallthru
      _
    %p406 = scmp.le.s32.totalorder 1, %s19
    %p407 = scmp.lt.s32.totalorder %s19, 3
    %p408 = pnand %p406, %p407
    %p409 = pneg %p408
    // Predicated region
    $region69: #{pda_forward.1} parent=5 // pred_check
      _
    $region70: #{pda_forward.1} parent=5 // pred_check_branch
      %411 = sbr.rel (%p408) target = $region72
    $region71: #{pda_forward.1} parent=5 // pred_region
      %s412 = ssub.s32 %s19, 1
      %p413 = scmp.lt.s32.totalorder %s24, 1
      %s414 = scalar_select %p413, %s24, 1
      %s415 = smul.addr %s414, 4
      %s416 = smul.addr %s415, 8
      %s417 = scalar_lea.vmem %s0, %s416
      %p418 = pneg %p45
      %p419 = pneg %p42
      %p420 = scmp.lt.s32.totalorder %s24, 1
      %s421 = scalar_select %p420, %s24, 1
      %s422 = smul.addr %s421, 2
      %s423 = smul.addr %s422, 8
      %s424 = scalar_lea.vmem %s1, %s423
      %p425 = pneg %p71
      %p426 = pneg %p68
      %p427 = scmp.lt.s32.totalorder %s24, 1
      %s428 = scalar_select %p427, %s24, 1
      %s429 = smul.addr %s428, 32
      %s430 = smul.addr %s429, 8
      %s431 = scalar_lea.vmem %s2, %s430
      %p432 = pneg %p97
      %p433 = pneg %p94
      %p434 = pneg %p118
      %p435 = pneg %p115
      %p436 = pneg %p139
      %p437 = pneg %p136
      %p438 = pneg %p160
      %p439 = pneg %p157
      %p440 = pneg %p181
      %p441 = pneg %p178
      %p442 = pneg %p202
      %p443 = pneg %p199
      %p444 = pneg %p223
      %p445 = pneg %p220
      %p446 = pneg %p244
      %p447 = pneg %p241
      %p448 = pneg %p265
      %p449 = pneg %p262
      %p450 = pneg %p286
      %p451 = pneg %p283
      %p452 = pneg %p307
      %p453 = pneg %p304
      %p454 = pneg %p333
      %p455 = pneg %p330
      %p456 = scmp.lt.s32.totalorder %s24, 1
      %s457 = scalar_select %p456, %s24, 1
      %s458 = smul.addr %s457, 2
      %s459 = smul.addr %s458, 8
      %s460 = scalar_lea.vmem %s13, %s459
      %p461 = scmp.lt.s32.totalorder %s24, 1
      %s462 = scalar_select %p461, %s24, 1
      %s463 = smul.addr %s462, 4
      %s464 = smul.addr %s463, 8
      %s465 = scalar_lea.vmem %s0, %s464
      %p466 = scmp.lt.s32.totalorder %s24, 1
      %s467 = scalar_select %p466, %s24, 1
      %s468 = smul.addr %s467, 2
      %s469 = smul.addr %s468, 8
      %s470 = scalar_lea.vmem %s1, %s469
      %p471 = scmp.lt.s32.totalorder %s24, 1
      %s472 = scalar_select %p471, %s24, 1
      %s473 = smul.addr %s472, 32
      %s474 = smul.addr %s473, 8
      %s475 = scalar_lea.vmem %s2, %s474
      %p476 = scmp.lt.s32.totalorder %s24, 1
      %s477 = scalar_select %p476, %s24, 1
      %s478 = smul.addr %s477, 2
      %s479 = smul.addr %s478, 8
      %s480 = scalar_lea.vmem %s13, %s479
      %v482 = vld [vmem:[%s465] sm:$0xff]
      %v483 = vld [vmem:[%s465 + $0x8] sm:$0xff]
      %v484 = vld [vmem:[%s465 + $0x10] sm:$0xff]
      %v485 = vld [vmem:[%s465 + $0x18] sm:$0xff]
      %v486 = vpack.c.bf16 %v484, %v482
      %v487 = vpack.c.bf16 %v485, %v483
      %v488 = vld [vmem:[%s3] sm:$0xff]
      %v489 = vld [vmem:[%s3 + $0x8] sm:$0xff]
      %v490 = vld [vmem:[%s3 + $0x10] sm:$0xff]
      %v491 = vld [vmem:[%s3 + $0x18] sm:$0xff]
      %v492 = vld [vmem:[%s3 + $0x20] sm:$0xff]
      %v493 = vld [vmem:[%s3 + $0x28] sm:$0xff]
      %v494 = vld [vmem:[%s3 + $0x30] sm:$0xff]
      %v495 = vld [vmem:[%s3 + $0x38] sm:$0xff]
      %v496 = vld [vmem:[%s3 + $0x40] sm:$0xff]
      %v497 = vld [vmem:[%s3 + $0x48] sm:$0xff]
      %v498 = vld [vmem:[%s3 + $0x50] sm:$0xff]
      %v499 = vld [vmem:[%s3 + $0x58] sm:$0xff]
      %v500 = vld [vmem:[%s3 + $0x60] sm:$0xff]
      %v501 = vld [vmem:[%s3 + $0x68] sm:$0xff]
      %v502 = vld [vmem:[%s3 + $0x70] sm:$0xff]
      %v503 = vld [vmem:[%s3 + $0x78] sm:$0xff]
      %v504 = vld [vmem:[%s3 + $0x80] sm:$0xff]
      %v505 = vld [vmem:[%s3 + $0x88] sm:$0xff]
      %v506 = vld [vmem:[%s3 + $0x90] sm:$0xff]
      %v507 = vld [vmem:[%s3 + $0x98] sm:$0xff]
      %v508 = vld [vmem:[%s3 + $0xa0] sm:$0xff]
      %v509 = vld [vmem:[%s3 + $0xa8] sm:$0xff]
      %v510 = vld [vmem:[%s3 + $0xb0] sm:$0xff]
      %v511 = vld [vmem:[%s3 + $0xb8] sm:$0xff]
      %v512 = vld [vmem:[%s3 + $0xc0] sm:$0xff]
      %v513 = vld [vmem:[%s3 + $0xc8] sm:$0xff]
      %v514 = vld [vmem:[%s3 + $0xd0] sm:$0xff]
      %v515 = vld [vmem:[%s3 + $0xd8] sm:$0xff]
      %v516 = vld [vmem:[%s3 + $0xe0] sm:$0xff]
      %v517 = vld [vmem:[%s3 + $0xe8] sm:$0xff]
      %v518 = vld [vmem:[%s3 + $0xf0] sm:$0xff]
      %v519 = vld [vmem:[%s3 + $0xf8] sm:$0xff]
      %v520 = vld [vmem:[%s4] sm:$0x3]
      %v522 = vlaneseq
      %v523 = vshrl.u32 %v522, 7
      %v524 = vsub.s32 0, %v523
      %v525 = vrot.slane %v520, %v524
      %v526 = vlaneseq
      %v527 = vshrl.u32 %v526, 7
      %v528 = vsub.s32 1, %v527
      %v529 = vrot.slane %v520, %v528
      %v564 = vunpack.c.l.b16 %v488
      %v565 = vunpack.c.h.b16 %v488
      %v566 = vunpack.c.l.b16 %v489
      %v567 = vunpack.c.h.b16 %v489
      %v568 = vunpack.c.l.b16 %v490
      %v569 = vunpack.c.h.b16 %v490
      %v570 = vunpack.c.l.b16 %v491
      %v571 = vunpack.c.h.b16 %v491
      %v572 = vunpack.c.l.b16 %v492
      %v573 = vunpack.c.h.b16 %v492
      %v574 = vunpack.c.l.b16 %v493
      %v575 = vunpack.c.h.b16 %v493
      %v576 = vunpack.c.l.b16 %v494
      %v577 = vunpack.c.h.b16 %v494
      %v578 = vunpack.c.l.b16 %v495
      %v579 = vunpack.c.h.b16 %v495
      %v580 = vunpack.c.l.b16 %v496
      %v581 = vunpack.c.h.b16 %v496
      %v582 = vunpack.c.l.b16 %v497
      %v583 = vunpack.c.h.b16 %v497
      %v584 = vunpack.c.l.b16 %v498
      %v585 = vunpack.c.h.b16 %v498
      %v586 = vunpack.c.l.b16 %v499
      %v587 = vunpack.c.h.b16 %v499
      %v588 = vunpack.c.l.b16 %v500
      %v589 = vunpack.c.h.b16 %v500
      %v590 = vunpack.c.l.b16 %v501
      %v591 = vunpack.c.h.b16 %v501
      %v592 = vunpack.c.l.b16 %v502
      %v593 = vunpack.c.h.b16 %v502
      %v594 = vunpack.c.l.b16 %v503
      %v595 = vunpack.c.h.b16 %v503
      %v596 = vunpack.c.l.b16 %v504
      %v597 = vunpack.c.h.b16 %v504
      %v598 = vunpack.c.l.b16 %v505
      %v599 = vunpack.c.h.b16 %v505
      %v600 = vunpack.c.l.b16 %v506
      %v601 = vunpack.c.h.b16 %v506
      %v602 = vunpack.c.l.b16 %v507
      %v603 = vunpack.c.h.b16 %v507
      %v604 = vunpack.c.l.b16 %v508
      %v605 = vunpack.c.h.b16 %v508
      %v606 = vunpack.c.l.b16 %v509
      %v607 = vunpack.c.h.b16 %v509
      %v608 = vunpack.c.l.b16 %v510
      %v609 = vunpack.c.h.b16 %v510
      %v610 = vunpack.c.l.b16 %v511
      %v611 = vunpack.c.h.b16 %v511
      %v612 = vunpack.c.l.b16 %v512
      %v613 = vunpack.c.h.b16 %v512
      %v614 = vunpack.c.l.b16 %v513
      %v615 = vunpack.c.h.b16 %v513
      %v616 = vunpack.c.l.b16 %v514
      %v617 = vunpack.c.h.b16 %v514
      %v618 = vunpack.c.l.b16 %v515
      %v619 = vunpack.c.h.b16 %v515
      %v620 = vunpack.c.l.b16 %v516
      %v621 = vunpack.c.h.b16 %v516
      %v622 = vunpack.c.l.b16 %v517
      %v623 = vunpack.c.h.b16 %v517
      %v624 = vunpack.c.l.b16 %v518
      %v625 = vunpack.c.h.b16 %v518
      %v626 = vunpack.c.l.b16 %v519
      %v627 = vunpack.c.h.b16 %v519
      %v628 = vpack.c.b16 %v566, %v564
      %v629 = vpack.c.b16 %v567, %v565
      %v630 = vpack.c.b16 %v570, %v568
      %v631 = vpack.c.b16 %v571, %v569
      %v632 = vpack.c.b16 %v574, %v572
      %v633 = vpack.c.b16 %v575, %v573
      %v634 = vpack.c.b16 %v578, %v576
      %v635 = vpack.c.b16 %v579, %v577
      %v636 = vpack.c.b16 %v582, %v580
      %v637 = vpack.c.b16 %v583, %v581
      %v638 = vpack.c.b16 %v586, %v584
      %v639 = vpack.c.b16 %v587, %v585
      %v640 = vpack.c.b16 %v590, %v588
      %v641 = vpack.c.b16 %v591, %v589
      %v642 = vpack.c.b16 %v594, %v592
      %v643 = vpack.c.b16 %v595, %v593
      %v644 = vpack.c.b16 %v598, %v596
      %v645 = vpack.c.b16 %v599, %v597
      %v646 = vpack.c.b16 %v602, %v600
      %v647 = vpack.c.b16 %v603, %v601
      %v648 = vpack.c.b16 %v606, %v604
      %v649 = vpack.c.b16 %v607, %v605
      %v650 = vpack.c.b16 %v610, %v608
      %v651 = vpack.c.b16 %v611, %v609
      %v652 = vpack.c.b16 %v614, %v612
      %v653 = vpack.c.b16 %v615, %v613
      %v654 = vpack.c.b16 %v618, %v616
      %v655 = vpack.c.b16 %v619, %v617
      %v656 = vpack.c.b16 %v622, %v620
      %v657 = vpack.c.b16 %v623, %v621
      %v658 = vpack.c.b16 %v626, %v624
      %v659 = vpack.c.b16 %v627, %v625
      %692 = vmatprep.subr.bf16.mxu0 %v629
      %693 = vmatpush1.bf16.msra.mxu0 %v628
      %694 = vmatprep.subr.bf16.mxu0 %v631
      %695 = vmatpush1.bf16.msra.mxu0 %v630
      %696 = vmatprep.subr.bf16.mxu0 %v633
      %697 = vmatpush1.bf16.msra.mxu0 %v632
      %698 = vmatprep.subr.bf16.mxu0 %v635
      %699 = vmatpush1.bf16.msra.mxu0 %v634
      %700 = vmatprep.subr.bf16.mxu0 %v637
      %701 = vmatpush1.bf16.msra.mxu0 %v636
      %702 = vmatprep.subr.bf16.mxu0 %v639
      %703 = vmatpush1.bf16.msra.mxu0 %v638
      %704 = vmatprep.subr.bf16.mxu0 %v641
      %705 = vmatpush1.bf16.msra.mxu0 %v640
      %706 = vmatprep.subr.bf16.mxu0 %v643
      %707 = vmatpush1.bf16.msra.mxu0 %v642
      %708 = vmatprep.subr.bf16.mxu0 %v645
      %709 = vmatpush1.bf16.msra.mxu0 %v644
      %710 = vmatprep.subr.bf16.mxu0 %v647
      %711 = vmatpush1.bf16.msra.mxu0 %v646
      %712 = vmatprep.subr.bf16.mxu0 %v649
      %713 = vmatpush1.bf16.msra.mxu0 %v648
      %714 = vmatprep.subr.bf16.mxu0 %v651
      %715 = vmatpush1.bf16.msra.mxu0 %v650
      %716 = vmatprep.subr.bf16.mxu0 %v653
      %717 = vmatpush1.bf16.msra.mxu0 %v652
      %718 = vmatprep.subr.bf16.mxu0 %v655
      %719 = vmatpush1.bf16.msra.mxu0 %v654
      %720 = vmatprep.subr.bf16.mxu0 %v657
      %721 = vmatpush1.bf16.msra.mxu0 %v656
      %722 = vmatprep.subr.bf16.mxu0 %v659
      %723 = vmatpush1.bf16.msra.mxu0 %v658
      %724 = vmatprep.mubr.bf16.mxu0 %v487
      %725 = vmatmul.mubr.bf16.gmra.mrb[0].mxu0 %v486
      %v726 = vpop.f32.mrb[0].mxu0
      %v727 = vadd.f32 %v525, %v726
      %v728 = vpop.f32.mrb[0].mxu0
      %v729 = vadd.f32 %v529, %v728
      %v730 = vpop.f32.mrb[0].mxu0
      %v731 = vadd.f32 %v525, %v730
      %v732 = vpop.f32.mrb[0].mxu0
      %v733 = vadd.f32 %v529, %v732
      %734 = vdwg.mxu0
      %v735 = vlaneseq
      %vm736 = vcmp.ge.s32.totalorder %v735, 0
      %vm737 = vcmp.lt.s32.totalorder %v735, 256
      %vm738 = vmand %vm736, %vm737
      %739 = vst.msk [vmem:[#allocation2] ss:$8 sm:$0x3] %vm738, 0.0
      %740 = vst.msk [vmem:[#allocation2] ss:$8 sm:$0x0] %vm738, 0.0
      %vm745 = vcmask 1040384
      %v746 = vrot.slane %v727, 7
      %v747 = vrot.slane %v729, 7
      %v748 = vrot.slane %v731, 7
      %v749 = vsel %vm745, %v746, %v748
      %v750 = vrot.slane %v733, 7
      %v751 = vsel %vm745, %v747, %v750
      %758 = vst [vmem:[#allocation2] sm:$0xfe] %v746
      %759 = vst [vmem:[#allocation2 + $0x8] sm:$0xfe] %v747
      %760 = vst [vmem:[#allocation2 + $0x10] sm:$0xff] %v749
      %761 = vst [vmem:[#allocation2 + $0x18] sm:$0xff] %v751
      %762 = vst [vmem:[#allocation2 + $0x20] sm:$0x1] %v748
      %763 = vst [vmem:[#allocation2 + $0x28] sm:$0x1] %v750
      %s764 = scalar_lea.vmem [#allocation2], 33
      %765 = vst.msk [vmem:[%s764] ss:$8 sm:$0x3] %vm738, 0.0
      %766 = vst.msk [vmem:[%s764] ss:$8 sm:$0x0] %vm738, 0.0
      %v767 = vld [vmem:[#allocation2] sm:$0xff]
      %v768 = vld [vmem:[#allocation2 + $0x8] sm:$0xff]
      %v769 = vld [vmem:[#allocation2 + $0x10] sm:$0xff]
      %v770 = vld [vmem:[#allocation2 + $0x18] sm:$0xff]
      %v771 = vpack.c.bf16 %v769, %v767
      %v772 = vpack.c.bf16 %v770, %v768
      %v773 = vld [vmem:[%s5] sm:$0xf]
      %v774 = vld [vmem:[%s5 + $0x4] sm:$0xf]
      %v775 = vld [vmem:[%s5 + $0x8] sm:$0xf]
      %v776 = vld [vmem:[%s5 + $0xc] sm:$0xf]
      %v777 = vld [vmem:[%s5 + $0x10] sm:$0xf]
      %v778 = vld [vmem:[%s5 + $0x14] sm:$0xf]
      %v779 = vld [vmem:[%s5 + $0x18] sm:$0xf]
      %v780 = vld [vmem:[%s5 + $0x1c] sm:$0xf]
      %v781 = vld [vmem:[%s5 + $0x20] sm:$0xf]
      %v782 = vld [vmem:[%s5 + $0x24] sm:$0xf]
      %v783 = vld [vmem:[%s5 + $0x28] sm:$0xf]
      %v784 = vld [vmem:[%s5 + $0x2c] sm:$0xf]
      %v785 = vld [vmem:[%s5 + $0x30] sm:$0xf]
      %v786 = vld [vmem:[%s5 + $0x34] sm:$0xf]
      %v787 = vld [vmem:[%s5 + $0x38] sm:$0xf]
      %v788 = vld [vmem:[%s5 + $0x3c] sm:$0xf]
      %v789 = vld [vmem:[%s5 + $0x40] sm:$0xf]
      %v790 = vld [vmem:[%s5 + $0x44] sm:$0xf]
      %v791 = vld [vmem:[%s5 + $0x48] sm:$0xf]
      %v792 = vld [vmem:[%s5 + $0x4c] sm:$0xf]
      %v793 = vld [vmem:[%s5 + $0x50] sm:$0xf]
      %v794 = vld [vmem:[%s5 + $0x54] sm:$0xf]
      %v795 = vld [vmem:[%s5 + $0x58] sm:$0xf]
      %v796 = vld [vmem:[%s5 + $0x5c] sm:$0xf]
      %v797 = vld [vmem:[%s5 + $0x60] sm:$0xf]
      %v798 = vld [vmem:[%s5 + $0x64] sm:$0xf]
      %v799 = vld [vmem:[%s5 + $0x68] sm:$0xf]
      %v800 = vld [vmem:[%s5 + $0x6c] sm:$0xf]
      %v801 = vld [vmem:[%s5 + $0x70] sm:$0xf]
      %v802 = vld [vmem:[%s5 + $0x74] sm:$0xf]
      %v803 = vld [vmem:[%s5 + $0x78] sm:$0xf]
      %v804 = vld [vmem:[%s5 + $0x7c] sm:$0xf]
      %v805 = vld [vmem:[#allocation2] sm:$0xfe]
      %v806 = vld [vmem:[#allocation2 + $0x8] sm:$0xfe]
      %v807 = vld [vmem:[#allocation2 + $0x20] sm:$0x1]
      %v808 = vld [vmem:[#allocation2 + $0x28] sm:$0x1]
      %v809 = vpack.c.bf16 %v769, %v805
      %v810 = vpack.c.bf16 %v770, %v806
      %v811 = vpack.c.bf16 %v807, %v807
      %v812 = vpack.c.bf16 %v808, %v808
      %s813 = scalar_lea.vmem %s5, 128
      %v814 = vld [vmem:[%s813] sm:$0xf]
      %v815 = vld [vmem:[%s813 + $0x4] sm:$0xf]
      %v816 = vld [vmem:[%s813 + $0x8] sm:$0xf]
      %v817 = vld [vmem:[%s813 + $0xc] sm:$0xf]
      %v818 = vld [vmem:[%s813 + $0x10] sm:$0xf]
      %v819 = vld [vmem:[%s813 + $0x14] sm:$0xf]
      %v820 = vld [vmem:[%s813 + $0x18] sm:$0xf]
      %v821 = vld [vmem:[%s813 + $0x1c] sm:$0xf]
      %v822 = vld [vmem:[%s813 + $0x20] sm:$0xf]
      %v823 = vld [vmem:[%s813 + $0x24] sm:$0xf]
      %v824 = vld [vmem:[%s813 + $0x28] sm:$0xf]
      %v825 = vld [vmem:[%s813 + $0x2c] sm:$0xf]
      %v826 = vld [vmem:[%s813 + $0x30] sm:$0xf]
      %v827 = vld [vmem:[%s813 + $0x34] sm:$0xf]
      %v828 = vld [vmem:[%s813 + $0x38] sm:$0xf]
      %v829 = vld [vmem:[%s813 + $0x3c] sm:$0xf]
      %v830 = vld [vmem:[%s813 + $0x40] sm:$0xf]
      %v831 = vld [vmem:[%s813 + $0x44] sm:$0xf]
      %v832 = vld [vmem:[%s813 + $0x48] sm:$0xf]
      %v833 = vld [vmem:[%s813 + $0x4c] sm:$0xf]
      %v834 = vld [vmem:[%s813 + $0x50] sm:$0xf]
      %v835 = vld [vmem:[%s813 + $0x54] sm:$0xf]
      %v836 = vld [vmem:[%s813 + $0x58] sm:$0xf]
      %v837 = vld [vmem:[%s813 + $0x5c] sm:$0xf]
      %v838 = vld [vmem:[%s813 + $0x60] sm:$0xf]
      %v839 = vld [vmem:[%s813 + $0x64] sm:$0xf]
      %v840 = vld [vmem:[%s813 + $0x68] sm:$0xf]
      %v841 = vld [vmem:[%s813 + $0x6c] sm:$0xf]
      %v842 = vld [vmem:[%s813 + $0x70] sm:$0xf]
      %v843 = vld [vmem:[%s813 + $0x74] sm:$0xf]
      %v844 = vld [vmem:[%s813 + $0x78] sm:$0xf]
      %v845 = vld [vmem:[%s813 + $0x7c] sm:$0xf]
      %vm846 = vsmask.f32 7424
      %v848 = vshrl.u32 %v809, 16
      %v850 = vshll.u32 %v809, 16
      %v852 = vrot.slane %v850, 1
      %v853 = vor.u32 %v848, %v852
      %v855 = vshll.u32 %v811, 16
      %v857 = vrot.slane %v855, 1
      %v858 = vsel %vm846, %v853, %v857
      %v860 = vshrl.u32 %v810, 16
      %v862 = vshll.u32 %v810, 16
      %v864 = vrot.slane %v862, 1
      %v865 = vor.u32 %v860, %v864
      %v867 = vshll.u32 %v812, 16
      %v869 = vrot.slane %v867, 1
      %v870 = vsel %vm846, %v865, %v869
      %v905 = vunpack.c.l.b16 %v814
      %v906 = vunpack.c.l.b16 %v815
      %v907 = vunpack.c.l.b16 %v816
      %v908 = vunpack.c.l.b16 %v817
      %v909 = vunpack.c.l.b16 %v818
      %v910 = vunpack.c.l.b16 %v819
      %v911 = vunpack.c.l.b16 %v820
      %v912 = vunpack.c.l.b16 %v821
      %v913 = vunpack.c.l.b16 %v822
      %v914 = vunpack.c.l.b16 %v823
      %v915 = vunpack.c.l.b16 %v824
      %v916 = vunpack.c.l.b16 %v825
      %v917 = vunpack.c.l.b16 %v826
      %v918 = vunpack.c.l.b16 %v827
      %v919 = vunpack.c.l.b16 %v828
      %v920 = vunpack.c.l.b16 %v829
      %v921 = vunpack.c.l.b16 %v830
      %v922 = vunpack.c.l.b16 %v831
      %v923 = vunpack.c.l.b16 %v832
      %v924 = vunpack.c.l.b16 %v833
      %v925 = vunpack.c.l.b16 %v834
      %v926 = vunpack.c.l.b16 %v835
      %v927 = vunpack.c.l.b16 %v836
      %v928 = vunpack.c.l.b16 %v837
      %v929 = vunpack.c.l.b16 %v838
      %v930 = vunpack.c.l.b16 %v839
      %v931 = vunpack.c.l.b16 %v840
      %v932 = vunpack.c.l.b16 %v841
      %v933 = vunpack.c.l.b16 %v842
      %v934 = vunpack.c.l.b16 %v843
      %v935 = vunpack.c.l.b16 %v844
      %v936 = vunpack.c.l.b16 %v845
      %v937 = vpack.c.b16 %v906, %v905
      %v938 = vpack.c.b16 %v908, %v907
      %v939 = vpack.c.b16 %v910, %v909
      %v940 = vpack.c.b16 %v912, %v911
      %v941 = vpack.c.b16 %v914, %v913
      %v942 = vpack.c.b16 %v916, %v915
      %v943 = vpack.c.b16 %v918, %v917
      %v944 = vpack.c.b16 %v920, %v919
      %v945 = vpack.c.b16 %v922, %v921
      %v946 = vpack.c.b16 %v924, %v923
      %v947 = vpack.c.b16 %v926, %v925
      %v948 = vpack.c.b16 %v928, %v927
      %v949 = vpack.c.b16 %v930, %v929
      %v950 = vpack.c.b16 %v932, %v931
      %v951 = vpack.c.b16 %v934, %v933
      %v952 = vpack.c.b16 %v936, %v935
      %969 = vmatprep.subr.bf16.mxu0 0
      %970 = vmatpush1.bf16.msra.mxu0 %v937
      %971 = vmatprep.subr.bf16.mxu0 0
      %972 = vmatpush1.bf16.msra.mxu0 %v938
      %973 = vmatprep.subr.bf16.mxu0 0
      %974 = vmatpush1.bf16.msra.mxu0 %v939
      %975 = vmatprep.subr.bf16.mxu0 0
      %976 = vmatpush1.bf16.msra.mxu0 %v940
      %977 = vmatprep.subr.bf16.mxu0 0
      %978 = vmatpush1.bf16.msra.mxu0 %v941
      %979 = vmatprep.subr.bf16.mxu0 0
      %980 = vmatpush1.bf16.msra.mxu0 %v942
      %981 = vmatprep.subr.bf16.mxu0 0
      %982 = vmatpush1.bf16.msra.mxu0 %v943
      %983 = vmatprep.subr.bf16.mxu0 0
      %984 = vmatpush1.bf16.msra.mxu0 %v944
      %985 = vmatprep.subr.bf16.mxu0 0
      %986 = vmatpush1.bf16.msra.mxu0 %v945
      %987 = vmatprep.subr.bf16.mxu0 0
      %988 = vmatpush1.bf16.msra.mxu0 %v946
      %989 = vmatprep.subr.bf16.mxu0 0
      %990 = vmatpush1.bf16.msra.mxu0 %v947
      %991 = vmatprep.subr.bf16.mxu0 0
      %992 = vmatpush1.bf16.msra.mxu0 %v948
      %993 = vmatprep.subr.bf16.mxu0 0
      %994 = vmatpush1.bf16.msra.mxu0 %v949
      %995 = vmatprep.subr.bf16.mxu0 0
      %996 = vmatpush1.bf16.msra.mxu0 %v950
      %997 = vmatprep.subr.bf16.mxu0 0
      %998 = vmatpush1.bf16.msra.mxu0 %v951
      %999 = vmatprep.subr.bf16.mxu0 0
      %1000 = vmatpush1.bf16.msra.mxu0 %v952
      %1001 = vmatprep.mubr.bf16.mxu0 %v870
      %1002 = vmatmul.mubr.bf16.gmra.mrb[0].mxu0 %v858
      %v1003 = vpop.f32.mrb[0].mxu0
      %v1004 = vadd.f32 0.0, %v1003
      %v1005 = vpop.f32.mrb[0].mxu0
      %v1006 = vpop.f32.mrb[0].mxu0
      %v1007 = vadd.f32 0.0, %v1006
      %v1008 = vpop.f32.mrb[0].mxu0
      %1009 = vdwg.mxu0
      %v1042 = vunpack.c.l.b16 %v773
      %v1043 = vunpack.c.l.b16 %v774
      %v1044 = vunpack.c.l.b16 %v775
      %v1045 = vunpack.c.l.b16 %v776
      %v1046 = vunpack.c.l.b16 %v777
      %v1047 = vunpack.c.l.b16 %v778
      %v1048 = vunpack.c.l.b16 %v779
      %v1049 = vunpack.c.l.b16 %v780
      %v1050 = vunpack.c.l.b16 %v781
      %v1051 = vunpack.c.l.b16 %v782
      %v1052 = vunpack.c.l.b16 %v783
      %v1053 = vunpack.c.l.b16 %v784
      %v1054 = vunpack.c.l.b16 %v785
      %v1055 = vunpack.c.l.b16 %v786
      %v1056 = vunpack.c.l.b16 %v787
      %v1057 = vunpack.c.l.b16 %v788
      %v1058 = vunpack.c.l.b16 %v789
      %v1059 = vunpack.c.l.b16 %v790
      %v1060 = vunpack.c.l.b16 %v791
      %v1061 = vunpack.c.l.b16 %v792
      %v1062 = vunpack.c.l.b16 %v793
      %v1063 = vunpack.c.l.b16 %v794
      %v1064 = vunpack.c.l.b16 %v795
      %v1065 = vunpack.c.l.b16 %v796
      %v1066 = vunpack.c.l.b16 %v797
      %v1067 = vunpack.c.l.b16 %v798
      %v1068 = vunpack.c.l.b16 %v799
      %v1069 = vunpack.c.l.b16 %v800
      %v1070 = vunpack.c.l.b16 %v801
      %v1071 = vunpack.c.l.b16 %v802
      %v1072 = vunpack.c.l.b16 %v803
      %v1073 = vunpack.c.l.b16 %v804
      %v1074 = vpack.c.b16 %v1043, %v1042
      %v1075 = vpack.c.b16 %v1045, %v1044
      %v1076 = vpack.c.b16 %v1047, %v1046
      %v1077 = vpack.c.b16 %v1049, %v1048
      %v1078 = vpack.c.b16 %v1051, %v1050
      %v1079 = vpack.c.b16 %v1053, %v1052
      %v1080 = vpack.c.b16 %v1055, %v1054
      %v1081 = vpack.c.b16 %v1057, %v1056
      %v1082 = vpack.c.b16 %v1059, %v1058
      %v1083 = vpack.c.b16 %v1061, %v1060
      %v1084 = vpack.c.b16 %v1063, %v1062
      %v1085 = vpack.c.b16 %v1065, %v1064
      %v1086 = vpack.c.b16 %v1067, %v1066
      %v1087 = vpack.c.b16 %v1069, %v1068
      %v1088 = vpack.c.b16 %v1071, %v1070
      %v1089 = vpack.c.b16 %v1073, %v1072
      %1106 = vmatprep.subr.bf16.mxu0 0
      %1107 = vmatpush1.bf16.msra.mxu0 %v1074
      %1108 = vmatprep.subr.bf16.mxu0 0
      %1109 = vmatpush1.bf16.msra.mxu0 %v1075
      %1110 = vmatprep.subr.bf16.mxu0 0
      %1111 = vmatpush1.bf16.msra.mxu0 %v1076
      %1112 = vmatprep.subr.bf16.mxu0 0
      %1113 = vmatpush1.bf16.msra.mxu0 %v1077
      %1114 = vmatprep.subr.bf16.mxu0 0
      %1115 = vmatpush1.bf16.msra.mxu0 %v1078
      %1116 = vmatprep.subr.bf16.mxu0 0
      %1117 = vmatpush1.bf16.msra.mxu0 %v1079
      %1118 = vmatprep.subr.bf16.mxu0 0
      %1119 = vmatpush1.bf16.msra.mxu0 %v1080
      %1120 = vmatprep.subr.bf16.mxu0 0
      %1121 = vmatpush1.bf16.msra.mxu0 %v1081
      %1122 = vmatprep.subr.bf16.mxu0 0
      %1123 = vmatpush1.bf16.msra.mxu0 %v1082
      %1124 = vmatprep.subr.bf16.mxu0 0
      %1125 = vmatpush1.bf16.msra.mxu0 %v1083
      %1126 = vmatprep.subr.bf16.mxu0 0
      %1127 = vmatpush1.bf16.msra.mxu0 %v1084
      %1128 = vmatprep.subr.bf16.mxu0 0
      %1129 = vmatpush1.bf16.msra.mxu0 %v1085
      %1130 = vmatprep.subr.bf16.mxu0 0
      %1131 = vmatpush1.bf16.msra.mxu0 %v1086
      %1132 = vmatprep.subr.bf16.mxu0 0
      %1133 = vmatpush1.bf16.msra.mxu0 %v1087
      %1134 = vmatprep.subr.bf16.mxu0 0
      %1135 = vmatpush1.bf16.msra.mxu0 %v1088
      %1136 = vmatprep.subr.bf16.mxu0 0
      %1137 = vmatpush1.bf16.msra.mxu0 %v1089
      %1138 = vmatprep.mubr.bf16.mxu0 %v772
      %1139 = vmatmul.mubr.bf16.gmra.mrb[0].mxu0 %v771
      %v1140 = vpop.f32.mrb[0].mxu0
      %v1141 = vadd.f32 %v1004, %v1140
      %v1142 = vpop.f32.mrb[0].mxu0
      %v1143 = vpop.f32.mrb[0].mxu0
      %v1144 = vadd.f32 %v1007, %v1143
      %v1145 = vpop.f32.mrb[0].mxu0
      %1146 = vdwg.mxu0
      %v1147 = vld [vmem:[#allocation2] sm:$0xfc]
      %v1148 = vld [vmem:[#allocation2 + $0x8] sm:$0xfc]
      %v1149 = vld [vmem:[#allocation2 + $0x20] sm:$0x3]
      %v1150 = vld [vmem:[#allocation2 + $0x28] sm:$0x3]
      %v1151 = vpack.c.bf16 %v769, %v1147
      %v1152 = vpack.c.bf16 %v770, %v1148
      %v1153 = vpack.c.bf16 %v1149, %v1149
      %v1154 = vpack.c.bf16 %v1150, %v1150
      %s1155 = scalar_lea.vmem %s5, 256
      %v1156 = vld [vmem:[%s1155] sm:$0xf]
      %v1157 = vld [vmem:[%s1155 + $0x4] sm:$0xf]
      %v1158 = vld [vmem:[%s1155 + $0x8] sm:$0xf]
      %v1159 = vld [vmem:[%s1155 + $0xc] sm:$0xf]
      %v1160 = vld [vmem:[%s1155 + $0x10] sm:$0xf]
      %v1161 = vld [vmem:[%s1155 + $0x14] sm:$0xf]
      %v1162 = vld [vmem:[%s1155 + $0x18] sm:$0xf]
      %v1163 = vld [vmem:[%s1155 + $0x1c] sm:$0xf]
      %v1164 = vld [vmem:[%s1155 + $0x20] sm:$0xf]
      %v1165 = vld [vmem:[%s1155 + $0x24] sm:$0xf]
      %v1166 = vld [vmem:[%s1155 + $0x28] sm:$0xf]
      %v1167 = vld [vmem:[%s1155 + $0x2c] sm:$0xf]
      %v1168 = vld [vmem:[%s1155 + $0x30] sm:$0xf]
      %v1169 = vld [vmem:[%s1155 + $0x34] sm:$0xf]
      %v1170 = vld [vmem:[%s1155 + $0x38] sm:$0xf]
      %v1171 = vld [vmem:[%s1155 + $0x3c] sm:$0xf]
      %v1172 = vld [vmem:[%s1155 + $0x40] sm:$0xf]
      %v1173 = vld [vmem:[%s1155 + $0x44] sm:$0xf]
      %v1174 = vld [vmem:[%s1155 + $0x48] sm:$0xf]
      %v1175 = vld [vmem:[%s1155 + $0x4c] sm:$0xf]
      %v1176 = vld [vmem:[%s1155 + $0x50] sm:$0xf]
      %v1177 = vld [vmem:[%s1155 + $0x54] sm:$0xf]
      %v1178 = vld [vmem:[%s1155 + $0x58] sm:$0xf]
      %v1179 = vld [vmem:[%s1155 + $0x5c] sm:$0xf]
      %v1180 = vld [vmem:[%s1155 + $0x60] sm:$0xf]
      %v1181 = vld [vmem:[%s1155 + $0x64] sm:$0xf]
      %v1182 = vld [vmem:[%s1155 + $0x68] sm:$0xf]
      %v1183 = vld [vmem:[%s1155 + $0x6c] sm:$0xf]
      %v1184 = vld [vmem:[%s1155 + $0x70] sm:$0xf]
      %v1185 = vld [vmem:[%s1155 + $0x74] sm:$0xf]
      %v1186 = vld [vmem:[%s1155 + $0x78] sm:$0xf]
      %v1187 = vld [vmem:[%s1155 + $0x7c] sm:$0xf]
      %vm1192 = vcmask 1046528
      %v1193 = vrot.slane %v1151, 1
      %v1194 = vrot.slane %v1153, 1
      %v1195 = vsel %vm1192, %v1193, %v1194
      %v1196 = vrot.slane %v1152, 1
      %v1197 = vrot.slane %v1154, 1
      %v1198 = vsel %vm1192, %v1196, %v1197
      %v1233 = vunpack.c.l.b16 %v1156
      %v1234 = vunpack.c.l.b16 %v1157
      %v1235 = vunpack.c.l.b16 %v1158
      %v1236 = vunpack.c.l.b16 %v1159
      %v1237 = vunpack.c.l.b16 %v1160
      %v1238 = vunpack.c.l.b16 %v1161
      %v1239 = vunpack.c.l.b16 %v1162
      %v1240 = vunpack.c.l.b16 %v1163
      %v1241 = vunpack.c.l.b16 %v1164
      %v1242 = vunpack.c.l.b16 %v1165
      %v1243 = vunpack.c.l.b16 %v1166
      %v1244 = vunpack.c.l.b16 %v1167
      %v1245 = vunpack.c.l.b16 %v1168
      %v1246 = vunpack.c.l.b16 %v1169
      %v1247 = vunpack.c.l.b16 %v1170
      %v1248 = vunpack.c.l.b16 %v1171
      %v1249 = vunpack.c.l.b16 %v1172
      %v1250 = vunpack.c.l.b16 %v1173
      %v1251 = vunpack.c.l.b16 %v1174
      %v1252 = vunpack.c.l.b16 %v1175
      %v1253 = vunpack.c.l.b16 %v1176
      %v1254 = vunpack.c.l.b16 %v1177
      %v1255 = vunpack.c.l.b16 %v1178
      %v1256 = vunpack.c.l.b16 %v1179
      %v1257 = vunpack.c.l.b16 %v1180
      %v1258 = vunpack.c.l.b16 %v1181
      %v1259 = vunpack.c.l.b16 %v1182
      %v1260 = vunpack.c.l.b16 %v1183
      %v1261 = vunpack.c.l.b16 %v1184
      %v1262 = vunpack.c.l.b16 %v1185
      %v1263 = vunpack.c.l.b16 %v1186
      %v1264 = vunpack.c.l.b16 %v1187
      %v1265 = vpack.c.b16 %v1234, %v1233
      %v1266 = vpack.c.b16 %v1236, %v1235
      %v1267 = vpack.c.b16 %v1238, %v1237
      %v1268 = vpack.c.b16 %v1240, %v1239
      %v1269 = vpack.c.b16 %v1242, %v1241
      %v1270 = vpack.c.b16 %v1244, %v1243
      %v1271 = vpack.c.b16 %v1246, %v1245
      %v1272 = vpack.c.b16 %v1248, %v1247
      %v1273 = vpack.c.b16 %v1250, %v1249
      %v1274 = vpack.c.b16 %v1252, %v1251
      %v1275 = vpack.c.b16 %v1254, %v1253
      %v1276 = vpack.c.b16 %v1256, %v1255
      %v1277 = vpack.c.b16 %v1258, %v1257
      %v1278 = vpack.c.b16 %v1260, %v1259
      %v1279 = vpack.c.b16 %v1262, %v1261
      %v1280 = vpack.c.b16 %v1264, %v1263
      %1297 = vmatprep.subr.bf16.mxu0 0
      %1298 = vmatpush1.bf16.msra.mxu0 %v1265
      %1299 = vmatprep.subr.bf16.mxu0 0
      %1300 = vmatpush1.bf16.msra.mxu0 %v1266
      %1301 = vmatprep.subr.bf16.mxu0 0
      %1302 = vmatpush1.bf16.msra.mxu0 %v1267
      %1303 = vmatprep.subr.bf16.mxu0 0
      %1304 = vmatpush1.bf16.msra.mxu0 %v1268
      %1305 = vmatprep.subr.bf16.mxu0 0
      %1306 = vmatpush1.bf16.msra.mxu0 %v1269
      %1307 = vmatprep.subr.bf16.mxu0 0
      %1308 = vmatpush1.bf16.msra.mxu0 %v1270
      %1309 = vmatprep.subr.bf16.mxu0 0
      %1310 = vmatpush1.bf16.msra.mxu0 %v1271
      %1311 = vmatprep.subr.bf16.mxu0 0
      %1312 = vmatpush1.bf16.msra.mxu0 %v1272
      %1313 = vmatprep.subr.bf16.mxu0 0
      %1314 = vmatpush1.bf16.msra.mxu0 %v1273
      %1315 = vmatprep.subr.bf16.mxu0 0
      %1316 = vmatpush1.bf16.msra.mxu0 %v1274
      %1317 = vmatprep.subr.bf16.mxu0 0
      %1318 = vmatpush1.bf16.msra.mxu0 %v1275
      %1319 = vmatprep.subr.bf16.mxu0 0
      %1320 = vmatpush1.bf16.msra.mxu0 %v1276
      %1321 = vmatprep.subr.bf16.mxu0 0
      %1322 = vmatpush1.bf16.msra.mxu0 %v1277
      %1323 = vmatprep.subr.bf16.mxu0 0
      %1324 = vmatpush1.bf16.msra.mxu0 %v1278
      %1325 = vmatprep.subr.bf16.mxu0 0
      %1326 = vmatpush1.bf16.msra.mxu0 %v1279
      %1327 = vmatprep.subr.bf16.mxu0 0
      %1328 = vmatpush1.bf16.msra.mxu0 %v1280
      %1329 = vmatprep.mubr.bf16.mxu0 %v1198
      %1330 = vmatmul.mubr.bf16.gmra.mrb[0].mxu0 %v1195
      %v1331 = vpop.f32.mrb[0].mxu0
      %v1332 = vadd.f32 0.0, %v1331
      %v1333 = vpop.f32.mrb[0].mxu0
      %v1334 = vpop.f32.mrb[0].mxu0
      %v1335 = vadd.f32 0.0, %v1334
      %v1336 = vpop.f32.mrb[0].mxu0
      %1337 = vdwg.mxu0
      %v1338 = vadd.f32 %v1141, %v1332
      %v1339 = vadd.f32 %v1144, %v1335
      %v1340 = vld [vmem:[%s475] sm:$0xff]
      %v1341 = vld [vmem:[%s475 + $0x8] sm:$0xff]
      %v1342 = vld [vmem:[%s475 + $0x10] sm:$0xff]
      %v1343 = vld [vmem:[%s475 + $0x18] sm:$0xff]
      %v1344 = vld [vmem:[%s475 + $0x20] sm:$0xff]
      %v1345 = vld [vmem:[%s475 + $0x28] sm:$0xff]
      %v1346 = vld [vmem:[%s475 + $0x30] sm:$0xff]
      %v1347 = vld [vmem:[%s475 + $0x38] sm:$0xff]
      %v1348 = vld [vmem:[%s475 + $0x40] sm:$0xff]
      %v1349 = vld [vmem:[%s475 + $0x48] sm:$0xff]
      %v1350 = vld [vmem:[%s475 + $0x50] sm:$0xff]
      %v1351 = vld [vmem:[%s475 + $0x58] sm:$0xff]
      %v1352 = vld [vmem:[%s475 + $0x60] sm:$0xff]
      %v1353 = vld [vmem:[%s475 + $0x68] sm:$0xff]
      %v1354 = vld [vmem:[%s475 + $0x70] sm:$0xff]
      %v1355 = vld [vmem:[%s475 + $0x78] sm:$0xff]
      %v1356 = vld [vmem:[%s475 + $0x80] sm:$0xff]
      %v1357 = vld [vmem:[%s475 + $0x88] sm:$0xff]
      %v1358 = vld [vmem:[%s475 + $0x90] sm:$0xff]
      %v1359 = vld [vmem:[%s475 + $0x98] sm:$0xff]
      %v1360 = vld [vmem:[%s475 + $0xa0] sm:$0xff]
      %v1361 = vld [vmem:[%s475 + $0xa8] sm:$0xff]
      %v1362 = vld [vmem:[%s475 + $0xb0] sm:$0xff]
      %v1363 = vld [vmem:[%s475 + $0xb8] sm:$0xff]
      %v1364 = vld [vmem:[%s475 + $0xc0] sm:$0xff]
      %v1365 = vld [vmem:[%s475 + $0xc8] sm:$0xff]
      %v1366 = vld [vmem:[%s475 + $0xd0] sm:$0xff]
      %v1367 = vld [vmem:[%s475 + $0xd8] sm:$0xff]
      %v1368 = vld [vmem:[%s475 + $0xe0] sm:$0xff]
      %v1369 = vld [vmem:[%s475 + $0xe8] sm:$0xff]
      %v1370 = vld [vmem:[%s475 + $0xf0] sm:$0xff]
      %v1371 = vld [vmem:[%s475 + $0xf8] sm:$0xff]
      %vm1372 = vcmask 256000
      %1373 = vst.msk [vmem:[#allocation3] sm:$0x7] %vm1372, 0.0
      %1374 = vst.msk [vmem:[#allocation3 + $0x13] sm:$0x7] %vm1372, 0.0
      %vm1375 = vcmask 64512
      %v1376 = vsel %vm1375, %v1340, -inf
      %1377 = vmax.xlane.f32.xlu0 %v1376
      %v1378 = vpop.xlane.xlu0 %1377
      %v1379 = vsel %vm1375, %v1341, -inf
      %1380 = vmax.xlane.f32.xlu0 %v1379
      %v1381 = vpop.xlane.xlu0 %1380
      %v1382 = vsel %vm1375, %v1342, -inf
      %1383 = vmax.xlane.f32.xlu0 %v1382
      %v1384 = vpop.xlane.xlu0 %1383
      %v1385 = vsel %vm1375, %v1343, -inf
      %1386 = vmax.xlane.f32.xlu0 %v1385
      %v1387 = vpop.xlane.xlu0 %1386
      %v1388 = vsel %vm1375, %v1344, -inf
      %1389 = vmax.xlane.f32.xlu0 %v1388
      %v1390 = vpop.xlane.xlu0 %1389
      %v1391 = vsel %vm1375, %v1345, -inf
      %1392 = vmax.xlane.f32.xlu0 %v1391
      %v1393 = vpop.xlane.xlu0 %1392
      %v1394 = vsel %vm1375, %v1346, -inf
      %1395 = vmax.xlane.f32.xlu0 %v1394
      %v1396 = vpop.xlane.xlu0 %1395
      %v1397 = vsel %vm1375, %v1347, -inf
      %1398 = vmax.xlane.f32.xlu0 %v1397
      %v1399 = vpop.xlane.xlu0 %1398
      %v1400 = vsel %vm1375, %v1348, -inf
      %1401 = vmax.xlane.f32.xlu0 %v1400
      %v1402 = vpop.xlane.xlu0 %1401
      %v1403 = vsel %vm1375, %v1349, -inf
      %1404 = vmax.xlane.f32.xlu0 %v1403
      %v1405 = vpop.xlane.xlu0 %1404
      %v1406 = vsel %vm1375, %v1350, -inf
      %1407 = vmax.xlane.f32.xlu0 %v1406
      %v1408 = vpop.xlane.xlu0 %1407
      %v1409 = vsel %vm1375, %v1351, -inf
      %1410 = vmax.xlane.f32.xlu0 %v1409
      %v1411 = vpop.xlane.xlu0 %1410
      %v1412 = vsel %vm1375, %v1352, -inf
      %1413 = vmax.xlane.f32.xlu0 %v1412
      %v1414 = vpop.xlane.xlu0 %1413
      %v1415 = vsel %vm1375, %v1353, -inf
      %1416 = vmax.xlane.f32.xlu0 %v1415
      %v1417 = vpop.xlane.xlu0 %1416
      %v1418 = vsel %vm1375, %v1354, -inf
      %1419 = vmax.xlane.f32.xlu0 %v1418
      %v1420 = vpop.xlane.xlu0 %1419
      %v1421 = vsel %vm1375, %v1355, -inf
      %1422 = vmax.xlane.f32.xlu0 %v1421
      %v1423 = vpop.xlane.xlu0 %1422
      %v1424 = vsel %vm1375, %v1356, -inf
      %1425 = vmax.xlane.f32.xlu0 %v1424
      %v1426 = vpop.xlane.xlu0 %1425
      %v1427 = vsel %vm1375, %v1357, -inf
      %1428 = vmax.xlane.f32.xlu0 %v1427
      %v1429 = vpop.xlane.xlu0 %1428
      %v1430 = vsel %vm1375, %v1358, -inf
      %1431 = vmax.xlane.f32.xlu0 %v1430
      %v1432 = vpop.xlane.xlu0 %1431
      %v1433 = vsel %vm1375, %v1359, -inf
      %1434 = vmax.xlane.f32.xlu0 %v1433
      %v1435 = vpop.xlane.xlu0 %1434
      %v1436 = vsel %vm1375, %v1360, -inf
      %1437 = vmax.xlane.f32.xlu0 %v1436
      %v1438 = vpop.xlane.xlu0 %1437
      %v1439 = vsel %vm1375, %v1361, -inf
      %1440 = vmax.xlane.f32.xlu0 %v1439
      %v1441 = vpop.xlane.xlu0 %1440
      %v1442 = vsel %vm1375, %v1362, -inf
      %1443 = vmax.xlane.f32.xlu0 %v1442
      %v1444 = vpop.xlane.xlu0 %1443
      %v1445 = vsel %vm1375, %v1363, -inf
      %1446 = vmax.xlane.f32.xlu0 %v1445
      %v1447 = vpop.xlane.xlu0 %1446
      %v1448 = vsel %vm1375, %v1364, -inf
      %1449 = vmax.xlane.f32.xlu0 %v1448
      %v1450 = vpop.xlane.xlu0 %1449
      %v1451 = vsel %vm1375, %v1365, -inf
      %1452 = vmax.xlane.f32.xlu0 %v1451
      %v1453 = vpop.xlane.xlu0 %1452
      %v1454 = vsel %vm1375, %v1366, -inf
      %1455 = vmax.xlane.f32.xlu0 %v1454
      %v1456 = vpop.xlane.xlu0 %1455
      %v1457 = vsel %vm1375, %v1367, -inf
      %1458 = vmax.xlane.f32.xlu0 %v1457
      %v1459 = vpop.xlane.xlu0 %1458
      %v1460 = vsel %vm1375, %v1368, -inf
      %1461 = vmax.xlane.f32.xlu0 %v1460
      %v1462 = vpop.xlane.xlu0 %1461
      %v1463 = vsel %vm1375, %v1369, -inf
      %1464 = vmax.xlane.f32.xlu0 %v1463
      %v1465 = vpop.xlane.xlu0 %1464
      %v1466 = vsel %vm1375, %v1370, -inf
      %1467 = vmax.xlane.f32.xlu0 %v1466
      %v1468 = vpop.xlane.xlu0 %1467
      %v1469 = vsel %vm1375, %v1371, -inf
      %1470 = vmax.xlane.f32.xlu0 %v1469
      %v1471 = vpop.xlane.xlu0 %1470
      %v1504 = vlaneseq
      %v1505 = vand.u32 %v1504, 127
      %v1506 = vlaneseq
      %v1507 = vshrl.u32 %v1506, 7
      %v1508 = vsub.s32 %v1505, %v1507
      %v1509 = vrot.slane %v1378, %v1508
      %v1510 = vadd.s32 %v1505, 4294967288
      %v1511 = vlaneseq
      %v1512 = vshrl.u32 %v1511, 7
      %v1513 = vsub.s32 %v1510, %v1512
      %v1514 = vrot.slane %v1381, %v1513
      %vm1515 = vcmask 130112
      %v1516 = vsel %vm1515, %v1514, %v1509
      %v1517 = vlaneseq
      %v1518 = vshrl.u32 %v1517, 7
      %v1519 = vsub.s32 %v1505, %v1518
      %v1520 = vrot.slane %v1384, %v1519
      %v1521 = vlaneseq
      %v1522 = vshrl.u32 %v1521, 7
      %v1523 = vsub.s32 %v1510, %v1522
      %v1524 = vrot.slane %v1387, %v1523
      %v1525 = vsel %vm1515, %v1524, %v1520
      %v1526 = vlaneseq
      %v1527 = vshrl.u32 %v1526, 7
      %v1528 = vsub.s32 %v1505, %v1527
      %v1529 = vrot.slane %v1390, %v1528
      %v1530 = vlaneseq
      %v1531 = vshrl.u32 %v1530, 7
      %v1532 = vsub.s32 %v1510, %v1531
      %v1533 = vrot.slane %v1393, %v1532
      %v1534 = vsel %vm1515, %v1533, %v1529
      %v1535 = vlaneseq
      %v1536 = vshrl.u32 %v1535, 7
      %v1537 = vsub.s32 %v1505, %v1536
      %v1538 = vrot.slane %v1396, %v1537
      %v1539 = vlaneseq
      %v1540 = vshrl.u32 %v1539, 7
      %v1541 = vsub.s32 %v1510, %v1540
      %v1542 = vrot.slane %v1399, %v1541
      %v1543 = vsel %vm1515, %v1542, %v1538
      %v1544 = vlaneseq
      %v1545 = vshrl.u32 %v1544, 7
      %v1546 = vsub.s32 %v1505, %v1545
      %v1547 = vrot.slane %v1402, %v1546
      %v1548 = vlaneseq
      %v1549 = vshrl.u32 %v1548, 7
      %v1550 = vsub.s32 %v1510, %v1549
      %v1551 = vrot.slane %v1405, %v1550
      %v1552 = vsel %vm1515, %v1551, %v1547
      %v1553 = vlaneseq
      %v1554 = vshrl.u32 %v1553, 7
      %v1555 = vsub.s32 %v1505, %v1554
      %v1556 = vrot.slane %v1408, %v1555
      %v1557 = vlaneseq
      %v1558 = vshrl.u32 %v1557, 7
      %v1559 = vsub.s32 %v1510, %v1558
      %v1560 = vrot.slane %v1411, %v1559
      %v1561 = vsel %vm1515, %v1560, %v1556
      %v1562 = vlaneseq
      %v1563 = vshrl.u32 %v1562, 7
      %v1564 = vsub.s32 %v1505, %v1563
      %v1565 = vrot.slane %v1414, %v1564
      %v1566 = vlaneseq
      %v1567 = vshrl.u32 %v1566, 7
      %v1568 = vsub.s32 %v1510, %v1567
      %v1569 = vrot.slane %v1417, %v1568
      %v1570 = vsel %vm1515, %v1569, %v1565
      %v1571 = vlaneseq
      %v1572 = vshrl.u32 %v1571, 7
      %v1573 = vsub.s32 %v1505, %v1572
      %v1574 = vrot.slane %v1420, %v1573
      %v1575 = vlaneseq
      %v1576 = vshrl.u32 %v1575, 7
      %v1577 = vsub.s32 %v1510, %v1576
      %v1578 = vrot.slane %v1423, %v1577
      %v1579 = vsel %vm1515, %v1578, %v1574
      %v1580 = vlaneseq
      %v1581 = vshrl.u32 %v1580, 7
      %v1582 = vsub.s32 %v1505, %v1581
      %v1583 = vrot.slane %v1426, %v1582
      %v1584 = vlaneseq
      %v1585 = vshrl.u32 %v1584, 7
      %v1586 = vsub.s32 %v1510, %v1585
      %v1587 = vrot.slane %v1429, %v1586
      %v1588 = vsel %vm1515, %v1587, %v1583
      %v1589 = vlaneseq
      %v1590 = vshrl.u32 %v1589, 7
      %v1591 = vsub.s32 %v1505, %v1590
      %v1592 = vrot.slane %v1432, %v1591
      %v1593 = vlaneseq
      %v1594 = vshrl.u32 %v1593, 7
      %v1595 = vsub.s32 %v1510, %v1594
      %v1596 = vrot.slane %v1435, %v1595
      %v1597 = vsel %vm1515, %v1596, %v1592
      %v1598 = vlaneseq
      %v1599 = vshrl.u32 %v1598, 7
      %v1600 = vsub.s32 %v1505, %v1599
      %v1601 = vrot.slane %v1438, %v1600
      %v1602 = vlaneseq
      %v1603 = vshrl.u32 %v1602, 7
      %v1604 = vsub.s32 %v1510, %v1603
      %v1605 = vrot.slane %v1441, %v1604
      %v1606 = vsel %vm1515, %v1605, %v1601
      %v1607 = vlaneseq
      %v1608 = vshrl.u32 %v1607, 7
      %v1609 = vsub.s32 %v1505, %v1608
      %v1610 = vrot.slane %v1444, %v1609
      %v1611 = vlaneseq
      %v1612 = vshrl.u32 %v1611, 7
      %v1613 = vsub.s32 %v1510, %v1612
      %v1614 = vrot.slane %v1447, %v1613
      %v1615 = vsel %vm1515, %v1614, %v1610
      %v1616 = vlaneseq
      %v1617 = vshrl.u32 %v1616, 7
      %v1618 = vsub.s32 %v1505, %v1617
      %v1619 = vrot.slane %v1450, %v1618
      %v1620 = vlaneseq
      %v1621 = vshrl.u32 %v1620, 7
      %v1622 = vsub.s32 %v1510, %v1621
      %v1623 = vrot.slane %v1453, %v1622
      %v1624 = vsel %vm1515, %v1623, %v1619
      %v1625 = vlaneseq
      %v1626 = vshrl.u32 %v1625, 7
      %v1627 = vsub.s32 %v1505, %v1626
      %v1628 = vrot.slane %v1456, %v1627
      %v1629 = vlaneseq
      %v1630 = vshrl.u32 %v1629, 7
      %v1631 = vsub.s32 %v1510, %v1630
      %v1632 = vrot.slane %v1459, %v1631
      %v1633 = vsel %vm1515, %v1632, %v1628
      %v1634 = vlaneseq
      %v1635 = vshrl.u32 %v1634, 7
      %v1636 = vsub.s32 %v1505, %v1635
      %v1637 = vrot.slane %v1462, %v1636
      %v1638 = vlaneseq
      %v1639 = vshrl.u32 %v1638, 7
      %v1640 = vsub.s32 %v1510, %v1639
      %v1641 = vrot.slane %v1465, %v1640
      %v1642 = vsel %vm1515, %v1641, %v1637
      %v1643 = vlaneseq
      %v1644 = vshrl.u32 %v1643, 7
      %v1645 = vsub.s32 %v1505, %v1644
      %v1646 = vrot.slane %v1468, %v1645
      %v1647 = vlaneseq
      %v1648 = vshrl.u32 %v1647, 7
      %v1649 = vsub.s32 %v1510, %v1648
      %v1650 = vrot.slane %v1471, %v1649
      %v1651 = vsel %vm1515, %v1650, %v1646
      %vm1652 = vcmask 1041409
      %v1653 = vsel %vm1652, %v1525, %v1516
      %vm1654 = vcmask 1042434
      %v1655 = vsel %vm1654, %v1534, %v1653
      %vm1656 = vcmask 1043459
      %v1657 = vsel %vm1656, %v1543, %v1655
      %vm1658 = vcmask 1044484
      %v1659 = vsel %vm1658, %v1552, %v1657
      %vm1660 = vcmask 1045509
      %v1661 = vsel %vm1660, %v1561, %v1659
      %vm1662 = vcmask 1046534
      %v1663 = vsel %vm1662, %v1570, %v1661
      %vm1664 = vcmask 1047559
      %v1665 = vsel %vm1664, %v1579, %v1663
      %v1666 = vsel %vm1652, %v1597, %v1588
      %v1667 = vsel %vm1654, %v1606, %v1666
      %v1668 = vsel %vm1656, %v1615, %v1667
      %v1669 = vsel %vm1658, %v1624, %v1668
      %v1670 = vsel %vm1660, %v1633, %v1669
      %v1671 = vsel %vm1662, %v1642, %v1670
      %v1672 = vsel %vm1664, %v1651, %v1671
      %vm1675 = vcmask 130048
      %1676 = vst.msk [vmem:[#allocation3 + $0x3] sm:$0xff] %vm1675, %v1665
      %1677 = vst.msk [vmem:[#allocation3 + $0xb] sm:$0xff] %vm1675, %v1672
      %v1678 = vsel %vm1375, %v1340, 0.0
      %1679 = vadd.xlane.f32.xlu0 %v1678
      %v1680 = vpop.xlane.xlu0 %1679
      %v1681 = vsel %vm1375, %v1341, 0.0
      %1682 = vadd.xlane.f32.xlu0 %v1681
      %v1683 = vpop.xlane.xlu0 %1682
      %v1684 = vsel %vm1375, %v1342, 0.0
      %1685 = vadd.xlane.f32.xlu0 %v1684
      %v1686 = vpop.xlane.xlu0 %1685
      %v1687 = vsel %vm1375, %v1343, 0.0
      %1688 = vadd.xlane.f32.xlu0 %v1687
      %v1689 = vpop.xlane.xlu0 %1688
      %v1690 = vsel %vm1375, %v1344, 0.0
      %1691 = vadd.xlane.f32.xlu0 %v1690
      %v1692 = vpop.xlane.xlu0 %1691
      %v1693 = vsel %vm1375, %v1345, 0.0
      %1694 = vadd.xlane.f32.xlu0 %v1693
      %v1695 = vpop.xlane.xlu0 %1694
      %v1696 = vsel %vm1375, %v1346, 0.0
      %1697 = vadd.xlane.f32.xlu0 %v1696
      %v1698 = vpop.xlane.xlu0 %1697
      %v1699 = vsel %vm1375, %v1347, 0.0
      %1700 = vadd.xlane.f32.xlu0 %v1699
      %v1701 = vpop.xlane.xlu0 %1700
      %v1702 = vsel %vm1375, %v1348, 0.0
      %1703 = vadd.xlane.f32.xlu0 %v1702
      %v1704 = vpop.xlane.xlu0 %1703
      %v1705 = vsel %vm1375, %v1349, 0.0
      %1706 = vadd.xlane.f32.xlu0 %v1705
      %v1707 = vpop.xlane.xlu0 %1706
      %v1708 = vsel %vm1375, %v1350, 0.0
      %1709 = vadd.xlane.f32.xlu0 %v1708
      %v1710 = vpop.xlane.xlu0 %1709
      %v1711 = vsel %vm1375, %v1351, 0.0
      %1712 = vadd.xlane.f32.xlu0 %v1711
      %v1713 = vpop.xlane.xlu0 %1712
      %v1714 = vsel %vm1375, %v1352, 0.0
      %1715 = vadd.xlane.f32.xlu0 %v1714
      %v1716 = vpop.xlane.xlu0 %1715
      %v1717 = vsel %vm1375, %v1353, 0.0
      %1718 = vadd.xlane.f32.xlu0 %v1717
      %v1719 = vpop.xlane.xlu0 %1718
      %v1720 = vsel %vm1375, %v1354, 0.0
      %1721 = vadd.xlane.f32.xlu0 %v1720
      %v1722 = vpop.xlane.xlu0 %1721
      %v1723 = vsel %vm1375, %v1355, 0.0
      %1724 = vadd.xlane.f32.xlu0 %v1723
      %v1725 = vpop.xlane.xlu0 %1724
      %v1726 = vsel %vm1375, %v1356, 0.0
      %1727 = vadd.xlane.f32.xlu0 %v1726
      %v1728 = vpop.xlane.xlu0 %1727
      %v1729 = vsel %vm1375, %v1357, 0.0
      %1730 = vadd.xlane.f32.xlu0 %v1729
      %v1731 = vpop.xlane.xlu0 %1730
      %v1732 = vsel %vm1375, %v1358, 0.0
      %1733 = vadd.xlane.f32.xlu0 %v1732
      %v1734 = vpop.xlane.xlu0 %1733
      %v1735 = vsel %vm1375, %v1359, 0.0
      %1736 = vadd.xlane.f32.xlu0 %v1735
      %v1737 = vpop.xlane.xlu0 %1736
      %v1738 = vsel %vm1375, %v1360, 0.0
      %1739 = vadd.xlane.f32.xlu0 %v1738
      %v1740 = vpop.xlane.xlu0 %1739
      %v1741 = vsel %vm1375, %v1361, 0.0
      %1742 = vadd.xlane.f32.xlu0 %v1741
      %v1743 = vpop.xlane.xlu0 %1742
      %v1744 = vsel %vm1375, %v1362, 0.0
      %1745 = vadd.xlane.f32.xlu0 %v1744
      %v1746 = vpop.xlane.xlu0 %1745
      %v1747 = vsel %vm1375, %v1363, 0.0
      %1748 = vadd.xlane.f32.xlu0 %v1747
      %v1749 = vpop.xlane.xlu0 %1748
      %v1750 = vsel %vm1375, %v1364, 0.0
      %1751 = vadd.xlane.f32.xlu0 %v1750
      %v1752 = vpop.xlane.xlu0 %1751
      %v1753 = vsel %vm1375, %v1365, 0.0
      %1754 = vadd.xlane.f32.xlu0 %v1753
      %v1755 = vpop.xlane.xlu0 %1754
      %v1756 = vsel %vm1375, %v1366, 0.0
      %1757 = vadd.xlane.f32.xlu0 %v1756
      %v1758 = vpop.xlane.xlu0 %1757
      %v1759 = vsel %vm1375, %v1367, 0.0
      %1760 = vadd.xlane.f32.xlu0 %v1759
      %v1761 = vpop.xlane.xlu0 %1760
      %v1762 = vsel %vm1375, %v1368, 0.0
      %1763 = vadd.xlane.f32.xlu0 %v1762
      %v1764 = vpop.xlane.xlu0 %1763
      %v1765 = vsel %vm1375, %v1369, 0.0
      %1766 = vadd.xlane.f32.xlu0 %v1765
      %v1767 = vpop.xlane.xlu0 %1766
      %v1768 = vsel %vm1375, %v1370, 0.0
      %1769 = vadd.xlane.f32.xlu0 %v1768
      %v1770 = vpop.xlane.xlu0 %1769
      %v1771 = vsel %vm1375, %v1371, 0.0
      %1772 = vadd.xlane.f32.xlu0 %v1771
      %v1773 = vpop.xlane.xlu0 %1772
      %v1774 = vrcp.pop 8.0
      %v1775 = vmul.f32 %v1680, %v1774
      %v1776 = vmul.f32 %v1683, %v1774
      %v1777 = vmul.f32 %v1686, %v1774
      %v1778 = vmul.f32 %v1689, %v1774
      %v1779 = vmul.f32 %v1692, %v1774
      %v1780 = vmul.f32 %v1695, %v1774
      %v1781 = vmul.f32 %v1698, %v1774
      %v1782 = vmul.f32 %v1701, %v1774
      %v1783 = vmul.f32 %v1704, %v1774
      %v1784 = vmul.f32 %v1707, %v1774
      %v1785 = vmul.f32 %v1710, %v1774
      %v1786 = vmul.f32 %v1713, %v1774
      %v1787 = vmul.f32 %v1716, %v1774
      %v1788 = vmul.f32 %v1719, %v1774
      %v1789 = vmul.f32 %v1722, %v1774
      %v1790 = vmul.f32 %v1725, %v1774
      %v1791 = vmul.f32 %v1728, %v1774
      %v1792 = vmul.f32 %v1731, %v1774
      %v1793 = vmul.f32 %v1734, %v1774
      %v1794 = vmul.f32 %v1737, %v1774
      %v1795 = vmul.f32 %v1740, %v1774
      %v1796 = vmul.f32 %v1743, %v1774
      %v1797 = vmul.f32 %v1746, %v1774
      %v1798 = vmul.f32 %v1749, %v1774
      %v1799 = vmul.f32 %v1752, %v1774
      %v1800 = vmul.f32 %v1755, %v1774
      %v1801 = vmul.f32 %v1758, %v1774
      %v1802 = vmul.f32 %v1761, %v1774
      %v1803 = vmul.f32 %v1764, %v1774
      %v1804 = vmul.f32 %v1767, %v1774
      %v1805 = vmul.f32 %v1770, %v1774
      %v1806 = vmul.f32 %v1773, %v1774
      %v1839 = vadd.s32 %v1505, 4294967280
      %v1840 = vlaneseq
      %v1841 = vshrl.u32 %v1840, 7
      %v1842 = vsub.s32 %v1839, %v1841
      %v1843 = vrot.slane %v1775, %v1842
      %v1844 = vadd.s32 %v1505, 4294967272
      %v1845 = vlaneseq
      %v1846 = vshrl.u32 %v1845, 7
      %v1847 = vsub.s32 %v1844, %v1846
      %v1848 = vrot.slane %v1776, %v1847
      %vm1849 = vcmask 261312
      %v1850 = vsel %vm1849, %v1848, %v1843
      %v1851 = vlaneseq
      %v1852 = vshrl.u32 %v1851, 7
      %v1853 = vsub.s32 %v1839, %v1852
      %v1854 = vrot.slane %v1777, %v1853
      %v1855 = vlaneseq
      %v1856 = vshrl.u32 %v1855, 7
      %v1857 = vsub.s32 %v1844, %v1856
      %v1858 = vrot.slane %v1778, %v1857
      %v1859 = vsel %vm1849, %v1858, %v1854
      %v1860 = vlaneseq
      %v1861 = vshrl.u32 %v1860, 7
      %v1862 = vsub.s32 %v1839, %v1861
      %v1863 = vrot.slane %v1779, %v1862
      %v1864 = vlaneseq
      %v1865 = vshrl.u32 %v1864, 7
      %v1866 = vsub.s32 %v1844, %v1865
      %v1867 = vrot.slane %v1780, %v1866
      %v1868 = vsel %vm1849, %v1867, %v1863
      %v1869 = vlaneseq
      %v1870 = vshrl.u32 %v1869, 7
      %v1871 = vsub.s32 %v1839, %v1870
      %v1872 = vrot.slane %v1781, %v1871
      %v1873 = vlaneseq
      %v1874 = vshrl.u32 %v1873, 7
      %v1875 = vsub.s32 %v1844, %v1874
      %v1876 = vrot.slane %v1782, %v1875
      %v1877 = vsel %vm1849, %v1876, %v1872
      %v1878 = vlaneseq
      %v1879 = vshrl.u32 %v1878, 7
      %v1880 = vsub.s32 %v1839, %v1879
      %v1881 = vrot.slane %v1783, %v1880
      %v1882 = vlaneseq
      %v1883 = vshrl.u32 %v1882, 7
      %v1884 = vsub.s32 %v1844, %v1883
      %v1885 = vrot.slane %v1784, %v1884
      %v1886 = vsel %vm1849, %v1885, %v1881
      %v1887 = vlaneseq
      %v1888 = vshrl.u32 %v1887, 7
      %v1889 = vsub.s32 %v1839, %v1888
      %v1890 = vrot.slane %v1785, %v1889
      %v1891 = vlaneseq
      %v1892 = vshrl.u32 %v1891, 7
      %v1893 = vsub.s32 %v1844, %v1892
      %v1894 = vrot.slane %v1786, %v1893
      %v1895 = vsel %vm1849, %v1894, %v1890
      %v1896 = vlaneseq
      %v1897 = vshrl.u32 %v1896, 7
      %v1898 = vsub.s32 %v1839, %v1897
      %v1899 = vrot.slane %v1787, %v1898
      %v1900 = vlaneseq
      %v1901 = vshrl.u32 %v1900, 7
      %v1902 = vsub.s32 %v1844, %v1901
      %v1903 = vrot.slane %v1788, %v1902
      %v1904 = vsel %vm1849, %v1903, %v1899
      %v1905 = vlaneseq
      %v1906 = vshrl.u32 %v1905, 7
      %v1907 = vsub.s32 %v1839, %v1906
      %v1908 = vrot.slane %v1789, %v1907
      %v1909 = vlaneseq
      %v1910 = vshrl.u32 %v1909, 7
      %v1911 = vsub.s32 %v1844, %v1910
      %v1912 = vrot.slane %v1790, %v1911
      %v1913 = vsel %vm1849, %v1912, %v1908
      %v1914 = vlaneseq
      %v1915 = vshrl.u32 %v1914, 7
      %v1916 = vsub.s32 %v1839, %v1915
      %v1917 = vrot.slane %v1791, %v1916
      %v1918 = vlaneseq
      %v1919 = vshrl.u32 %v1918, 7
      %v1920 = vsub.s32 %v1844, %v1919
      %v1921 = vrot.slane %v1792, %v1920
      %v1922 = vsel %vm1849, %v1921, %v1917
      %v1923 = vlaneseq
      %v1924 = vshrl.u32 %v1923, 7
      %v1925 = vsub.s32 %v1839, %v1924
      %v1926 = vrot.slane %v1793, %v1925
      %v1927 = vlaneseq
      %v1928 = vshrl.u32 %v1927, 7
      %v1929 = vsub.s32 %v1844, %v1928
      %v1930 = vrot.slane %v1794, %v1929
      %v1931 = vsel %vm1849, %v1930, %v1926
      %v1932 = vlaneseq
      %v1933 = vshrl.u32 %v1932, 7
      %v1934 = vsub.s32 %v1839, %v1933
      %v1935 = vrot.slane %v1795, %v1934
      %v1936 = vlaneseq
      %v1937 = vshrl.u32 %v1936, 7
      %v1938 = vsub.s32 %v1844, %v1937
      %v1939 = vrot.slane %v1796, %v1938
      %v1940 = vsel %vm1849, %v1939, %v1935
      %v1941 = vlaneseq
      %v1942 = vshrl.u32 %v1941, 7
      %v1943 = vsub.s32 %v1839, %v1942
      %v1944 = vrot.slane %v1797, %v1943
      %v1945 = vlaneseq
      %v1946 = vshrl.u32 %v1945, 7
      %v1947 = vsub.s32 %v1844, %v1946
      %v1948 = vrot.slane %v1798, %v1947
      %v1949 = vsel %vm1849, %v1948, %v1944
      %v1950 = vlaneseq
      %v1951 = vshrl.u32 %v1950, 7
      %v1952 = vsub.s32 %v1839, %v1951
      %v1953 = vrot.slane %v1799, %v1952
      %v1954 = vlaneseq
      %v1955 = vshrl.u32 %v1954, 7
      %v1956 = vsub.s32 %v1844, %v1955
      %v1957 = vrot.slane %v1800, %v1956
      %v1958 = vsel %vm1849, %v1957, %v1953
      %v1959 = vlaneseq
      %v1960 = vshrl.u32 %v1959, 7
      %v1961 = vsub.s32 %v1839, %v1960
      %v1962 = vrot.slane %v1801, %v1961
      %v1963 = vlaneseq
      %v1964 = vshrl.u32 %v1963, 7
      %v1965 = vsub.s32 %v1844, %v1964
      %v1966 = vrot.slane %v1802, %v1965
      %v1967 = vsel %vm1849, %v1966, %v1962
      %v1968 = vlaneseq
      %v1969 = vshrl.u32 %v1968, 7
      %v1970 = vsub.s32 %v1839, %v1969
      %v1971 = vrot.slane %v1803, %v1970
      %v1972 = vlaneseq
      %v1973 = vshrl.u32 %v1972, 7
      %v1974 = vsub.s32 %v1844, %v1973
      %v1975 = vrot.slane %v1804, %v1974
      %v1976 = vsel %vm1849, %v1975, %v1971
      %v1977 = vlaneseq
      %v1978 = vshrl.u32 %v1977, 7
      %v1979 = vsub.s32 %v1839, %v1978
      %v1980 = vrot.slane %v1805, %v1979
      %v1981 = vlaneseq
      %v1982 = vshrl.u32 %v1981, 7
      %v1983 = vsub.s32 %v1844, %v1982
      %v1984 = vrot.slane %v1806, %v1983
      %v1985 = vsel %vm1849, %v1984, %v1980
      %v1986 = vsel %vm1652, %v1859, %v1850
      %v1987 = vsel %vm1654, %v1868, %v1986
      %v1988 = vsel %vm1656, %v1877, %v1987
      %v1989 = vsel %vm1658, %v1886, %v1988
      %v1990 = vsel %vm1660, %v1895, %v1989
      %v1991 = vsel %vm1662, %v1904, %v1990
      %v1992 = vsel %vm1664, %v1913, %v1991
      %v1993 = vsel %vm1652, %v1931, %v1922
      %v1994 = vsel %vm1654, %v1940, %v1993
      %v1995 = vsel %vm1656, %v1949, %v1994
      %v1996 = vsel %vm1658, %v1958, %v1995
      %v1997 = vsel %vm1660, %v1967, %v1996
      %v1998 = vsel %vm1662, %v1976, %v1997
      %v1999 = vsel %vm1664, %v1985, %v1998
      %vm2002 = vcmask 261248
      %2003 = vst.msk [vmem:[#allocation3 + $0x3] sm:$0xff] %vm2002, %v1992
      %2004 = vst.msk [vmem:[#allocation3 + $0xb] sm:$0xff] %vm2002, %v1999
      %v2005 = vld [vmem:[#allocation3] sm:$0xff]
      %v2006 = vld [vmem:[#allocation3 + $0x8] sm:$0xff]
      %v2007 = vpack.c.bf16 %v2006, %v2005
      %v2008 = vld [vmem:[%s6] sm:$0xf]
      %v2009 = vld [vmem:[%s6 + $0x4] sm:$0xf]
      %v2010 = vld [vmem:[%s6 + $0x8] sm:$0xf]
      %v2011 = vld [vmem:[%s6 + $0xc] sm:$0xf]
      %v2012 = vld [vmem:[#allocation3 + $0x1] sm:$0xff]
      %v2013 = vld [vmem:[#allocation3 + $0x9] sm:$0xff]
      %v2014 = vpack.c.bf16 %v2013, %v2012
      %s2015 = scalar_lea.vmem %s6, 16
      %v2016 = vld [vmem:[%s2015] sm:$0xf]
      %v2017 = vld [vmem:[%s2015 + $0x4] sm:$0xf]
      %v2018 = vld [vmem:[%s2015 + $0x8] sm:$0xf]
      %v2019 = vld [vmem:[%s2015 + $0xc] sm:$0xf]
      %v2024 = vunpack.c.l.b16 %v2016
      %v2025 = vunpack.c.l.b16 %v2017
      %v2026 = vunpack.c.l.b16 %v2018
      %v2027 = vunpack.c.l.b16 %v2019
      %v2028 = vpack.c.b16 %v2025, %v2024
      %v2029 = vpack.c.b16 %v2027, %v2026
      %vm2032 = vcmask 261120
      %v2034 = vsel %vm2032, %v2014, 0
      %2036 = vmatprep.subr.bf16.mxu0 0
      %2037 = vmatpush1.bf16.msra.mxu0 %v2028
      %2038 = vmatprep.subr.bf16.mxu0 0
      %2039 = vmatpush1.bf16.msra.mxu0 %v2029
      %2040 = vmatprep.subr.bf16.mxu0 0
      %2041 = vmatpush1.bf16.msra.mxu0 0
      %2042 = vmatprep.subr.bf16.mxu0 0
      %2043 = vmatpush1.bf16.msra.mxu0 0
      %2044 = vmatprep.subr.bf16.mxu0 0
      %2045 = vmatpush1.bf16.msra.mxu0 0
      %2046 = vmatprep.subr.bf16.mxu0 0
      %2047 = vmatpush1.bf16.msra.mxu0 0
      %2048 = vmatprep.subr.bf16.mxu0 0
      %2049 = vmatpush1.bf16.msra.mxu0 0
      %2050 = vmatprep.subr.bf16.mxu0 0
      %2051 = vmatpush1.bf16.msra.mxu0 0
      %2052 = vmatprep.subr.bf16.mxu0 0
      %2053 = vmatpush1.bf16.msra.mxu0 0
      %2054 = vmatprep.subr.bf16.mxu0 0
      %2055 = vmatpush1.bf16.msra.mxu0 0
      %2056 = vmatprep.subr.bf16.mxu0 0
      %2057 = vmatpush1.bf16.msra.mxu0 0
      %2058 = vmatprep.subr.bf16.mxu0 0
      %2059 = vmatpush1.bf16.msra.mxu0 0
      %2060 = vmatprep.subr.bf16.mxu0 0
      %2061 = vmatpush1.bf16.msra.mxu0 0
      %2062 = vmatprep.subr.bf16.mxu0 0
      %2063 = vmatpush1.bf16.msra.mxu0 0
      %2064 = vmatprep.subr.bf16.mxu0 0
      %2065 = vmatpush1.bf16.msra.mxu0 0
      %2066 = vmatprep.subr.bf16.mxu0 0
      %2067 = vmatpush1.bf16.msra.mxu0 0
      %2068 = vmatprep.mubr.bf16.mxu0 0
      %2069 = vmatmul.mubr.bf16.gmra.mrb[0].mxu0 %v2034
      %v2070 = vpop.f32.mrb[0].mxu0
      %v2071 = vadd.f32 0.0, %v2070
      %v2072 = vpop.f32.mrb[0].mxu0
      %v2073 = vpop.f32.mrb[0].mxu0
      %v2074 = vadd.f32 0.0, %v2073
      %v2075 = vpop.f32.mrb[0].mxu0
      %2076 = vdwg.mxu0
      %v2081 = vunpack.c.l.b16 %v2008
      %v2082 = vunpack.c.l.b16 %v2009
      %v2083 = vunpack.c.l.b16 %v2010
      %v2084 = vunpack.c.l.b16 %v2011
      %v2085 = vpack.c.b16 %v2082, %v2081
      %v2086 = vpack.c.b16 %v2084, %v2083
      %v2090 = vsel %vm2032, %v2007, 0
      %2092 = vmatprep.subr.bf16.mxu0 0
      %2093 = vmatpush1.bf16.msra.mxu0 %v2085
      %2094 = vmatprep.subr.bf16.mxu0 0
      %2095 = vmatpush1.bf16.msra.mxu0 %v2086
      %2096 = vmatprep.subr.bf16.mxu0 0
      %2097 = vmatpush1.bf16.msra.mxu0 0
      %2098 = vmatprep.subr.bf16.mxu0 0
      %2099 = vmatpush1.bf16.msra.mxu0 0
      %2100 = vmatprep.subr.bf16.mxu0 0
      %2101 = vmatpush1.bf16.msra.mxu0 0
      %2102 = vmatprep.subr.bf16.mxu0 0
      %2103 = vmatpush1.bf16.msra.mxu0 0
      %2104 = vmatprep.subr.bf16.mxu0 0
      %2105 = vmatpush1.bf16.msra.mxu0 0
      %2106 = vmatprep.subr.bf16.mxu0 0
      %2107 = vmatpush1.bf16.msra.mxu0 0
      %2108 = vmatprep.subr.bf16.mxu0 0
      %2109 = vmatpush1.bf16.msra.mxu0 0
      %2110 = vmatprep.subr.bf16.mxu0 0
      %2111 = vmatpush1.bf16.msra.mxu0 0
      %2112 = vmatprep.subr.bf16.mxu0 0
      %2113 = vmatpush1.bf16.msra.mxu0 0
      %2114 = vmatprep.subr.bf16.mxu0 0
      %2115 = vmatpush1.bf16.msra.mxu0 0
      %2116 = vmatprep.subr.bf16.mxu0 0
      %2117 = vmatpush1.bf16.msra.mxu0 0
      %2118 = vmatprep.subr.bf16.mxu0 0
      %2119 = vmatpush1.bf16.msra.mxu0 0
      %2120 = vmatprep.subr.bf16.mxu0 0
      %2121 = vmatpush1.bf16.msra.mxu0 0
      %2122 = vmatprep.subr.bf16.mxu0 0
      %2123 = vmatpush1.bf16.msra.mxu0 0
      %2124 = vmatprep.mubr.bf16.mxu0 0
      %2125 = vmatmul.mubr.bf16.gmra.mrb[0].mxu0 %v2090
      %v2126 = vpop.f32.mrb[0].mxu0
      %v2127 = vadd.f32 %v2071, %v2126
      %v2128 = vpop.f32.mrb[0].mxu0
      %v2129 = vpop.f32.mrb[0].mxu0
      %v2130 = vadd.f32 %v2074, %v2129
      %v2131 = vpop.f32.mrb[0].mxu0
      %2132 = vdwg.mxu0
      %v2133 = vld [vmem:[#allocation3 + $0x2] sm:$0xff]
      %v2134 = vld [vmem:[#allocation3 + $0xa] sm:$0xff]
      %v2135 = vpack.c.bf16 %v2134, %v2133
      %s2136 = scalar_lea.vmem %s6, 32
      %v2137 = vld [vmem:[%s2136] sm:$0xf]
      %v2138 = vld [vmem:[%s2136 + $0x4] sm:$0xf]
      %v2139 = vld [vmem:[%s2136 + $0x8] sm:$0xf]
      %v2140 = vld [vmem:[%s2136 + $0xc] sm:$0xf]
      %v2145 = vunpack.c.l.b16 %v2137
      %v2146 = vunpack.c.l.b16 %v2138
      %v2147 = vunpack.c.l.b16 %v2139
      %v2148 = vunpack.c.l.b16 %v2140
      %v2149 = vpack.c.b16 %v2146, %v2145
      %v2150 = vpack.c.b16 %v2148, %v2147
      %v2154 = vsel %vm2032, %v2135, 0
      %2156 = vmatprep.subr.bf16.mxu0 0
      %2157 = vmatpush1.bf16.msra.mxu0 %v2149
      %2158 = vmatprep.subr.bf16.mxu0 0
      %2159 = vmatpush1.bf16.msra.mxu0 %v2150
      %2160 = vmatprep.subr.bf16.mxu0 0
      %2161 = vmatpush1.bf16.msra.mxu0 0
      %2162 = vmatprep.subr.bf16.mxu0 0
      %2163 = vmatpush1.bf16.msra.mxu0 0
      %2164 = vmatprep.subr.bf16.mxu0 0
      %2165 = vmatpush1.bf16.msra.mxu0 0
      %2166 = vmatprep.subr.bf16.mxu0 0
      %2167 = vmatpush1.bf16.msra.mxu0 0
      %2168 = vmatprep.subr.bf16.mxu0 0
      %2169 = vmatpush1.bf16.msra.mxu0 0
      %2170 = vmatprep.subr.bf16.mxu0 0
      %2171 = vmatpush1.bf16.msra.mxu0 0
      %2172 = vmatprep.subr.bf16.mxu0 0
      %2173 = vmatpush1.bf16.msra.mxu0 0
      %2174 = vmatprep.subr.bf16.mxu0 0
      %2175 = vmatpush1.bf16.msra.mxu0 0
      %2176 = vmatprep.subr.bf16.mxu0 0
      %2177 = vmatpush1.bf16.msra.mxu0 0
      %2178 = vmatprep.subr.bf16.mxu0 0
      %2179 = vmatpush1.bf16.msra.mxu0 0
      %2180 = vmatprep.subr.bf16.mxu0 0
      %2181 = vmatpush1.bf16.msra.mxu0 0
      %2182 = vmatprep.subr.bf16.mxu0 0
      %2183 = vmatpush1.bf16.msra.mxu0 0
      %2184 = vmatprep.subr.bf16.mxu0 0
      %2185 = vmatpush1.bf16.msra.mxu0 0
      %2186 = vmatprep.subr.bf16.mxu0 0
      %2187 = vmatpush1.bf16.msra.mxu0 0
      %2188 = vmatprep.mubr.bf16.mxu0 0
      %2189 = vmatmul.mubr.bf16.gmra.mrb[0].mxu0 %v2154
      %v2190 = vpop.f32.mrb[0].mxu0
      %v2191 = vadd.f32 0.0, %v2190
      %v2192 = vpop.f32.mrb[0].mxu0
      %v2193 = vpop.f32.mrb[0].mxu0
      %v2194 = vadd.f32 0.0, %v2193
      %v2195 = vpop.f32.mrb[0].mxu0
      %2196 = vdwg.mxu0
      %v2197 = vadd.f32 %v2127, %v2191
      %v2198 = vadd.f32 %v2130, %v2194
      %v2199 = vld [vmem:[#allocation3 + $0x3] sm:$0xff]
      %v2200 = vld [vmem:[#allocation3 + $0xb] sm:$0xff]
      %v2201 = vpack.c.bf16 %v2200, %v2199
      %s2202 = scalar_lea.vmem %s6, 48
      %v2203 = vld [vmem:[%s2202] sm:$0xf]
      %v2204 = vld [vmem:[%s2202 + $0x4] sm:$0xf]
      %v2205 = vld [vmem:[%s2202 + $0x8] sm:$0xf]
      %v2206 = vld [vmem:[%s2202 + $0xc] sm:$0xf]
      %v2211 = vunpack.c.l.b16 %v2203
      %v2212 = vunpack.c.l.b16 %v2204
      %v2213 = vunpack.c.l.b16 %v2205
      %v2214 = vunpack.c.l.b16 %v2206
      %v2215 = vpack.c.b16 %v2212, %v2211
      %v2216 = vpack.c.b16 %v2214, %v2213
      %v2220 = vsel %vm2032, %v2201, 0
      %2222 = vmatprep.subr.bf16.mxu0 0
      %2223 = vmatpush1.bf16.msra.mxu0 %v2215
      %2224 = vmatprep.subr.bf16.mxu0 0
      %2225 = vmatpush1.bf16.msra.mxu0 %v2216
      %2226 = vmatprep.subr.bf16.mxu0 0
      %2227 = vmatpush1.bf16.msra.mxu0 0
      %2228 = vmatprep.subr.bf16.mxu0 0
      %2229 = vmatpush1.bf16.msra.mxu0 0
      %2230 = vmatprep.subr.bf16.mxu0 0
      %2231 = vmatpush1.bf16.msra.mxu0 0
      %2232 = vmatprep.subr.bf16.mxu0 0
      %2233 = vmatpush1.bf16.msra.mxu0 0
      %2234 = vmatprep.subr.bf16.mxu0 0
      %2235 = vmatpush1.bf16.msra.mxu0 0
      %2236 = vmatprep.subr.bf16.mxu0 0
      %2237 = vmatpush1.bf16.msra.mxu0 0
      %2238 = vmatprep.subr.bf16.mxu0 0
      %2239 = vmatpush1.bf16.msra.mxu0 0
      %2240 = vmatprep.subr.bf16.mxu0 0
      %2241 = vmatpush1.bf16.msra.mxu0 0
      %2242 = vmatprep.subr.bf16.mxu0 0
      %2243 = vmatpush1.bf16.msra.mxu0 0
      %2244 = vmatprep.subr.bf16.mxu0 0
      %2245 = vmatpush1.bf16.msra.mxu0 0
      %2246 = vmatprep.subr.bf16.mxu0 0
      %2247 = vmatpush1.bf16.msra.mxu0 0
      %2248 = vmatprep.subr.bf16.mxu0 0
      %2249 = vmatpush1.bf16.msra.mxu0 0
      %2250 = vmatprep.subr.bf16.mxu0 0
      %2251 = vmatpush1.bf16.msra.mxu0 0
      %2252 = vmatprep.subr.bf16.mxu0 0
      %2253 = vmatpush1.bf16.msra.mxu0 0
      %2254 = vmatprep.mubr.bf16.mxu0 0
      %2255 = vmatmul.mubr.bf16.gmra.mrb[0].mxu0 %v2220
      %v2256 = vpop.f32.mrb[0].mxu0
      %v2257 = vadd.f32 0.0, %v2256
      %v2258 = vpop.f32.mrb[0].mxu0
      %v2259 = vpop.f32.mrb[0].mxu0
      %v2260 = vadd.f32 0.0, %v2259
      %v2261 = vpop.f32.mrb[0].mxu0
      %2262 = vdwg.mxu0
      %v2263 = vadd.f32 %v2197, %v2257
      %v2264 = vadd.f32 %v2198, %v2260
      %v2265 = vld [vmem:[#allocation3 + $0x4] sm:$0xff]
      %v2266 = vld [vmem:[#allocation3 + $0xc] sm:$0xff]
      %v2267 = vpack.c.bf16 %v2266, %v2265
      %s2268 = scalar_lea.vmem %s6, 64
      %v2269 = vld [vmem:[%s2268] sm:$0xf]
      %v2270 = vld [vmem:[%s2268 + $0x4] sm:$0xf]
      %v2271 = vld [vmem:[%s2268 + $0x8] sm:$0xf]
      %v2272 = vld [vmem:[%s2268 + $0xc] sm:$0xf]
      %v2277 = vunpack.c.l.b16 %v2269
      %v2278 = vunpack.c.l.b16 %v2270
      %v2279 = vunpack.c.l.b16 %v2271
      %v2280 = vunpack.c.l.b16 %v2272
      %v2281 = vpack.c.b16 %v2278, %v2277
      %v2282 = vpack.c.b16 %v2280, %v2279
      %v2286 = vsel %vm2032, %v2267, 0
      %2288 = vmatprep.subr.bf16.mxu0 0
      %2289 = vmatpush1.bf16.msra.mxu0 %v2281
      %2290 = vmatprep.subr.bf16.mxu0 0
      %2291 = vmatpush1.bf16.msra.mxu0 %v2282
      %2292 = vmatprep.subr.bf16.mxu0 0
      %2293 = vmatpush1.bf16.msra.mxu0 0
      %2294 = vmatprep.subr.bf16.mxu0 0
      %2295 = vmatpush1.bf16.msra.mxu0 0
      %2296 = vmatprep.subr.bf16.mxu0 0
      %2297 = vmatpush1.bf16.msra.mxu0 0
      %2298 = vmatprep.subr.bf16.mxu0 0
      %2299 = vmatpush1.bf16.msra.mxu0 0
      %2300 = vmatprep.subr.bf16.mxu0 0
      %2301 = vmatpush1.bf16.msra.mxu0 0
      %2302 = vmatprep.subr.bf16.mxu0 0
      %2303 = vmatpush1.bf16.msra.mxu0 0
      %2304 = vmatprep.subr.bf16.mxu0 0
      %2305 = vmatpush1.bf16.msra.mxu0 0
      %2306 = vmatprep.subr.bf16.mxu0 0
      %2307 = vmatpush1.bf16.msra.mxu0 0
      %2308 = vmatprep.subr.bf16.mxu0 0
      %2309 = vmatpush1.bf16.msra.mxu0 0
      %2310 = vmatprep.subr.bf16.mxu0 0
      %2311 = vmatpush1.bf16.msra.mxu0 0
      %2312 = vmatprep.subr.bf16.mxu0 0
      %2313 = vmatpush1.bf16.msra.mxu0 0
      %2314 = vmatprep.subr.bf16.mxu0 0
      %2315 = vmatpush1.bf16.msra.mxu0 0
      %2316 = vmatprep.subr.bf16.mxu0 0
      %2317 = vmatpush1.bf16.msra.mxu0 0
      %2318 = vmatprep.subr.bf16.mxu0 0
      %2319 = vmatpush1.bf16.msra.mxu0 0
      %2320 = vmatprep.mubr.bf16.mxu0 0
      %2321 = vmatmul.mubr.bf16.gmra.mrb[0].mxu0 %v2286
      %v2322 = vpop.f32.mrb[0].mxu0
      %v2323 = vadd.f32 0.0, %v2322
      %v2324 = vpop.f32.mrb[0].mxu0
      %v2325 = vpop.f32.mrb[0].mxu0
      %v2326 = vadd.f32 0.0, %v2325
      %v2327 = vpop.f32.mrb[0].mxu0
      %2328 = vdwg.mxu0
      %v2329 = vadd.f32 %v2263, %v2323
      %v2330 = vadd.f32 %v2264, %v2326
      %v2331 = vld [vmem:[#allocation3 + $0x5] sm:$0xff]
      %v2332 = vld [vmem:[#allocation3 + $0xd] sm:$0xff]
      %v2333 = vpack.c.bf16 %v2332, %v2331
      %s2334 = scalar_lea.vmem %s6, 80
      %v2335 = vld [vmem:[%s2334] sm:$0xf]
      %v2336 = vld [vmem:[%s2334 + $0x4] sm:$0xf]
      %v2337 = vld [vmem:[%s2334 + $0x8] sm:$0xf]
      %v2338 = vld [vmem:[%s2334 + $0xc] sm:$0xf]
      %v2343 = vunpack.c.l.b16 %v2335
      %v2344 = vunpack.c.l.b16 %v2336
      %v2345 = vunpack.c.l.b16 %v2337
      %v2346 = vunpack.c.l.b16 %v2338
      %v2347 = vpack.c.b16 %v2344, %v2343
      %v2348 = vpack.c.b16 %v2346, %v2345
      %v2352 = vsel %vm2032, %v2333, 0
      %2354 = vmatprep.subr.bf16.mxu0 0
      %2355 = vmatpush1.bf16.msra.mxu0 %v2347
      %2356 = vmatprep.subr.bf16.mxu0 0
      %2357 = vmatpush1.bf16.msra.mxu0 %v2348
      %2358 = vmatprep.subr.bf16.mxu0 0
      %2359 = vmatpush1.bf16.msra.mxu0 0
      %2360 = vmatprep.subr.bf16.mxu0 0
      %2361 = vmatpush1.bf16.msra.mxu0 0
      %2362 = vmatprep.subr.bf16.mxu0 0
      %2363 = vmatpush1.bf16.msra.mxu0 0
      %2364 = vmatprep.subr.bf16.mxu0 0
      %2365 = vmatpush1.bf16.msra.mxu0 0
      %2366 = vmatprep.subr.bf16.mxu0 0
      %2367 = vmatpush1.bf16.msra.mxu0 0
      %2368 = vmatprep.subr.bf16.mxu0 0
      %2369 = vmatpush1.bf16.msra.mxu0 0
      %2370 = vmatprep.subr.bf16.mxu0 0
      %2371 = vmatpush1.bf16.msra.mxu0 0
      %2372 = vmatprep.subr.bf16.mxu0 0
      %2373 = vmatpush1.bf16.msra.mxu0 0
      %2374 = vmatprep.subr.bf16.mxu0 0
      %2375 = vmatpush1.bf16.msra.mxu0 0
      %2376 = vmatprep.subr.bf16.mxu0 0
      %2377 = vmatpush1.bf16.msra.mxu0 0
      %2378 = vmatprep.subr.bf16.mxu0 0
      %2379 = vmatpush1.bf16.msra.mxu0 0
      %2380 = vmatprep.subr.bf16.mxu0 0
      %2381 = vmatpush1.bf16.msra.mxu0 0
      %2382 = vmatprep.subr.bf16.mxu0 0
      %2383 = vmatpush1.bf16.msra.mxu0 0
      %2384 = vmatprep.subr.bf16.mxu0 0
      %2385 = vmatpush1.bf16.msra.mxu0 0
      %2386 = vmatprep.mubr.bf16.mxu0 0
      %2387 = vmatmul.mubr.bf16.gmra.mrb[0].mxu0 %v2352
      %v2388 = vpop.f32.mrb[0].mxu0
      %v2389 = vadd.f32 0.0, %v2388
      %v2390 = vpop.f32.mrb[0].mxu0
      %v2391 = vpop.f32.mrb[0].mxu0
      %v2392 = vadd.f32 0.0, %v2391
      %v2393 = vpop.f32.mrb[0].mxu0
      %2394 = vdwg.mxu0
      %v2395 = vadd.f32 %v2329, %v2389
      %v2396 = vadd.f32 %v2330, %v2392
      %v2397 = vld [vmem:[#allocation3 + $0x6] sm:$0xff]
      %v2398 = vld [vmem:[#allocation3 + $0xe] sm:$0xff]
      %v2399 = vpack.c.bf16 %v2398, %v2397
      %s2400 = scalar_lea.vmem %s6, 96
      %v2401 = vld [vmem:[%s2400] sm:$0xf]
      %v2402 = vld [vmem:[%s2400 + $0x4] sm:$0xf]
      %v2403 = vld [vmem:[%s2400 + $0x8] sm:$0xf]
      %v2404 = vld [vmem:[%s2400 + $0xc] sm:$0xf]
      %v2409 = vunpack.c.l.b16 %v2401
      %v2410 = vunpack.c.l.b16 %v2402
      %v2411 = vunpack.c.l.b16 %v2403
      %v2412 = vunpack.c.l.b16 %v2404
      %v2413 = vpack.c.b16 %v2410, %v2409
      %v2414 = vpack.c.b16 %v2412, %v2411
      %v2418 = vsel %vm2032, %v2399, 0
      %2420 = vmatprep.subr.bf16.mxu0 0
      %2421 = vmatpush1.bf16.msra.mxu0 %v2413
      %2422 = vmatprep.subr.bf16.mxu0 0
      %2423 = vmatpush1.bf16.msra.mxu0 %v2414
      %2424 = vmatprep.subr.bf16.mxu0 0
      %2425 = vmatpush1.bf16.msra.mxu0 0
      %2426 = vmatprep.subr.bf16.mxu0 0
      %2427 = vmatpush1.bf16.msra.mxu0 0
      %2428 = vmatprep.subr.bf16.mxu0 0
      %2429 = vmatpush1.bf16.msra.mxu0 0
      %2430 = vmatprep.subr.bf16.mxu0 0
      %2431 = vmatpush1.bf16.msra.mxu0 0
      %2432 = vmatprep.subr.bf16.mxu0 0
      %2433 = vmatpush1.bf16.msra.mxu0 0
      %2434 = vmatprep.subr.bf16.mxu0 0
      %2435 = vmatpush1.bf16.msra.mxu0 0
      %2436 = vmatprep.subr.bf16.mxu0 0
      %2437 = vmatpush1.bf16.msra.mxu0 0
      %2438 = vmatprep.subr.bf16.mxu0 0
      %2439 = vmatpush1.bf16.msra.mxu0 0
      %2440 = vmatprep.subr.bf16.mxu0 0
      %2441 = vmatpush1.bf16.msra.mxu0 0
      %2442 = vmatprep.subr.bf16.mxu0 0
      %2443 = vmatpush1.bf16.msra.mxu0 0
      %2444 = vmatprep.subr.bf16.mxu0 0
      %2445 = vmatpush1.bf16.msra.mxu0 0
      %2446 = vmatprep.subr.bf16.mxu0 0
      %2447 = vmatpush1.bf16.msra.mxu0 0
      %2448 = vmatprep.subr.bf16.mxu0 0
      %2449 = vmatpush1.bf16.msra.mxu0 0
      %2450 = vmatprep.subr.bf16.mxu0 0
      %2451 = vmatpush1.bf16.msra.mxu0 0
      %2452 = vmatprep.mubr.bf16.mxu0 0
      %2453 = vmatmul.mubr.bf16.gmra.mrb[0].mxu0 %v2418
      %v2454 = vpop.f32.mrb[0].mxu0
      %v2455 = vadd.f32 0.0, %v2454
      %v2456 = vpop.f32.mrb[0].mxu0
      %v2457 = vpop.f32.mrb[0].mxu0
      %v2458 = vadd.f32 0.0, %v2457
      %v2459 = vpop.f32.mrb[0].mxu0
      %2460 = vdwg.mxu0
      %v2461 = vadd.f32 %v2395, %v2455
      %v2462 = vadd.f32 %v2396, %v2458
      %v2463 = vld [vmem:[%s470] sm:$0xff]
      %v2464 = vld [vmem:[%s470 + $0x8] sm:$0xff]
      %v2465 = vadd.f32 %v2463, %v2464
      %v2466 = vrot.slane %v2465, 4
      %v2467 = vadd.f32 %v2465, %v2466
      %v2468 = vrot.slane %v2467, 2
      %v2469 = vadd.f32 %v2467, %v2468
      %v2470 = vrot.slane %v2469, 1
      %v2471 = vadd.f32 %v2469, %v2470
      %v2472 = vpack.c.bf16 %v2471, %v2471
      %v2473 = vld [vmem:[%s7] sm:$0xf]
      %v2474 = vld [vmem:[%s7 + $0x4] sm:$0xf]
      %v2475 = vld [vmem:[%s7 + $0x8] sm:$0xf]
      %v2476 = vld [vmem:[%s7 + $0xc] sm:$0xf]
      %v2477 = vld [vmem:[%s7 + $0x10] sm:$0xf]
      %v2478 = vld [vmem:[%s7 + $0x14] sm:$0xf]
      %v2479 = vld [vmem:[%s7 + $0x18] sm:$0xf]
      %v2480 = vld [vmem:[%s7 + $0x1c] sm:$0xf]
      %v2481 = vld [vmem:[%s7 + $0x20] sm:$0xf]
      %v2482 = vld [vmem:[%s7 + $0x24] sm:$0xf]
      %v2483 = vld [vmem:[%s7 + $0x28] sm:$0xf]
      %v2484 = vld [vmem:[%s7 + $0x2c] sm:$0xf]
      %v2485 = vld [vmem:[%s7 + $0x30] sm:$0xf]
      %v2486 = vld [vmem:[%s7 + $0x34] sm:$0xf]
      %v2487 = vld [vmem:[%s7 + $0x38] sm:$0xf]
      %v2488 = vld [vmem:[%s7 + $0x3c] sm:$0xf]
      %v2489 = vld [vmem:[%s8] sm:$0x1]
      %v2506 = vunpack.c.l.b16 %v2473
      %v2507 = vunpack.c.l.b16 %v2474
      %v2508 = vunpack.c.l.b16 %v2475
      %v2509 = vunpack.c.l.b16 %v2476
      %v2510 = vunpack.c.l.b16 %v2477
      %v2511 = vunpack.c.l.b16 %v2478
      %v2512 = vunpack.c.l.b16 %v2479
      %v2513 = vunpack.c.l.b16 %v2480
      %v2514 = vunpack.c.l.b16 %v2481
      %v2515 = vunpack.c.l.b16 %v2482
      %v2516 = vunpack.c.l.b16 %v2483
      %v2517 = vunpack.c.l.b16 %v2484
      %v2518 = vunpack.c.l.b16 %v2485
      %v2519 = vunpack.c.l.b16 %v2486
      %v2520 = vunpack.c.l.b16 %v2487
      %v2521 = vunpack.c.l.b16 %v2488
      %v2522 = vpack.c.b16 %v2507, %v2506
      %v2523 = vpack.c.b16 %v2509, %v2508
      %v2524 = vpack.c.b16 %v2511, %v2510
      %v2525 = vpack.c.b16 %v2513, %v2512
      %v2526 = vpack.c.b16 %v2515, %v2514
      %v2527 = vpack.c.b16 %v2517, %v2516
      %v2528 = vpack.c.b16 %v2519, %v2518
      %v2529 = vpack.c.b16 %v2521, %v2520
      %2538 = vmatprep.subr.bf16.mxu0 0
      %2539 = vmatpush1.bf16.msra.mxu0 %v2522
      %2540 = vmatprep.subr.bf16.mxu0 0
      %2541 = vmatpush1.bf16.msra.mxu0 %v2523
      %2542 = vmatprep.subr.bf16.mxu0 0
      %2543 = vmatpush1.bf16.msra.mxu0 %v2524
      %2544 = vmatprep.subr.bf16.mxu0 0
      %2545 = vmatpush1.bf16.msra.mxu0 %v2525
      %2546 = vmatprep.subr.bf16.mxu0 0
      %2547 = vmatpush1.bf16.msra.mxu0 %v2526
      %2548 = vmatprep.subr.bf16.mxu0 0
      %2549 = vmatpush1.bf16.msra.mxu0 %v2527
      %2550 = vmatprep.subr.bf16.mxu0 0
      %2551 = vmatpush1.bf16.msra.mxu0 %v2528
      %2552 = vmatprep.subr.bf16.mxu0 0
      %2553 = vmatpush1.bf16.msra.mxu0 %v2529
      %2554 = vmatprep.subr.bf16.mxu0 0
      %2555 = vmatpush1.bf16.msra.mxu0 0
      %2556 = vmatprep.subr.bf16.mxu0 0
      %2557 = vmatpush1.bf16.msra.mxu0 0
      %2558 = vmatprep.subr.bf16.mxu0 0
      %2559 = vmatpush1.bf16.msra.mxu0 0
      %2560 = vmatprep.subr.bf16.mxu0 0
      %2561 = vmatpush1.bf16.msra.mxu0 0
      %2562 = vmatprep.subr.bf16.mxu0 0
      %2563 = vmatpush1.bf16.msra.mxu0 0
      %2564 = vmatprep.subr.bf16.mxu0 0
      %2565 = vmatpush1.bf16.msra.mxu0 0
      %2566 = vmatprep.subr.bf16.mxu0 0
      %2567 = vmatpush1.bf16.msra.mxu0 0
      %2568 = vmatprep.subr.bf16.mxu0 0
      %2569 = vmatpush1.bf16.msra.mxu0 0
      %2570 = vmatprep.mubr.bf16.mxu0 0
      %2571 = vmatmul.mubr.bf16.gmra.mrb[0].mxu0 %v2472
      %v2572 = vpop.f32.mrb[0].mxu0
      %v2573 = vadd.f32 %v2489, %v2572
      %v2574 = vpop.f32.mrb[0].mxu0
      %v2575 = vpop.f32.mrb[0].mxu0
      %v2576 = vpop.f32.mrb[0].mxu0
      %2577 = vdwg.mxu0
      %v2578 = vmax.f32 %v2573, 0.0
      %v2579 = vpack.c.bf16 %v2578, %v2578
      %v2580 = vld [vmem:[%s9] sm:$0xf]
      %v2581 = vld [vmem:[%s9 + $0x4] sm:$0xf]
      %v2582 = vld [vmem:[%s10] sm:$0x1]
      %v2585 = vunpack.c.l.b16 %v2580
      %v2586 = vunpack.c.l.b16 %v2581
      %v2587 = vpack.c.b16 %v2586, %v2585
      %v2590 = vsel %vm1675, %v2579, 0
      %2592 = vmatprep.subr.bf16.mxu0 0
      %2593 = vmatpush1.bf16.msra.mxu0 %v2587
      %2594 = vmatprep.subr.bf16.mxu0 0
      %2595 = vmatpush1.bf16.msra.mxu0 0
      %2596 = vmatprep.subr.bf16.mxu0 0
      %2597 = vmatpush1.bf16.msra.mxu0 0
      %2598 = vmatprep.subr.bf16.mxu0 0
      %2599 = vmatpush1.bf16.msra.mxu0 0
      %2600 = vmatprep.subr.bf16.mxu0 0
      %2601 = vmatpush1.bf16.msra.mxu0 0
      %2602 = vmatprep.subr.bf16.mxu0 0
      %2603 = vmatpush1.bf16.msra.mxu0 0
      %2604 = vmatprep.subr.bf16.mxu0 0
      %2605 = vmatpush1.bf16.msra.mxu0 0
      %2606 = vmatprep.subr.bf16.mxu0 0
      %2607 = vmatpush1.bf16.msra.mxu0 0
      %2608 = vmatprep.subr.bf16.mxu0 0
      %2609 = vmatpush1.bf16.msra.mxu0 0
      %2610 = vmatprep.subr.bf16.mxu0 0
      %2611 = vmatpush1.bf16.msra.mxu0 0
      %2612 = vmatprep.subr.bf16.mxu0 0
      %2613 = vmatpush1.bf16.msra.mxu0 0
      %2614 = vmatprep.subr.bf16.mxu0 0
      %2615 = vmatpush1.bf16.msra.mxu0 0
      %2616 = vmatprep.subr.bf16.mxu0 0
      %2617 = vmatpush1.bf16.msra.mxu0 0
      %2618 = vmatprep.subr.bf16.mxu0 0
      %2619 = vmatpush1.bf16.msra.mxu0 0
      %2620 = vmatprep.subr.bf16.mxu0 0
      %2621 = vmatpush1.bf16.msra.mxu0 0
      %2622 = vmatprep.subr.bf16.mxu0 0
      %2623 = vmatpush1.bf16.msra.mxu0 0
      %2624 = vmatprep.mubr.bf16.mxu0 0
      %2625 = vmatmul.mubr.bf16.gmra.mrb[0].mxu0 %v2590
      %v2626 = vpop.f32.mrb[0].mxu0
      %v2627 = vadd.f32 %v2582, %v2626
      %v2628 = vpop.f32.mrb[0].mxu0
      %v2629 = vpop.f32.mrb[0].mxu0
      %v2630 = vpop.f32.mrb[0].mxu0
      %2631 = vdwg.mxu0
      %v2632 = vxor.u32 %v2627, 2147483648
      %v2633 = vmul.f32 %v2632, 1.442695
      %v2634 = vpow.pop %v2633
      %v2635 = vadd.f32 %v2634, 1.0
      %v2636 = vrcp.pop %v2635
      %v2637 = vmul.f32 1.0, %v2636
      %v2638 = vxor.u32 %v2461, 2147483648
      %v2639 = vxor.u32 %v2462, 2147483648
      %v2640 = vmul.f32 %v2638, 1.442695
      %v2641 = vpow.pop %v2640
      %v2642 = vmul.f32 %v2639, 1.442695
      %v2643 = vpow.pop %v2642
      %v2644 = vadd.f32 %v2641, 1.0
      %v2645 = vadd.f32 %v2643, 1.0
      %v2646 = vrcp.pop %v2644
      %v2647 = vmul.f32 1.0, %v2646
      %v2648 = vrcp.pop %v2645
      %v2649 = vmul.f32 1.0, %v2648
      %v2650 = vadd.f32 %v2647, 1.0
      %v2651 = vadd.f32 %v2649, 1.0
      %v2652 = vlaneseq
      %v2653 = vshrl.u32 %v2652, 7
      %v2654 = vsub.s32 0, %v2653
      %v2655 = vrot.slane %v2637, %v2654
      %v2656 = vadd.f32 %v2650, %v2655
      %v2657 = vadd.f32 %v2651, %v2655
      %v2658 = vmul.f32 %v2463, %v2656
      %v2659 = vmul.f32 %v2464, %v2657
      %v2660 = vmax.f32 %v2658, 0.0
      %v2661 = vmax.f32 %v2659, 0.0
      %v2662 = vmax.f32 %v1338, 0.0
      %v2663 = vmax.f32 %v1339, 0.0
      %v2664 = vpack.c.bf16 %v2663, %v2662
      %v2665 = vld [vmem:[%s11] sm:$0xf]
      %v2666 = vld [vmem:[%s11 + $0x4] sm:$0xf]
      %v2667 = vld [vmem:[%s11 + $0x8] sm:$0xf]
      %v2668 = vld [vmem:[%s11 + $0xc] sm:$0xf]
      %v2669 = vld [vmem:[%s11 + $0x10] sm:$0xf]
      %v2670 = vld [vmem:[%s11 + $0x14] sm:$0xf]
      %v2671 = vld [vmem:[%s11 + $0x18] sm:$0xf]
      %v2672 = vld [vmem:[%s11 + $0x1c] sm:$0xf]
      %v2673 = vld [vmem:[%s11 + $0x20] sm:$0xf]
      %v2674 = vld [vmem:[%s11 + $0x24] sm:$0xf]
      %v2675 = vld [vmem:[%s11 + $0x28] sm:$0xf]
      %v2676 = vld [vmem:[%s11 + $0x2c] sm:$0xf]
      %v2677 = vld [vmem:[%s11 + $0x30] sm:$0xf]
      %v2678 = vld [vmem:[%s11 + $0x34] sm:$0xf]
      %v2679 = vld [vmem:[%s11 + $0x38] sm:$0xf]
      %v2680 = vld [vmem:[%s11 + $0x3c] sm:$0xf]
      %v2681 = vpack.c.bf16 %v2661, %v2660
      %v2682 = vld [vmem:[%s12] sm:$0xf]
      %v2683 = vld [vmem:[%s12 + $0x4] sm:$0xf]
      %v2684 = vld [vmem:[%s12 + $0x8] sm:$0xf]
      %v2685 = vld [vmem:[%s12 + $0xc] sm:$0xf]
      %v2686 = vld [vmem:[%s12 + $0x10] sm:$0xf]
      %v2687 = vld [vmem:[%s12 + $0x14] sm:$0xf]
      %v2688 = vld [vmem:[%s12 + $0x18] sm:$0xf]
      %v2689 = vld [vmem:[%s12 + $0x1c] sm:$0xf]
      %v2690 = vld [vmem:[%s12 + $0x20] sm:$0xf]
      %v2691 = vld [vmem:[%s12 + $0x24] sm:$0xf]
      %v2692 = vld [vmem:[%s12 + $0x28] sm:$0xf]
      %v2693 = vld [vmem:[%s12 + $0x2c] sm:$0xf]
      %v2694 = vld [vmem:[%s12 + $0x30] sm:$0xf]
      %v2695 = vld [vmem:[%s12 + $0x34] sm:$0xf]
      %v2696 = vld [vmem:[%s12 + $0x38] sm:$0xf]
      %v2697 = vld [vmem:[%s12 + $0x3c] sm:$0xf]
      %v2714 = vunpack.c.l.b16 %v2682
      %v2715 = vunpack.c.l.b16 %v2683
      %v2716 = vunpack.c.l.b16 %v2684
      %v2717 = vunpack.c.l.b16 %v2685
      %v2718 = vunpack.c.l.b16 %v2686
      %v2719 = vunpack.c.l.b16 %v2687
      %v2720 = vunpack.c.l.b16 %v2688
      %v2721 = vunpack.c.l.b16 %v2689
      %v2722 = vunpack.c.l.b16 %v2690
      %v2723 = vunpack.c.l.b16 %v2691
      %v2724 = vunpack.c.l.b16 %v2692
      %v2725 = vunpack.c.l.b16 %v2693
      %v2726 = vunpack.c.l.b16 %v2694
      %v2727 = vunpack.c.l.b16 %v2695
      %v2728 = vunpack.c.l.b16 %v2696
      %v2729 = vunpack.c.l.b16 %v2697
      %v2730 = vpack.c.b16 %v2715, %v2714
      %v2731 = vpack.c.b16 %v2717, %v2716
      %v2732 = vpack.c.b16 %v2719, %v2718
      %v2733 = vpack.c.b16 %v2721, %v2720
      %v2734 = vpack.c.b16 %v2723, %v2722
      %v2735 = vpack.c.b16 %v2725, %v2724
      %v2736 = vpack.c.b16 %v2727, %v2726
      %v2737 = vpack.c.b16 %v2729, %v2728
      %2746 = vmatprep.subr.bf16.mxu0 0
      %2747 = vmatpush1.bf16.msra.mxu0 %v2730
      %2748 = vmatprep.subr.bf16.mxu0 0
      %2749 = vmatpush1.bf16.msra.mxu0 %v2731
      %2750 = vmatprep.subr.bf16.mxu0 0
      %2751 = vmatpush1.bf16.msra.mxu0 %v2732
      %2752 = vmatprep.subr.bf16.mxu0 0
      %2753 = vmatpush1.bf16.msra.mxu0 %v2733
      %2754 = vmatprep.subr.bf16.mxu0 0
      %2755 = vmatpush1.bf16.msra.mxu0 %v2734
      %2756 = vmatprep.subr.bf16.mxu0 0
      %2757 = vmatpush1.bf16.msra.mxu0 %v2735
      %2758 = vmatprep.subr.bf16.mxu0 0
      %2759 = vmatpush1.bf16.msra.mxu0 %v2736
      %2760 = vmatprep.subr.bf16.mxu0 0
      %2761 = vmatpush1.bf16.msra.mxu0 %v2737
      %2762 = vmatprep.subr.bf16.mxu0 0
      %2763 = vmatpush1.bf16.msra.mxu0 0
      %2764 = vmatprep.subr.bf16.mxu0 0
      %2765 = vmatpush1.bf16.msra.mxu0 0
      %2766 = vmatprep.subr.bf16.mxu0 0
      %2767 = vmatpush1.bf16.msra.mxu0 0
      %2768 = vmatprep.subr.bf16.mxu0 0
      %2769 = vmatpush1.bf16.msra.mxu0 0
      %2770 = vmatprep.subr.bf16.mxu0 0
      %2771 = vmatpush1.bf16.msra.mxu0 0
      %2772 = vmatprep.subr.bf16.mxu0 0
      %2773 = vmatpush1.bf16.msra.mxu0 0
      %2774 = vmatprep.subr.bf16.mxu0 0
      %2775 = vmatpush1.bf16.msra.mxu0 0
      %2776 = vmatprep.subr.bf16.mxu0 0
      %2777 = vmatpush1.bf16.msra.mxu0 0
      %2778 = vmatprep.mubr.bf16.mxu0 0
      %2779 = vmatmul.mubr.bf16.gmra.mrb[0].mxu0 %v2681
      %v2780 = vpop.f32.mrb[0].mxu0
      %v2781 = vadd.f32 0.0, %v2780
      %v2782 = vpop.f32.mrb[0].mxu0
      %v2783 = vpop.f32.mrb[0].mxu0
      %v2784 = vadd.f32 0.0, %v2783
      %v2785 = vpop.f32.mrb[0].mxu0
      %2786 = vdwg.mxu0
      %v2803 = vunpack.c.l.b16 %v2665
      %v2804 = vunpack.c.l.b16 %v2666
      %v2805 = vunpack.c.l.b16 %v2667
      %v2806 = vunpack.c.l.b16 %v2668
      %v2807 = vunpack.c.l.b16 %v2669
      %v2808 = vunpack.c.l.b16 %v2670
      %v2809 = vunpack.c.l.b16 %v2671
      %v2810 = vunpack.c.l.b16 %v2672
      %v2811 = vunpack.c.l.b16 %v2673
      %v2812 = vunpack.c.l.b16 %v2674
      %v2813 = vunpack.c.l.b16 %v2675
      %v2814 = vunpack.c.l.b16 %v2676
      %v2815 = vunpack.c.l.b16 %v2677
      %v2816 = vunpack.c.l.b16 %v2678
      %v2817 = vunpack.c.l.b16 %v2679
      %v2818 = vunpack.c.l.b16 %v2680
      %v2819 = vpack.c.b16 %v2804, %v2803
      %v2820 = vpack.c.b16 %v2806, %v2805
      %v2821 = vpack.c.b16 %v2808, %v2807
      %v2822 = vpack.c.b16 %v2810, %v2809
      %v2823 = vpack.c.b16 %v2812, %v2811
      %v2824 = vpack.c.b16 %v2814, %v2813
      %v2825 = vpack.c.b16 %v2816, %v2815
      %v2826 = vpack.c.b16 %v2818, %v2817
      %2835 = vmatprep.subr.bf16.mxu0 0
      %2836 = vmatpush1.bf16.msra.mxu0 %v2819
      %2837 = vmatprep.subr.bf16.mxu0 0
      %2838 = vmatpush1.bf16.msra.mxu0 %v2820
      %2839 = vmatprep.subr.bf16.mxu0 0
      %2840 = vmatpush1.bf16.msra.mxu0 %v2821
      %2841 = vmatprep.subr.bf16.mxu0 0
      %2842 = vmatpush1.bf16.msra.mxu0 %v2822
      %2843 = vmatprep.subr.bf16.mxu0 0
      %2844 = vmatpush1.bf16.msra.mxu0 %v2823
      %2845 = vmatprep.subr.bf16.mxu0 0
      %2846 = vmatpush1.bf16.msra.mxu0 %v2824
      %2847 = vmatprep.subr.bf16.mxu0 0
      %2848 = vmatpush1.bf16.msra.mxu0 %v2825
      %2849 = vmatprep.subr.bf16.mxu0 0
      %2850 = vmatpush1.bf16.msra.mxu0 %v2826
      %2851 = vmatprep.subr.bf16.mxu0 0
      %2852 = vmatpush1.bf16.msra.mxu0 0
      %2853 = vmatprep.subr.bf16.mxu0 0
      %2854 = vmatpush1.bf16.msra.mxu0 0
      %2855 = vmatprep.subr.bf16.mxu0 0
      %2856 = vmatpush1.bf16.msra.mxu0 0
      %2857 = vmatprep.subr.bf16.mxu0 0
      %2858 = vmatpush1.bf16.msra.mxu0 0
      %2859 = vmatprep.subr.bf16.mxu0 0
      %2860 = vmatpush1.bf16.msra.mxu0 0
      %2861 = vmatprep.subr.bf16.mxu0 0
      %2862 = vmatpush1.bf16.msra.mxu0 0
      %2863 = vmatprep.subr.bf16.mxu0 0
      %2864 = vmatpush1.bf16.msra.mxu0 0
      %2865 = vmatprep.subr.bf16.mxu0 0
      %2866 = vmatpush1.bf16.msra.mxu0 0
      %2867 = vmatprep.mubr.bf16.mxu0 0
      %2868 = vmatmul.mubr.bf16.gmra.mrb[0].mxu0 %v2664
      %v2869 = vpop.f32.mrb[0].mxu0
      %v2870 = vadd.f32 %v2781, %v2869
      %v2871 = vpop.f32.mrb[0].mxu0
      %v2872 = vpop.f32.mrb[0].mxu0
      %v2873 = vadd.f32 %v2784, %v2872
      %v2874 = vpop.f32.mrb[0].mxu0
      %2875 = vdwg.mxu0
      %2876 = vst [vmem:[%s480] sm:$0xff] %v2870
      %2877 = vst [vmem:[%s480 + $0x8] sm:$0xff] %v2873
      %p2878 = scmp.lt.s32.totalorder %s24, 1
      %s2879 = scalar_select %p2878, %s24, 1
      %s2880 = smul.addr %s2879, 2
      %s2881 = smul.addr %s2880, 8
      %s2882 = scalar_lea.vmem %s13, %s2881
      // Predicated region
      $region73: #{pda_forward.1} parent=71 // pred_check
        %p2883 = pneg %p330
      $region74: #{pda_forward.1} parent=71 // pred_check_branch
        %2885 = sbr.rel (%p2883) target = $region76
      $region75: #{pda_forward.1} parent=71 // pred_region
        _
      $region76: #{pda_forward.1} parent=71 // pred_fallthru
        _
    $region72: #{pda_forward.1} parent=5 // pred_fallthru
      _
    %p2886 = scmp.le.s32.totalorder 2, %s19
    // Predicated region
    $region77: #{pda_forward.1} parent=5 // pred_check
      %p2887 = pneg %p2886
    $region78: #{pda_forward.1} parent=5 // pred_check_branch
      %2889 = sbr.rel (%p2887) target = $region80
    $region79: #{pda_forward.1} parent=5 // pred_region
      %s2890 = ssub.s32 %s19, 2
      // Predicated region
      $region81: #{pda_forward.1} parent=79 // pred_check
        %p2891 = pneg %p336
      $region82: #{pda_forward.1} parent=79 // pred_check_branch
        %2893 = sbr.rel (%p2891) target = $region84
      $region83: #{pda_forward.1} parent=79 // pred_region
        %p2894 = scmp.lt.s32.totalorder %s25, 1
        %s2895 = scalar_select %p2894, %s25, 1
        %s2896 = smul.addr %s2895, 2
        %s2897 = smul.addr %s2896, 8
        %s2898 = scalar_lea.vmem %s13, %s2897
      $region84: #{pda_forward.1} parent=79 // pred_fallthru
        _
    $region80: #{pda_forward.1} parent=5 // pred_fallthru
      _
  $region6: #{pda_forward.1} parent=0 // loop_footer
    %s23 = sadd.s32 1, %s19
  $region7: #{pda_forward.1} parent=0 // loop_footer_branch
    %18 = sbr.rel target = $region3
  $region8: #{pda_forward.1} parent=0 // loop_exit
    _

</llo_original>
